<compile_context>
chip_gen: v6e
topology: v6e:2x2x1
jax: 0.10.0
libtpu: 0.0.40
codegen_flags: <defaults>
</compile_context>

<pallas_src>
import functools
import math

import jax
import jax.numpy as jnp
from jax.experimental import pallas as pl
from jax.experimental.pallas import tpu as pltpu

EPS = 1e-5


def _round_up(x, m):
    return ((x + m - 1) // m) * m


# ---------------------------------------------------------------------------
# In-kernel helpers (traced inside the Pallas kernel bodies)
# ---------------------------------------------------------------------------

def _roll_last(x, shift, size):
    """Static circular roll along the last axis: out[..., i] = x[..., (i - shift) % size]."""
    shift = shift % size
    if shift == 0:
        return x
    return jnp.concatenate([x[..., size - shift:], x[..., :size - shift]], axis=-1)


def _shift_cols(x, dx, W):
    """Circularly shift every W-wide row of a (C, H*W) flat image by dx columns.

    out[c, y*W + xx] = x[c, y*W + (xx + dx) % W]
    """
    if dx == 0:
        return x
    HW = x.shape[-1]
    col = jax.lax.broadcasted_iota(jnp.int32, x.shape, x.ndim - 1) % W
    if dx > 0:
        return jnp.where(col >= W - dx,
                         _roll_last(x, W - dx, HW),
                         _roll_last(x, -dx, HW))
    return jnp.where(col < -dx,
                     _roll_last(x, -(dx + W), HW),
                     _roll_last(x, -dx, HW))


def _circular_conv(x, w_flat, H, W, K, bias=None):
    """KxK conv with circular padding in a channels-first flat layout.

    x:      (Cin, H*W) float32 (lane-dense: H*W on the 128-lane axis).
    w_flat: (Cout, K*K*Cin), taps ordered (kx, ky, cin) -- see _flatten_conv_w.
    Returns (Cout, H*W) float32.

    The wrap padding is realized with static rolls of the VMEM-resident image,
    the K*K shifted taps are stacked along the contraction axis (im2col) and
    the conv is a single MXU matmul with a K*K*Cin-deep contraction.
    """
    HW = H * W
    p = K // 2
    taps = []
    for kx in range(K):
        shifted = _shift_cols(x, kx - p, W)
        for ky in range(K):
            taps.append(_roll_last(shifted, -(ky - p) * W, HW))
    rhs = taps[0] if len(taps) == 1 else jnp.concatenate(taps, axis=0)
    out = jnp.dot(w_flat, rhs, preferred_element_type=jnp.float32)
    if bias is not None:
        out = out + bias
    return out


def _squeeze_excite(y, w1, b1, w2, b2):
    """SqueezeExcitation on a channels-first (C, H*W) activation.

    VPU broadcast-multiplies + lane/sublane reductions (no M=1 MXU matmuls).
    w1, w2: (C, Cs); b1: (1, Cs); b2: (C, 1).
    """
    hw = y.shape[-1]
    pooled = jnp.sum(y, axis=1, keepdims=True) * (1.0 / hw)          # (C, 1)
    h = jnp.sum(w1 * pooled, axis=0, keepdims=True) + b1             # (1, Cs)
    h = jnp.maximum(h, 0.0)
    s = jnp.sum(w2 * h, axis=1, keepdims=True) + b2                  # (C, 1)
    s = jax.nn.sigmoid(s)
    return y * s


# ---------------------------------------------------------------------------
# Fused Pallas kernels (one image per grid step)
# ---------------------------------------------------------------------------

def _first_block_kernel(x_ref, w_ref, b_ref, w1_ref, b1_ref, w2_ref, b2_ref,
                        o_ref, *, H, W, K):
    """conv(+folded BN) -> SE -> ReLU (Dropout = identity)."""
    x = x_ref[0].astype(jnp.float32)                                 # (Cin, H*W)
    y = _circular_conv(x, w_ref[...], H, W, K, bias=b_ref[...])
    y = _squeeze_excite(y, w1_ref[...], b1_ref[...], w2_ref[...], b2_ref[...])
    o_ref[0] = jnp.maximum(y, 0.0).astype(o_ref.dtype)


def _basic_block_kernel(a_ref, *refs, H, W, K, has_pre):
    """Fused SeBasicBlock:
       [BN1 -> SE -> ReLU ->] conv1(+folded BN2) -> ReLU -> conv2 -> + identity."""
    if has_pre:
        (bn1s_ref, bn1b_ref, sw1_ref, sb1_ref, sw2_ref, sb2_ref,
         w1_ref, b1_ref, w2_ref, o_ref) = refs
    else:
        w1_ref, b1_ref, w2_ref, o_ref = refs

    a = a_ref[0].astype(jnp.float32)                                 # (Cin, H*W)
    h = a
    if has_pre:
        h = h * bn1s_ref[...] + bn1b_ref[...]
        h = _squeeze_excite(h, sw1_ref[...], sb1_ref[...],
                            sw2_ref[...], sb2_ref[...])
        h = jnp.maximum(h, 0.0)

    h = _circular_conv(h, w1_ref[...], H, W, K, bias=b1_ref[...])    # conv1 + BN2
    h = jnp.maximum(h, 0.0)                                          # relu2
    out = _circular_conv(h, w2_ref[...], H, W, K)                    # conv2

    cin, cout = a.shape[0], out.shape[0]
    if cout == cin:
        out = out + a
    else:
        # Residual with zero channel padding, applied in-kernel via a tiny 0/1
        # placement matmul (no HBM-padded identity tensor).
        ch1 = (cout - cin) // 2
        row = jax.lax.broadcasted_iota(jnp.int32, (cout, cin), 0)
        col = jax.lax.broadcasted_iota(jnp.int32, (cout, cin), 1)
        place = (row == col + ch1).astype(jnp.float32)
        out = out + jnp.dot(place, a, preferred_element_type=jnp.float32)
    o_ref[0] = out.astype(o_ref.dtype)


def _last_block_kernel(a_ref, bns_ref, bnb_ref, w1_ref, b1_ref, w2_ref, b2_ref,
                       w_ref, o_ref, *, H, W, K):
    """BN -> SE -> ReLU -> conv."""
    a = a_ref[0].astype(jnp.float32)
    h = a * bns_ref[...] + bnb_ref[...]
    h = _squeeze_excite(h, w1_ref[...], b1_ref[...], w2_ref[...], b2_ref[...])
    h = jnp.maximum(h, 0.0)
    o_ref[0] = _circular_conv(h, w_ref[...], H, W, K).astype(o_ref.dtype)


# ---------------------------------------------------------------------------
# pallas_call wrappers (activations live in HBM as (N, C, H*W))
# ---------------------------------------------------------------------------

def _const_spec(arr):
    nd = arr.ndim
    return pl.BlockSpec(arr.shape, lambda n: (0,) * nd)


def _batch_spec(shape):
    nd = len(shape)
    return pl.BlockSpec((1,) + tuple(shape[1:]), lambda n: (n,) + (0,) * (nd - 1))


def _stage_call(kernel, x, const_args, out_channels):
    """Run one fused stage over the batch: grid=(N,), one image per step."""
    N, _, HW = x.shape
    return pl.pallas_call(
        kernel,
        out_shape=jax.ShapeDtypeStruct((N, out_channels, HW), x.dtype),
        grid=(N,),
        in_specs=[_batch_spec(x.shape)] + [_const_spec(a) for a in const_args],
        out_specs=_batch_spec((N, out_channels, HW)),
        # "parallel" shards the batch over v7x's two TensorCores; on v5e/v6e it
        # is just N cheap sequential steps with resident weights.
        compiler_params=pltpu.CompilerParams(dimension_semantics=("parallel",)),
    )(x, *const_args)


def _first_block_call(x, fp, H, W):
    cin = x.shape[1]
    w = fp["w"]
    K = int(round(math.sqrt(w.shape[1] // cin)))
    kern = functools.partial(_first_block_kernel, H=H, W=W, K=K)
    consts = (w, fp["b"], *fp["se"])
    return _stage_call(kern, x, consts, w.shape[0])


def _basic_block_call(a, kb, H, W):
    cin = a.shape[1]
    w1 = kb["w1"]
    K = int(round(math.sqrt(w1.shape[1] // cin)))
    has_pre = "se" in kb
    consts = ()
    if has_pre:
        consts += (kb["bn1_scale"], kb["bn1_shift"], *kb["se"])
    consts += (w1, kb["b1"], kb["w2"])
    kern = functools.partial(_basic_block_kernel, H=H, W=W, K=K, has_pre=has_pre)
    return _stage_call(kern, a, consts, w1.shape[0])


def _last_block_call(a, lp, H, W):
    cin = a.shape[1]
    w = lp["w"]
    K = int(round(math.sqrt(w.shape[1] // cin)))
    consts = (lp["bn_scale"], lp["bn_shift"], *lp["se"], w)
    kern = functools.partial(_last_block_kernel, H=H, W=W, K=K)
    return _stage_call(kern, a, consts, w.shape[0])


# ---------------------------------------------------------------------------
# Parameter preparation (BN folding + kernel-friendly layouts)
# ---------------------------------------------------------------------------

def _flatten_conv_w(w):
    """(Cout, Cin, K, K) OIHW -> (Cout, K*K*Cin), taps ordered (kx, ky, cin)."""
    cout, cin, k, _ = w.shape
    return jnp.transpose(w, (0, 3, 2, 1)).reshape(cout, k * k * cin)


def prepare_kernel_params(params):
    """Fold eval-mode BN into the preceding conv; lay out parameters for the kernels."""
    def fold(w, scale, shift):
        return _flatten_conv_w(w * scale[:, None, None, None]), shift.reshape(-1, 1)

    def se_k(se):
        w1, b1, w2, b2 = se
        return (w1, b1.reshape(1, -1), w2, b2.reshape(-1, 1))

    kp = {}
    fb = params["first"]
    w0 = fb["conv_w"] * fb["bn_scale"][:, None, None, None]
    cin0 = w0.shape[1]
    cin0_pad = _round_up(cin0, 8)
    if cin0_pad != cin0:                       # sublane-align input channels
        w0 = jnp.pad(w0, ((0, 0), (0, cin0_pad - cin0), (0, 0), (0, 0)))
    kp["first"] = {"w": _flatten_conv_w(w0),
                   "b": fb["bn_shift"].reshape(-1, 1),
                   "se": se_k(fb["se"])}

    kblocks = []
    for i, blk in enumerate(params["blocks"]):
        w1f, b1f = fold(blk["conv1_w"], blk["bn2_scale"], blk["bn2_shift"])
        kb = {"w1": w1f, "b1": b1f, "w2": _flatten_conv_w(blk["conv2_w"])}
        if i != 0:                             # is_first_block skips bn1 / SE / relu1
            kb["bn1_scale"] = blk["bn1_scale"].reshape(-1, 1)
            kb["bn1_shift"] = blk["bn1_shift"].reshape(-1, 1)
            kb["se"] = se_k(blk["se"])
        kblocks.append(kb)
    kp["blocks"] = kblocks

    lb = params["last"]
    kp["last"] = {"bn_scale": lb["bn_scale"].reshape(-1, 1),
                  "bn_shift": lb["bn_shift"].reshape(-1, 1),
                  "se": se_k(lb["se"]),
                  "w": _flatten_conv_w(lb["conv_w"])}
    return kp


# ---------------------------------------------------------------------------
# Forward pass (Pallas path).  Input / output are NCHW like the PyTorch module.
# ---------------------------------------------------------------------------

def se_resnet2d_forward(kparams, x_nchw):
    N, Cin, H, W = x_nchw.shape
    x = x_nchw.reshape(N, Cin, H * W)          # channels-first, lane-dense (free reshape)
    cin_pad = _round_up(Cin, 8)
    if cin_pad != Cin:                         # zero-pad input channels to the sublane tile
        x = jnp.pad(x, ((0, 0), (0, cin_pad - Cin), (0, 0)))

    out = _first_block_call(x, kparams["first"], H, W)
    for kb in kparams["blocks"]:
        out = _basic_block_call(out, kb, H, W)
    out = _last_block_call(out, kparams["last"], H, W)
    return out.reshape(N, out.shape[1], H, W)  # free reshape back to NCHW


# ---------------------------------------------------------------------------
# Deterministic synthetic parameters (shapes follow the PyTorch __init__)
# ---------------------------------------------------------------------------

def init_params(key, in_channels, out_channels, kernel_sizes, n_channels,
                squeeze_factor=4):
    key_box = [key]

    def nxt():
        key_box[0], sub = jax.random.split(key_box[0])
        return sub

    def conv_w(cout, cin, k):
        fan_in = cin * k * k
        return jax.random.normal(nxt(), (cout, cin, k, k), jnp.float32) / math.sqrt(fan_in)

    def bn(c):
        gamma = 1.0 + 0.1 * jax.random.normal(nxt(), (c,), jnp.float32)
        beta = 0.1 * jax.random.normal(nxt(), (c,), jnp.float32)
        mean = 0.1 * jax.random.normal(nxt(), (c,), jnp.float32)
        var = jnp.abs(1.0 + 0.1 * jax.random.normal(nxt(), (c,), jnp.float32))
        scale = gamma / jnp.sqrt(var + EPS)
        shift = beta - mean * scale
        return scale, shift

    def se(c, cs):
        w1 = jax.random.normal(nxt(), (c, cs), jnp.float32) / math.sqrt(c)
        b1 = 0.1 * jax.random.normal(nxt(), (cs,), jnp.float32)
        w2 = jax.random.normal(nxt(), (c, cs), jnp.float32) / math.sqrt(cs)
        b2 = 0.1 * jax.random.normal(nxt(), (c,), jnp.float32)
        return (w1, b1, w2, b2)

    params = {}
    n0 = n_channels[0]
    sc, sh = bn(n0)
    params["first"] = {"conv_w": conv_w(n0, in_channels, kernel_sizes[0]),
                       "bn_scale": sc, "bn_shift": sh,
                       "se": se(n0, max(1, n0 // squeeze_factor))}

    blocks = []
    for i in range(len(n_channels) - 1):
        cin, cout, k = n_channels[i], n_channels[i + 1], kernel_sizes[i]
        sc1, sh1 = bn(cin)
        sc2, sh2 = bn(cout)
        blocks.append({"bn1_scale": sc1, "bn1_shift": sh1,
                       "se": se(cin, max(1, cin // squeeze_factor)),
                       "conv1_w": conv_w(cout, cin, k),
                       "bn2_scale": sc2, "bn2_shift": sh2,
                       "conv2_w": conv_w(cout, cout, k)})
    params["blocks"] = blocks

    cl = n_channels[-1]
    scl, shl = bn(cl)
    params["last"] = {"bn_scale": scl, "bn_shift": shl,
                      "se": se(cl, max(1, cl // 4)),
                      "conv_w": conv_w(out_channels, cl, 3)}
    return params


# ---------------------------------------------------------------------------
# Pure-JAX reference (numerical check, NCHW)
# ---------------------------------------------------------------------------

def _ref_conv(x, w):
    p = w.shape[-1] // 2
    xpad = jnp.pad(x, ((0, 0), (0, 0), (p, p), (p, p)), mode="wrap")
    return jax.lax.conv_general_dilated(
        xpad, w, (1, 1), "VALID",
        dimension_numbers=("NCHW", "OIHW", "NCHW"))


def _ref_bn(x, scale, shift):
    return x * scale[None, :, None, None] + shift[None, :, None, None]


def _ref_se(y, w1, b1, w2, b2):
    pooled = jnp.mean(y, axis=(2, 3))                         # (N, C)
    h = jnp.maximum(pooled @ w1 + b1, 0.0)                    # (N, Cs)
    s = jax.nn.sigmoid(h @ w2.T + b2)                         # (N, C)
    return y * s[:, :, None, None]


def se_resnet2d_reference(params, x):
    fb = params["first"]
    out = _ref_conv(x, fb["conv_w"])
    out = _ref_bn(out, fb["bn_scale"], fb["bn_shift"])
    out = _ref_se(out, *fb["se"])
    out = jnp.maximum(out, 0.0)

    for i, blk in enumerate(params["blocks"]):
        identity = out
        h = out
        if i != 0:
            h = _ref_bn(h, blk["bn1_scale"], blk["bn1_shift"])
            h = _ref_se(h, *blk["se"])
            h = jnp.maximum(h, 0.0)
        h = _ref_conv(h, blk["conv1_w"])
        h = _ref_bn(h, blk["bn2_scale"], blk["bn2_shift"])
        h = jnp.maximum(h, 0.0)
        h = _ref_conv(h, blk["conv2_w"])
        cin, cout = blk["conv1_w"].shape[1], blk["conv1_w"].shape[0]
        if cout != cin:
            ch1 = (cout - cin) // 2
            ch2 = cout - cin - ch1
            identity = jnp.pad(identity, ((0, 0), (ch1, ch2), (0, 0), (0, 0)))
        out = h + identity

    lb = params["last"]
    h = _ref_bn(out, lb["bn_scale"], lb["bn_shift"])
    h = _ref_se(h, *lb["se"])
    h = jnp.maximum(h, 0.0)
    return _ref_conv(h, lb["conv_w"])


# ---------------------------------------------------------------------------

if __name__ == "__main__":
    key = jax.random.PRNGKey(0)
    k_par, k_x = jax.random.split(key)

    in_channels, out_channels = 4, 2
    kernel_sizes = [3, 3, 3]
    n_channels = [8, 8, 16]
    N, H, W = 2, 16, 16

    params = init_params(k_par, in_channels, out_channels, kernel_sizes, n_channels)
    kparams = prepare_kernel_params(params)
    x = jax.random.normal(k_x, (N, in_channels, H, W), jnp.float32)   # NCHW like PyTorch

    fwd = jax.jit(se_resnet2d_forward)
    y = jax.block_until_ready(fwd(kparams, x))

    y_ref = se_resnet2d_reference(params, x)
    assert y.shape == (N, out_channels, H, W)
    assert jnp.allclose(y, y_ref, atol=1e-3, rtol=1e-3), "mismatch vs JAX reference"

    print("KERNEL_OK")
</pallas_src>

<mosaic_0001>
module attributes {stable_mosaic.version = 11 : i64} {
  func.func @_basic_block_kernel(%arg0: i32, %arg1: memref<1x8x256xf32, #tpu.memory_space<vmem>>, %arg2: memref<8x1xf32, #tpu.memory_space<vmem>>, %arg3: memref<8x1xf32, #tpu.memory_space<vmem>>, %arg4: memref<8x2xf32, #tpu.memory_space<vmem>>, %arg5: memref<1x2xf32, #tpu.memory_space<vmem>>, %arg6: memref<8x2xf32, #tpu.memory_space<vmem>>, %arg7: memref<8x1xf32, #tpu.memory_space<vmem>>, %arg8: memref<16x72xf32, #tpu.memory_space<vmem>>, %arg9: memref<16x1xf32, #tpu.memory_space<vmem>>, %arg10: memref<16x144xf32, #tpu.memory_space<vmem>>, %arg11: memref<1x16x256xf32, #tpu.memory_space<vmem>>) attributes {dimension_semantics = [#tpu.dimension_semantics<parallel>], iteration_bounds = array<i64: 2>, scalar_prefetch = 0 : i64, scratch_operands = 0 : i64, tpu.core_type = #tpu.core_type<tc>, window_params = [{transform_indices = @transform_0, window_bounds = array<i64: 1, 8, 256>}, {pipeline_mode = #tpu.pipeline_mode<synchronous>, transform_indices = @transform_1, window_bounds = array<i64: 8, 1>}, {pipeline_mode = #tpu.pipeline_mode<synchronous>, transform_indices = @transform_2, window_bounds = array<i64: 8, 1>}, {pipeline_mode = #tpu.pipeline_mode<synchronous>, transform_indices = @transform_3, window_bounds = array<i64: 8, 2>}, {pipeline_mode = #tpu.pipeline_mode<synchronous>, transform_indices = @transform_4, window_bounds = array<i64: 1, 2>}, {pipeline_mode = #tpu.pipeline_mode<synchronous>, transform_indices = @transform_5, window_bounds = array<i64: 8, 2>}, {pipeline_mode = #tpu.pipeline_mode<synchronous>, transform_indices = @transform_6, window_bounds = array<i64: 8, 1>}, {pipeline_mode = #tpu.pipeline_mode<synchronous>, transform_indices = @transform_7, window_bounds = array<i64: 16, 72>}, {pipeline_mode = #tpu.pipeline_mode<synchronous>, transform_indices = @transform_8, window_bounds = array<i64: 16, 1>}, {pipeline_mode = #tpu.pipeline_mode<synchronous>, transform_indices = @transform_9, window_bounds = array<i64: 16, 144>}, {transform_indices = @transform_10, window_bounds = array<i64: 1, 16, 256>}]} {
    %c0 = arith.constant 0 : index
    %c0_0 = arith.constant 0 : index
    %c0_1 = arith.constant 0 : index
    %0 = vector.load %arg1[%c0, %c0_0, %c0_1] : memref<1x8x256xf32, #tpu.memory_space<vmem>>, vector<1x8x256xf32>
    %1 = vector.shape_cast %0 : vector<1x8x256xf32> to vector<8x256xf32>
    %c0_2 = arith.constant 0 : index
    %c0_3 = arith.constant 0 : index
    %2 = vector.load %arg2[%c0_2, %c0_3] : memref<8x1xf32, #tpu.memory_space<vmem>>, vector<8x1xf32>
    %3 = vector.broadcast %2 : vector<8x1xf32> to vector<8x256xf32>
    %4 = arith.mulf %1, %3 : vector<8x256xf32>
    %c0_4 = arith.constant 0 : index
    %c0_5 = arith.constant 0 : index
    %5 = vector.load %arg3[%c0_4, %c0_5] : memref<8x1xf32, #tpu.memory_space<vmem>>, vector<8x1xf32>
    %6 = vector.broadcast %5 : vector<8x1xf32> to vector<8x256xf32>
    %7 = arith.addf %4, %6 : vector<8x256xf32>
    %c0_6 = arith.constant 0 : index
    %c0_7 = arith.constant 0 : index
    %8 = vector.load %arg4[%c0_6, %c0_7] : memref<8x2xf32, #tpu.memory_space<vmem>>, vector<8x2xf32>
    %c0_8 = arith.constant 0 : index
    %c0_9 = arith.constant 0 : index
    %9 = vector.load %arg5[%c0_8, %c0_9] : memref<1x2xf32, #tpu.memory_space<vmem>>, vector<1x2xf32>
    %c0_10 = arith.constant 0 : index
    %c0_11 = arith.constant 0 : index
    %10 = vector.load %arg6[%c0_10, %c0_11] : memref<8x2xf32, #tpu.memory_space<vmem>>, vector<8x2xf32>
    %c0_12 = arith.constant 0 : index
    %c0_13 = arith.constant 0 : index
    %11 = vector.load %arg7[%c0_12, %c0_13] : memref<8x1xf32, #tpu.memory_space<vmem>>, vector<8x1xf32>
    %cst = arith.constant dense<0.000000e+00> : vector<8xf32>
    %12 = vector.multi_reduction <add>, %7, %cst [1] : vector<8x256xf32> to vector<8xf32>
    %13 = vector.shape_cast %12 : vector<8xf32> to vector<8x1xf32>
    %cst_14 = arith.constant 3.906250e-03 : f32
    %14 = vector.broadcast %cst_14 : f32 to vector<8x1xf32>
    %15 = arith.mulf %13, %14 : vector<8x1xf32>
    %16 = vector.broadcast %15 : vector<8x1xf32> to vector<8x2xf32>
    %17 = arith.mulf %8, %16 : vector<8x2xf32>
    %cst_15 = arith.constant dense<0.000000e+00> : vector<2xf32>
    %18 = vector.multi_reduction <add>, %17, %cst_15 [0] : vector<8x2xf32> to vector<2xf32>
    %19 = vector.shape_cast %18 : vector<2xf32> to vector<1x2xf32>
    %20 = arith.addf %19, %9 : vector<1x2xf32>
    %cst_16 = arith.constant 0.000000e+00 : f32
    %21 = vector.broadcast %cst_16 : f32 to vector<1x2xf32>
    %22 = arith.maximumf %20, %21 : vector<1x2xf32>
    %23 = vector.broadcast %22 : vector<1x2xf32> to vector<8x2xf32>
    %24 = arith.mulf %10, %23 : vector<8x2xf32>
    %cst_17 = arith.constant dense<0.000000e+00> : vector<8xf32>
    %25 = vector.multi_reduction <add>, %24, %cst_17 [1] : vector<8x2xf32> to vector<8xf32>
    %26 = vector.shape_cast %25 : vector<8xf32> to vector<8x1xf32>
    %27 = arith.addf %26, %11 : vector<8x1xf32>
    %28 = arith.negf %27 : vector<8x1xf32>
    %29 = math.exp %28 : vector<8x1xf32>
    %cst_18 = arith.constant 1.000000e+00 : f32
    %30 = vector.broadcast %cst_18 : f32 to vector<8x1xf32>
    %31 = arith.addf %30, %29 : vector<8x1xf32>
    %32 = arith.divf %30, %31 : vector<8x1xf32>
    %33 = vector.broadcast %32 : vector<8x1xf32> to vector<8x256xf32>
    %34 = arith.mulf %7, %33 : vector<8x256xf32>
    %cst_19 = arith.constant 0.000000e+00 : f32
    %35 = vector.broadcast %cst_19 : f32 to vector<8x256xf32>
    %36 = arith.maximumf %34, %35 : vector<8x256xf32>
    %c0_20 = arith.constant 0 : index
    %c0_21 = arith.constant 0 : index
    %37 = vector.load %arg8[%c0_20, %c0_21] : memref<16x72xf32, #tpu.memory_space<vmem>>, vector<16x72xf32>
    %c0_22 = arith.constant 0 : index
    %c0_23 = arith.constant 0 : index
    %38 = vector.load %arg9[%c0_22, %c0_23] : memref<16x1xf32, #tpu.memory_space<vmem>>, vector<16x1xf32>
    %39 = tpu.iota {dimensions = array<i32: 1>} : vector<8x256xi32>
    %c16_i32 = arith.constant 16 : i32
    %c0_i32 = arith.constant 0 : i32
    %40 = arith.cmpi eq, %c16_i32, %c0_i32 : i32
    %c1_i32 = arith.constant 1 : i32
    %41 = arith.select %40, %c1_i32, %c16_i32 : i32
    %42 = vector.broadcast %41 : i32 to vector<8x256xi32>
    %43 = arith.remsi %39, %42 : vector<8x256xi32>
    %c0_i32_24 = arith.constant 0 : i32
    %44 = vector.broadcast %c0_i32_24 : i32 to vector<8x256xi32>
    %45 = arith.cmpi ne, %43, %44 : vector<8x256xi32>
    %c0_i32_25 = arith.constant 0 : i32
    %46 = vector.broadcast %c0_i32_25 : i32 to vector<8x256xi32>
    %47 = arith.cmpi slt, %43, %46 : vector<8x256xi32>
    %c0_i32_26 = arith.constant 0 : i32
    %48 = arith.cmpi slt, %41, %c0_i32_26 : i32
    %49 = vector.broadcast %48 : i1 to vector<8x256xi1>
    %50 = vector.broadcast %49 : vector<8x256xi1> to vector<8x256xi1>
    %51 = arith.xori %47, %50 : vector<8x256xi1>
    %52 = arith.andi %51, %45 : vector<8x256xi1>
    %53 = vector.broadcast %41 : i32 to vector<8x256xi32>
    %54 = arith.addi %43, %53 : vector<8x256xi32>
    %55 = arith.select %52, %54, %43 : vector<8x256xi1>, vector<8x256xi32>
    %c1_i32_27 = arith.constant 1 : i32
    %56 = vector.broadcast %c1_i32_27 : i32 to vector<8x256xi32>
    %57 = arith.cmpi slt, %55, %56 : vector<8x256xi32>
    %58 = vector.extract_strided_slice %36 {offsets = [0, 15], sizes = [8, 241], strides = [1, 1]} : vector<8x256xf32> to vector<8x241xf32>
    %59 = vector.extract_strided_slice %36 {offsets = [0, 0], sizes = [8, 15], strides = [1, 1]} : vector<8x256xf32> to vector<8x15xf32>
    %60 = tpu.concatenate %58, %59 in 1 : vector<8x241xf32>, vector<8x15xf32> -> vector<8x256xf32>
    %61 = vector.extract_strided_slice %36 {offsets = [0, 255], sizes = [8, 1], strides = [1, 1]} : vector<8x256xf32> to vector<8x1xf32>
    %62 = vector.extract_strided_slice %36 {offsets = [0, 0], sizes = [8, 255], strides = [1, 1]} : vector<8x256xf32> to vector<8x255xf32>
    %63 = tpu.concatenate %61, %62 in 1 : vector<8x1xf32>, vector<8x255xf32> -> vector<8x256xf32>
    %64 = arith.select %57, %60, %63 : vector<8x256xi1>, vector<8x256xf32>
    %65 = vector.extract_strided_slice %64 {offsets = [0, 240], sizes = [8, 16], strides = [1, 1]} : vector<8x256xf32> to vector<8x16xf32>
    %66 = vector.extract_strided_slice %64 {offsets = [0, 0], sizes = [8, 240], strides = [1, 1]} : vector<8x256xf32> to vector<8x240xf32>
    %67 = tpu.concatenate %65, %66 in 1 : vector<8x16xf32>, vector<8x240xf32> -> vector<8x256xf32>
    %68 = vector.extract_strided_slice %64 {offsets = [0, 16], sizes = [8, 240], strides = [1, 1]} : vector<8x256xf32> to vector<8x240xf32>
    %69 = vector.extract_strided_slice %64 {offsets = [0, 0], sizes = [8, 16], strides = [1, 1]} : vector<8x256xf32> to vector<8x16xf32>
    %70 = tpu.concatenate %68, %69 in 1 : vector<8x240xf32>, vector<8x16xf32> -> vector<8x256xf32>
    %71 = vector.extract_strided_slice %36 {offsets = [0, 240], sizes = [8, 16], strides = [1, 1]} : vector<8x256xf32> to vector<8x16xf32>
    %72 = vector.extract_strided_slice %36 {offsets = [0, 0], sizes = [8, 240], strides = [1, 1]} : vector<8x256xf32> to vector<8x240xf32>
    %73 = tpu.concatenate %71, %72 in 1 : vector<8x16xf32>, vector<8x240xf32> -> vector<8x256xf32>
    %74 = vector.extract_strided_slice %36 {offsets = [0, 16], sizes = [8, 240], strides = [1, 1]} : vector<8x256xf32> to vector<8x240xf32>
    %75 = vector.extract_strided_slice %36 {offsets = [0, 0], sizes = [8, 16], strides = [1, 1]} : vector<8x256xf32> to vector<8x16xf32>
    %76 = tpu.concatenate %74, %75 in 1 : vector<8x240xf32>, vector<8x16xf32> -> vector<8x256xf32>
    %77 = tpu.iota {dimensions = array<i32: 1>} : vector<8x256xi32>
    %c16_i32_28 = arith.constant 16 : i32
    %c0_i32_29 = arith.constant 0 : i32
    %78 = arith.cmpi eq, %c16_i32_28, %c0_i32_29 : i32
    %c1_i32_30 = arith.constant 1 : i32
    %79 = arith.select %78, %c1_i32_30, %c16_i32_28 : i32
    %80 = vector.broadcast %79 : i32 to vector<8x256xi32>
    %81 = arith.remsi %77, %80 : vector<8x256xi32>
    %c0_i32_31 = arith.constant 0 : i32
    %82 = vector.broadcast %c0_i32_31 : i32 to vector<8x256xi32>
    %83 = arith.cmpi ne, %81, %82 : vector<8x256xi32>
    %c0_i32_32 = arith.constant 0 : i32
    %84 = vector.broadcast %c0_i32_32 : i32 to vector<8x256xi32>
    %85 = arith.cmpi slt, %81, %84 : vector<8x256xi32>
    %c0_i32_33 = arith.constant 0 : i32
    %86 = arith.cmpi slt, %79, %c0_i32_33 : i32
    %87 = vector.broadcast %86 : i1 to vector<8x256xi1>
    %88 = vector.broadcast %87 : vector<8x256xi1> to vector<8x256xi1>
    %89 = arith.xori %85, %88 : vector<8x256xi1>
    %90 = arith.andi %89, %83 : vector<8x256xi1>
    %91 = vector.broadcast %79 : i32 to vector<8x256xi32>
    %92 = arith.addi %81, %91 : vector<8x256xi32>
    %93 = arith.select %90, %92, %81 : vector<8x256xi1>, vector<8x256xi32>
    %c15_i32 = arith.constant 15 : i32
    %94 = vector.broadcast %c15_i32 : i32 to vector<8x256xi32>
    %95 = arith.cmpi sge, %93, %94 : vector<8x256xi32>
    %96 = vector.extract_strided_slice %36 {offsets = [0, 241], sizes = [8, 15], strides = [1, 1]} : vector<8x256xf32> to vector<8x15xf32>
    %97 = vector.extract_strided_slice %36 {offsets = [0, 0], sizes = [8, 241], strides = [1, 1]} : vector<8x256xf32> to vector<8x241xf32>
    %98 = tpu.concatenate %96, %97 in 1 : vector<8x15xf32>, vector<8x241xf32> -> vector<8x256xf32>
    %99 = vector.extract_strided_slice %36 {offsets = [0, 1], sizes = [8, 255], strides = [1, 1]} : vector<8x256xf32> to vector<8x255xf32>
    %100 = vector.extract_strided_slice %36 {offsets = [0, 0], sizes = [8, 1], strides = [1, 1]} : vector<8x256xf32> to vector<8x1xf32>
    %101 = tpu.concatenate %99, %100 in 1 : vector<8x255xf32>, vector<8x1xf32> -> vector<8x256xf32>
    %102 = arith.select %95, %98, %101 : vector<8x256xi1>, vector<8x256xf32>
    %103 = vector.extract_strided_slice %102 {offsets = [0, 240], sizes = [8, 16], strides = [1, 1]} : vector<8x256xf32> to vector<8x16xf32>
    %104 = vector.extract_strided_slice %102 {offsets = [0, 0], sizes = [8, 240], strides = [1, 1]} : vector<8x256xf32> to vector<8x240xf32>
    %105 = tpu.concatenate %103, %104 in 1 : vector<8x16xf32>, vector<8x240xf32> -> vector<8x256xf32>
    %106 = vector.extract_strided_slice %102 {offsets = [0, 16], sizes = [8, 240], strides = [1, 1]} : vector<8x256xf32> to vector<8x240xf32>
    %107 = vector.extract_strided_slice %102 {offsets = [0, 0], sizes = [8, 16], strides = [1, 1]} : vector<8x256xf32> to vector<8x16xf32>
    %108 = tpu.concatenate %106, %107 in 1 : vector<8x240xf32>, vector<8x16xf32> -> vector<8x256xf32>
    %109 = tpu.concatenate %67, %64, %70, %73, %36, %76, %105, %102, %108 in 0 : vector<8x256xf32>, vector<8x256xf32>, vector<8x256xf32>, vector<8x256xf32>, vector<8x256xf32>, vector<8x256xf32>, vector<8x256xf32>, vector<8x256xf32>, vector<8x256xf32> -> vector<72x256xf32>
    %cst_34 = arith.constant dense<0.000000e+00> : vector<16x256xf32>
    %110 = tpu.matmul %37, %109, %cst_34 {dimension_numbers = #tpu.dot_dimension_numbers<[1], [0], [0], [1], [0, 0, 1, 1], [], []>} : vector<16x72xf32>, vector<72x256xf32>, vector<16x256xf32> -> vector<16x256xf32>
    %111 = vector.broadcast %38 : vector<16x1xf32> to vector<16x256xf32>
    %112 = arith.addf %110, %111 : vector<16x256xf32>
    %cst_35 = arith.constant 0.000000e+00 : f32
    %113 = vector.broadcast %cst_35 : f32 to vector<16x256xf32>
    %114 = arith.maximumf %112, %113 : vector<16x256xf32>
    %c0_36 = arith.constant 0 : index
    %c0_37 = arith.constant 0 : index
    %115 = vector.load %arg10[%c0_36, %c0_37] : memref<16x144xf32, #tpu.memory_space<vmem>>, vector<16x144xf32>
    %116 = tpu.iota {dimensions = array<i32: 1>} : vector<16x256xi32>
    %c16_i32_38 = arith.constant 16 : i32
    %c0_i32_39 = arith.constant 0 : i32
    %117 = arith.cmpi eq, %c16_i32_38, %c0_i32_39 : i32
    %c1_i32_40 = arith.constant 1 : i32
    %118 = arith.select %117, %c1_i32_40, %c16_i32_38 : i32
    %119 = vector.broadcast %118 : i32 to vector<16x256xi32>
    %120 = arith.remsi %116, %119 : vector<16x256xi32>
    %c0_i32_41 = arith.constant 0 : i32
    %121 = vector.broadcast %c0_i32_41 : i32 to vector<16x256xi32>
    %122 = arith.cmpi ne, %120, %121 : vector<16x256xi32>
    %c0_i32_42 = arith.constant 0 : i32
    %123 = vector.broadcast %c0_i32_42 : i32 to vector<16x256xi32>
    %124 = arith.cmpi slt, %120, %123 : vector<16x256xi32>
    %c0_i32_43 = arith.constant 0 : i32
    %125 = arith.cmpi slt, %118, %c0_i32_43 : i32
    %126 = vector.broadcast %125 : i1 to vector<16x256xi1>
    %127 = vector.broadcast %126 : vector<16x256xi1> to vector<16x256xi1>
    %128 = arith.xori %124, %127 : vector<16x256xi1>
    %129 = arith.andi %128, %122 : vector<16x256xi1>
    %130 = vector.broadcast %118 : i32 to vector<16x256xi32>
    %131 = arith.addi %120, %130 : vector<16x256xi32>
    %132 = arith.select %129, %131, %120 : vector<16x256xi1>, vector<16x256xi32>
    %c1_i32_44 = arith.constant 1 : i32
    %133 = vector.broadcast %c1_i32_44 : i32 to vector<16x256xi32>
    %134 = arith.cmpi slt, %132, %133 : vector<16x256xi32>
    %135 = vector.extract_strided_slice %114 {offsets = [0, 15], sizes = [16, 241], strides = [1, 1]} : vector<16x256xf32> to vector<16x241xf32>
    %136 = vector.extract_strided_slice %114 {offsets = [0, 0], sizes = [16, 15], strides = [1, 1]} : vector<16x256xf32> to vector<16x15xf32>
    %137 = tpu.concatenate %135, %136 in 1 : vector<16x241xf32>, vector<16x15xf32> -> vector<16x256xf32>
    %138 = vector.extract_strided_slice %114 {offsets = [0, 255], sizes = [16, 1], strides = [1, 1]} : vector<16x256xf32> to vector<16x1xf32>
    %139 = vector.extract_strided_slice %114 {offsets = [0, 0], sizes = [16, 255], strides = [1, 1]} : vector<16x256xf32> to vector<16x255xf32>
    %140 = tpu.concatenate %138, %139 in 1 : vector<16x1xf32>, vector<16x255xf32> -> vector<16x256xf32>
    %141 = arith.select %134, %137, %140 : vector<16x256xi1>, vector<16x256xf32>
    %142 = vector.extract_strided_slice %141 {offsets = [0, 240], sizes = [16, 16], strides = [1, 1]} : vector<16x256xf32> to vector<16x16xf32>
    %143 = vector.extract_strided_slice %141 {offsets = [0, 0], sizes = [16, 240], strides = [1, 1]} : vector<16x256xf32> to vector<16x240xf32>
    %144 = tpu.concatenate %142, %143 in 1 : vector<16x16xf32>, vector<16x240xf32> -> vector<16x256xf32>
    %145 = vector.extract_strided_slice %141 {offsets = [0, 16], sizes = [16, 240], strides = [1, 1]} : vector<16x256xf32> to vector<16x240xf32>
    %146 = vector.extract_strided_slice %141 {offsets = [0, 0], sizes = [16, 16], strides = [1, 1]} : vector<16x256xf32> to vector<16x16xf32>
    %147 = tpu.concatenate %145, %146 in 1 : vector<16x240xf32>, vector<16x16xf32> -> vector<16x256xf32>
    %148 = vector.extract_strided_slice %114 {offsets = [0, 240], sizes = [16, 16], strides = [1, 1]} : vector<16x256xf32> to vector<16x16xf32>
    %149 = vector.extract_strided_slice %114 {offsets = [0, 0], sizes = [16, 240], strides = [1, 1]} : vector<16x256xf32> to vector<16x240xf32>
    %150 = tpu.concatenate %148, %149 in 1 : vector<16x16xf32>, vector<16x240xf32> -> vector<16x256xf32>
    %151 = vector.extract_strided_slice %114 {offsets = [0, 16], sizes = [16, 240], strides = [1, 1]} : vector<16x256xf32> to vector<16x240xf32>
    %152 = vector.extract_strided_slice %114 {offsets = [0, 0], sizes = [16, 16], strides = [1, 1]} : vector<16x256xf32> to vector<16x16xf32>
    %153 = tpu.concatenate %151, %152 in 1 : vector<16x240xf32>, vector<16x16xf32> -> vector<16x256xf32>
    %154 = tpu.iota {dimensions = array<i32: 1>} : vector<16x256xi32>
    %c16_i32_45 = arith.constant 16 : i32
    %c0_i32_46 = arith.constant 0 : i32
    %155 = arith.cmpi eq, %c16_i32_45, %c0_i32_46 : i32
    %c1_i32_47 = arith.constant 1 : i32
    %156 = arith.select %155, %c1_i32_47, %c16_i32_45 : i32
    %157 = vector.broadcast %156 : i32 to vector<16x256xi32>
    %158 = arith.remsi %154, %157 : vector<16x256xi32>
    %c0_i32_48 = arith.constant 0 : i32
    %159 = vector.broadcast %c0_i32_48 : i32 to vector<16x256xi32>
    %160 = arith.cmpi ne, %158, %159 : vector<16x256xi32>
    %c0_i32_49 = arith.constant 0 : i32
    %161 = vector.broadcast %c0_i32_49 : i32 to vector<16x256xi32>
    %162 = arith.cmpi slt, %158, %161 : vector<16x256xi32>
    %c0_i32_50 = arith.constant 0 : i32
    %163 = arith.cmpi slt, %156, %c0_i32_50 : i32
    %164 = vector.broadcast %163 : i1 to vector<16x256xi1>
    %165 = vector.broadcast %164 : vector<16x256xi1> to vector<16x256xi1>
    %166 = arith.xori %162, %165 : vector<16x256xi1>
    %167 = arith.andi %166, %160 : vector<16x256xi1>
    %168 = vector.broadcast %156 : i32 to vector<16x256xi32>
    %169 = arith.addi %158, %168 : vector<16x256xi32>
    %170 = arith.select %167, %169, %158 : vector<16x256xi1>, vector<16x256xi32>
    %c15_i32_51 = arith.constant 15 : i32
    %171 = vector.broadcast %c15_i32_51 : i32 to vector<16x256xi32>
    %172 = arith.cmpi sge, %170, %171 : vector<16x256xi32>
    %173 = vector.extract_strided_slice %114 {offsets = [0, 241], sizes = [16, 15], strides = [1, 1]} : vector<16x256xf32> to vector<16x15xf32>
    %174 = vector.extract_strided_slice %114 {offsets = [0, 0], sizes = [16, 241], strides = [1, 1]} : vector<16x256xf32> to vector<16x241xf32>
    %175 = tpu.concatenate %173, %174 in 1 : vector<16x15xf32>, vector<16x241xf32> -> vector<16x256xf32>
    %176 = vector.extract_strided_slice %114 {offsets = [0, 1], sizes = [16, 255], strides = [1, 1]} : vector<16x256xf32> to vector<16x255xf32>
    %177 = vector.extract_strided_slice %114 {offsets = [0, 0], sizes = [16, 1], strides = [1, 1]} : vector<16x256xf32> to vector<16x1xf32>
    %178 = tpu.concatenate %176, %177 in 1 : vector<16x255xf32>, vector<16x1xf32> -> vector<16x256xf32>
    %179 = arith.select %172, %175, %178 : vector<16x256xi1>, vector<16x256xf32>
    %180 = vector.extract_strided_slice %179 {offsets = [0, 240], sizes = [16, 16], strides = [1, 1]} : vector<16x256xf32> to vector<16x16xf32>
    %181 = vector.extract_strided_slice %179 {offsets = [0, 0], sizes = [16, 240], strides = [1, 1]} : vector<16x256xf32> to vector<16x240xf32>
    %182 = tpu.concatenate %180, %181 in 1 : vector<16x16xf32>, vector<16x240xf32> -> vector<16x256xf32>
    %183 = vector.extract_strided_slice %179 {offsets = [0, 16], sizes = [16, 240], strides = [1, 1]} : vector<16x256xf32> to vector<16x240xf32>
    %184 = vector.extract_strided_slice %179 {offsets = [0, 0], sizes = [16, 16], strides = [1, 1]} : vector<16x256xf32> to vector<16x16xf32>
    %185 = tpu.concatenate %183, %184 in 1 : vector<16x240xf32>, vector<16x16xf32> -> vector<16x256xf32>
    %186 = tpu.concatenate %144, %141, %147, %150, %114, %153, %182, %179, %185 in 0 : vector<16x256xf32>, vector<16x256xf32>, vector<16x256xf32>, vector<16x256xf32>, vector<16x256xf32>, vector<16x256xf32>, vector<16x256xf32>, vector<16x256xf32>, vector<16x256xf32> -> vector<144x256xf32>
    %cst_52 = arith.constant dense<0.000000e+00> : vector<16x256xf32>
    %187 = tpu.matmul %115, %186, %cst_52 {dimension_numbers = #tpu.dot_dimension_numbers<[1], [0], [0], [1], [0, 0, 1, 1], [], []>} : vector<16x144xf32>, vector<144x256xf32>, vector<16x256xf32> -> vector<16x256xf32>
    %188 = tpu.iota {dimensions = array<i32: 0>} : vector<16x8xi32>
    %189 = tpu.iota {dimensions = array<i32: 1>} : vector<16x8xi32>
    %c4_i32 = arith.constant 4 : i32
    %190 = vector.broadcast %c4_i32 : i32 to vector<16x8xi32>
    %191 = arith.addi %189, %190 : vector<16x8xi32>
    %192 = arith.cmpi eq, %188, %191 : vector<16x8xi32>
    %193 = arith.extui %192 : vector<16x8xi1> to vector<16x8xi32>
    %194 = arith.sitofp %193 : vector<16x8xi32> to vector<16x8xf32>
    %cst_53 = arith.constant dense<0.000000e+00> : vector<16x256xf32>
    %195 = tpu.matmul %194, %1, %cst_53 {dimension_numbers = #tpu.dot_dimension_numbers<[1], [0], [0], [1], [0, 0, 1, 1], [], []>} : vector<16x8xf32>, vector<8x256xf32>, vector<16x256xf32> -> vector<16x256xf32>
    %196 = arith.addf %187, %195 : vector<16x256xf32>
    %c0_54 = arith.constant 0 : index
    %c0_55 = arith.constant 0 : index
    %c0_56 = arith.constant 0 : index
    %197 = vector.load %arg11[%c0_54, %c0_55, %c0_56] : memref<1x16x256xf32, #tpu.memory_space<vmem>>, vector<1x16x256xf32>
    %198 = vector.shape_cast %197 : vector<1x16x256xf32> to vector<16x256xf32>
    %199 = vector.shape_cast %196 : vector<16x256xf32> to vector<1x16x256xf32>
    tpu.vector_store %arg11[%c0_54, %c0_55, %c0_56], %199 {strides = array<i32>} : memref<1x16x256xf32, #tpu.memory_space<vmem>>, vector<1x16x256xf32>,
    return
  }
  func.func @transform_0(%arg0: i32) -> (i32, i32, i32) {
    %c0_i32 = arith.constant 0 : i32
    %c0_i32_0 = arith.constant 0 : i32
    %c0_i32_1 = arith.constant 0 : i32
    return %arg0, %c0_i32, %c0_i32_0 : i32, i32, i32
  }
  func.func @transform_1(%arg0: i32) -> (i32, i32) {
    %c0_i32 = arith.constant 0 : i32
    %c0_i32_0 = arith.constant 0 : i32
    %c0_i32_1 = arith.constant 0 : i32
    return %c0_i32, %c0_i32_0 : i32, i32
  }
  func.func @transform_2(%arg0: i32) -> (i32, i32) {
    %c0_i32 = arith.constant 0 : i32
    %c0_i32_0 = arith.constant 0 : i32
    %c0_i32_1 = arith.constant 0 : i32
    return %c0_i32, %c0_i32_0 : i32, i32
  }
  func.func @transform_3(%arg0: i32) -> (i32, i32) {
    %c0_i32 = arith.constant 0 : i32
    %c0_i32_0 = arith.constant 0 : i32
    %c0_i32_1 = arith.constant 0 : i32
    return %c0_i32, %c0_i32_0 : i32, i32
  }
  func.func @transform_4(%arg0: i32) -> (i32, i32) {
    %c0_i32 = arith.constant 0 : i32
    %c0_i32_0 = arith.constant 0 : i32
    %c0_i32_1 = arith.constant 0 : i32
    return %c0_i32, %c0_i32_0 : i32, i32
  }
  func.func @transform_5(%arg0: i32) -> (i32, i32) {
    %c0_i32 = arith.constant 0 : i32
    %c0_i32_0 = arith.constant 0 : i32
    %c0_i32_1 = arith.constant 0 : i32
    return %c0_i32, %c0_i32_0 : i32, i32
  }
  func.func @transform_6(%arg0: i32) -> (i32, i32) {
    %c0_i32 = arith.constant 0 : i32
    %c0_i32_0 = arith.constant 0 : i32
    %c0_i32_1 = arith.constant 0 : i32
    return %c0_i32, %c0_i32_0 : i32, i32
  }
  func.func @transform_7(%arg0: i32) -> (i32, i32) {
    %c0_i32 = arith.constant 0 : i32
    %c0_i32_0 = arith.constant 0 : i32
    %c0_i32_1 = arith.constant 0 : i32
    return %c0_i32, %c0_i32_0 : i32, i32
  }
  func.func @transform_8(%arg0: i32) -> (i32, i32) {
    %c0_i32 = arith.constant 0 : i32
    %c0_i32_0 = arith.constant 0 : i32
    %c0_i32_1 = arith.constant 0 : i32
    return %c0_i32, %c0_i32_0 : i32, i32
  }
  func.func @transform_9(%arg0: i32) -> (i32, i32) {
    %c0_i32 = arith.constant 0 : i32
    %c0_i32_0 = arith.constant 0 : i32
    %c0_i32_1 = arith.constant 0 : i32
    return %c0_i32, %c0_i32_0 : i32, i32
  }
  func.func @transform_10(%arg0: i32) -> (i32, i32, i32) {
    %c0_i32 = arith.constant 0 : i32
    %c0_i32_0 = arith.constant 0 : i32
    %c0_i32_1 = arith.constant 0 : i32
    return %arg0, %c0_i32, %c0_i32_0 : i32, i32, i32
  }
}

module attributes {stable_mosaic.version = 11 : i64} {
  func.func @_basic_block_kernel(%arg0: i32, %arg1: memref<1x8x256xf32, #tpu.memory_space<vmem>>, %arg2: memref<8x72xf32, #tpu.memory_space<vmem>>, %arg3: memref<8x1xf32, #tpu.memory_space<vmem>>, %arg4: memref<8x72xf32, #tpu.memory_space<vmem>>, %arg5: memref<1x8x256xf32, #tpu.memory_space<vmem>>) attributes {dimension_semantics = [#tpu.dimension_semantics<parallel>], iteration_bounds = array<i64: 2>, scalar_prefetch = 0 : i64, scratch_operands = 0 : i64, tpu.core_type = #tpu.core_type<tc>, window_params = [{transform_indices = @transform_0, window_bounds = array<i64: 1, 8, 256>}, {pipeline_mode = #tpu.pipeline_mode<synchronous>, transform_indices = @transform_1, window_bounds = array<i64: 8, 72>}, {pipeline_mode = #tpu.pipeline_mode<synchronous>, transform_indices = @transform_2, window_bounds = array<i64: 8, 1>}, {pipeline_mode = #tpu.pipeline_mode<synchronous>, transform_indices = @transform_3, window_bounds = array<i64: 8, 72>}, {transform_indices = @transform_4, window_bounds = array<i64: 1, 8, 256>}]} {
    %c0 = arith.constant 0 : index
    %c0_0 = arith.constant 0 : index
    %c0_1 = arith.constant 0 : index
    %0 = vector.load %arg1[%c0, %c0_0, %c0_1] : memref<1x8x256xf32, #tpu.memory_space<vmem>>, vector<1x8x256xf32>
    %1 = vector.shape_cast %0 : vector<1x8x256xf32> to vector<8x256xf32>
    %c0_2 = arith.constant 0 : index
    %c0_3 = arith.constant 0 : index
    %2 = vector.load %arg2[%c0_2, %c0_3] : memref<8x72xf32, #tpu.memory_space<vmem>>, vector<8x72xf32>
    %c0_4 = arith.constant 0 : index
    %c0_5 = arith.constant 0 : index
    %3 = vector.load %arg3[%c0_4, %c0_5] : memref<8x1xf32, #tpu.memory_space<vmem>>, vector<8x1xf32>
    %4 = tpu.iota {dimensions = array<i32: 1>} : vector<8x256xi32>
    %c16_i32 = arith.constant 16 : i32
    %c0_i32 = arith.constant 0 : i32
    %5 = arith.cmpi eq, %c16_i32, %c0_i32 : i32
    %c1_i32 = arith.constant 1 : i32
    %6 = arith.select %5, %c1_i32, %c16_i32 : i32
    %7 = vector.broadcast %6 : i32 to vector<8x256xi32>
    %8 = arith.remsi %4, %7 : vector<8x256xi32>
    %c0_i32_6 = arith.constant 0 : i32
    %9 = vector.broadcast %c0_i32_6 : i32 to vector<8x256xi32>
    %10 = arith.cmpi ne, %8, %9 : vector<8x256xi32>
    %c0_i32_7 = arith.constant 0 : i32
    %11 = vector.broadcast %c0_i32_7 : i32 to vector<8x256xi32>
    %12 = arith.cmpi slt, %8, %11 : vector<8x256xi32>
    %c0_i32_8 = arith.constant 0 : i32
    %13 = arith.cmpi slt, %6, %c0_i32_8 : i32
    %14 = vector.broadcast %13 : i1 to vector<8x256xi1>
    %15 = vector.broadcast %14 : vector<8x256xi1> to vector<8x256xi1>
    %16 = arith.xori %12, %15 : vector<8x256xi1>
    %17 = arith.andi %16, %10 : vector<8x256xi1>
    %18 = vector.broadcast %6 : i32 to vector<8x256xi32>
    %19 = arith.addi %8, %18 : vector<8x256xi32>
    %20 = arith.select %17, %19, %8 : vector<8x256xi1>, vector<8x256xi32>
    %c1_i32_9 = arith.constant 1 : i32
    %21 = vector.broadcast %c1_i32_9 : i32 to vector<8x256xi32>
    %22 = arith.cmpi slt, %20, %21 : vector<8x256xi32>
    %23 = vector.extract_strided_slice %1 {offsets = [0, 15], sizes = [8, 241], strides = [1, 1]} : vector<8x256xf32> to vector<8x241xf32>
    %24 = vector.extract_strided_slice %1 {offsets = [0, 0], sizes = [8, 15], strides = [1, 1]} : vector<8x256xf32> to vector<8x15xf32>
    %25 = tpu.concatenate %23, %24 in 1 : vector<8x241xf32>, vector<8x15xf32> -> vector<8x256xf32>
    %26 = vector.extract_strided_slice %1 {offsets = [0, 255], sizes = [8, 1], strides = [1, 1]} : vector<8x256xf32> to vector<8x1xf32>
    %27 = vector.extract_strided_slice %1 {offsets = [0, 0], sizes = [8, 255], strides = [1, 1]} : vector<8x256xf32> to vector<8x255xf32>
    %28 = tpu.concatenate %26, %27 in 1 : vector<8x1xf32>, vector<8x255xf32> -> vector<8x256xf32>
    %29 = arith.select %22, %25, %28 : vector<8x256xi1>, vector<8x256xf32>
    %30 = vector.extract_strided_slice %29 {offsets = [0, 240], sizes = [8, 16], strides = [1, 1]} : vector<8x256xf32> to vector<8x16xf32>
    %31 = vector.extract_strided_slice %29 {offsets = [0, 0], sizes = [8, 240], strides = [1, 1]} : vector<8x256xf32> to vector<8x240xf32>
    %32 = tpu.concatenate %30, %31 in 1 : vector<8x16xf32>, vector<8x240xf32> -> vector<8x256xf32>
    %33 = vector.extract_strided_slice %29 {offsets = [0, 16], sizes = [8, 240], strides = [1, 1]} : vector<8x256xf32> to vector<8x240xf32>
    %34 = vector.extract_strided_slice %29 {offsets = [0, 0], sizes = [8, 16], strides = [1, 1]} : vector<8x256xf32> to vector<8x16xf32>
    %35 = tpu.concatenate %33, %34 in 1 : vector<8x240xf32>, vector<8x16xf32> -> vector<8x256xf32>
    %36 = vector.extract_strided_slice %1 {offsets = [0, 240], sizes = [8, 16], strides = [1, 1]} : vector<8x256xf32> to vector<8x16xf32>
    %37 = vector.extract_strided_slice %1 {offsets = [0, 0], sizes = [8, 240], strides = [1, 1]} : vector<8x256xf32> to vector<8x240xf32>
    %38 = tpu.concatenate %36, %37 in 1 : vector<8x16xf32>, vector<8x240xf32> -> vector<8x256xf32>
    %39 = vector.extract_strided_slice %1 {offsets = [0, 16], sizes = [8, 240], strides = [1, 1]} : vector<8x256xf32> to vector<8x240xf32>
    %40 = vector.extract_strided_slice %1 {offsets = [0, 0], sizes = [8, 16], strides = [1, 1]} : vector<8x256xf32> to vector<8x16xf32>
    %41 = tpu.concatenate %39, %40 in 1 : vector<8x240xf32>, vector<8x16xf32> -> vector<8x256xf32>
    %42 = tpu.iota {dimensions = array<i32: 1>} : vector<8x256xi32>
    %c16_i32_10 = arith.constant 16 : i32
    %c0_i32_11 = arith.constant 0 : i32
    %43 = arith.cmpi eq, %c16_i32_10, %c0_i32_11 : i32
    %c1_i32_12 = arith.constant 1 : i32
    %44 = arith.select %43, %c1_i32_12, %c16_i32_10 : i32
    %45 = vector.broadcast %44 : i32 to vector<8x256xi32>
    %46 = arith.remsi %42, %45 : vector<8x256xi32>
    %c0_i32_13 = arith.constant 0 : i32
    %47 = vector.broadcast %c0_i32_13 : i32 to vector<8x256xi32>
    %48 = arith.cmpi ne, %46, %47 : vector<8x256xi32>
    %c0_i32_14 = arith.constant 0 : i32
    %49 = vector.broadcast %c0_i32_14 : i32 to vector<8x256xi32>
    %50 = arith.cmpi slt, %46, %49 : vector<8x256xi32>
    %c0_i32_15 = arith.constant 0 : i32
    %51 = arith.cmpi slt, %44, %c0_i32_15 : i32
    %52 = vector.broadcast %51 : i1 to vector<8x256xi1>
    %53 = vector.broadcast %52 : vector<8x256xi1> to vector<8x256xi1>
    %54 = arith.xori %50, %53 : vector<8x256xi1>
    %55 = arith.andi %54, %48 : vector<8x256xi1>
    %56 = vector.broadcast %44 : i32 to vector<8x256xi32>
    %57 = arith.addi %46, %56 : vector<8x256xi32>
    %58 = arith.select %55, %57, %46 : vector<8x256xi1>, vector<8x256xi32>
    %c15_i32 = arith.constant 15 : i32
    %59 = vector.broadcast %c15_i32 : i32 to vector<8x256xi32>
    %60 = arith.cmpi sge, %58, %59 : vector<8x256xi32>
    %61 = vector.extract_strided_slice %1 {offsets = [0, 241], sizes = [8, 15], strides = [1, 1]} : vector<8x256xf32> to vector<8x15xf32>
    %62 = vector.extract_strided_slice %1 {offsets = [0, 0], sizes = [8, 241], strides = [1, 1]} : vector<8x256xf32> to vector<8x241xf32>
    %63 = tpu.concatenate %61, %62 in 1 : vector<8x15xf32>, vector<8x241xf32> -> vector<8x256xf32>
    %64 = vector.extract_strided_slice %1 {offsets = [0, 1], sizes = [8, 255], strides = [1, 1]} : vector<8x256xf32> to vector<8x255xf32>
    %65 = vector.extract_strided_slice %1 {offsets = [0, 0], sizes = [8, 1], strides = [1, 1]} : vector<8x256xf32> to vector<8x1xf32>
    %66 = tpu.concatenate %64, %65 in 1 : vector<8x255xf32>, vector<8x1xf32> -> vector<8x256xf32>
    %67 = arith.select %60, %63, %66 : vector<8x256xi1>, vector<8x256xf32>
    %68 = vector.extract_strided_slice %67 {offsets = [0, 240], sizes = [8, 16], strides = [1, 1]} : vector<8x256xf32> to vector<8x16xf32>
    %69 = vector.extract_strided_slice %67 {offsets = [0, 0], sizes = [8, 240], strides = [1, 1]} : vector<8x256xf32> to vector<8x240xf32>
    %70 = tpu.concatenate %68, %69 in 1 : vector<8x16xf32>, vector<8x240xf32> -> vector<8x256xf32>
    %71 = vector.extract_strided_slice %67 {offsets = [0, 16], sizes = [8, 240], strides = [1, 1]} : vector<8x256xf32> to vector<8x240xf32>
    %72 = vector.extract_strided_slice %67 {offsets = [0, 0], sizes = [8, 16], strides = [1, 1]} : vector<8x256xf32> to vector<8x16xf32>
    %73 = tpu.concatenate %71, %72 in 1 : vector<8x240xf32>, vector<8x16xf32> -> vector<8x256xf32>
    %74 = tpu.concatenate %32, %29, %35, %38, %1, %41, %70, %67, %73 in 0 : vector<8x256xf32>, vector<8x256xf32>, vector<8x256xf32>, vector<8x256xf32>, vector<8x256xf32>, vector<8x256xf32>, vector<8x256xf32>, vector<8x256xf32>, vector<8x256xf32> -> vector<72x256xf32>
    %cst = arith.constant dense<0.000000e+00> : vector<8x256xf32>
    %75 = tpu.matmul %2, %74, %cst {dimension_numbers = #tpu.dot_dimension_numbers<[1], [0], [0], [1], [0, 0, 1, 1], [], []>} : vector<8x72xf32>, vector<72x256xf32>, vector<8x256xf32> -> vector<8x256xf32>
    %76 = vector.broadcast %3 : vector<8x1xf32> to vector<8x256xf32>
    %77 = arith.addf %75, %76 : vector<8x256xf32>
    %cst_16 = arith.constant 0.000000e+00 : f32
    %78 = vector.broadcast %cst_16 : f32 to vector<8x256xf32>
    %79 = arith.maximumf %77, %78 : vector<8x256xf32>
    %c0_17 = arith.constant 0 : index
    %c0_18 = arith.constant 0 : index
    %80 = vector.load %arg4[%c0_17, %c0_18] : memref<8x72xf32, #tpu.memory_space<vmem>>, vector<8x72xf32>
    %81 = tpu.iota {dimensions = array<i32: 1>} : vector<8x256xi32>
    %c16_i32_19 = arith.constant 16 : i32
    %c0_i32_20 = arith.constant 0 : i32
    %82 = arith.cmpi eq, %c16_i32_19, %c0_i32_20 : i32
    %c1_i32_21 = arith.constant 1 : i32
    %83 = arith.select %82, %c1_i32_21, %c16_i32_19 : i32
    %84 = vector.broadcast %83 : i32 to vector<8x256xi32>
    %85 = arith.remsi %81, %84 : vector<8x256xi32>
    %c0_i32_22 = arith.constant 0 : i32
    %86 = vector.broadcast %c0_i32_22 : i32 to vector<8x256xi32>
    %87 = arith.cmpi ne, %85, %86 : vector<8x256xi32>
    %c0_i32_23 = arith.constant 0 : i32
    %88 = vector.broadcast %c0_i32_23 : i32 to vector<8x256xi32>
    %89 = arith.cmpi slt, %85, %88 : vector<8x256xi32>
    %c0_i32_24 = arith.constant 0 : i32
    %90 = arith.cmpi slt, %83, %c0_i32_24 : i32
    %91 = vector.broadcast %90 : i1 to vector<8x256xi1>
    %92 = vector.broadcast %91 : vector<8x256xi1> to vector<8x256xi1>
    %93 = arith.xori %89, %92 : vector<8x256xi1>
    %94 = arith.andi %93, %87 : vector<8x256xi1>
    %95 = vector.broadcast %83 : i32 to vector<8x256xi32>
    %96 = arith.addi %85, %95 : vector<8x256xi32>
    %97 = arith.select %94, %96, %85 : vector<8x256xi1>, vector<8x256xi32>
    %c1_i32_25 = arith.constant 1 : i32
    %98 = vector.broadcast %c1_i32_25 : i32 to vector<8x256xi32>
    %99 = arith.cmpi slt, %97, %98 : vector<8x256xi32>
    %100 = vector.extract_strided_slice %79 {offsets = [0, 15], sizes = [8, 241], strides = [1, 1]} : vector<8x256xf32> to vector<8x241xf32>
    %101 = vector.extract_strided_slice %79 {offsets = [0, 0], sizes = [8, 15], strides = [1, 1]} : vector<8x256xf32> to vector<8x15xf32>
    %102 = tpu.concatenate %100, %101 in 1 : vector<8x241xf32>, vector<8x15xf32> -> vector<8x256xf32>
    %103 = vector.extract_strided_slice %79 {offsets = [0, 255], sizes = [8, 1], strides = [1, 1]} : vector<8x256xf32> to vector<8x1xf32>
    %104 = vector.extract_strided_slice %79 {offsets = [0, 0], sizes = [8, 255], strides = [1, 1]} : vector<8x256xf32> to vector<8x255xf32>
    %105 = tpu.concatenate %103, %104 in 1 : vector<8x1xf32>, vector<8x255xf32> -> vector<8x256xf32>
    %106 = arith.select %99, %102, %105 : vector<8x256xi1>, vector<8x256xf32>
    %107 = vector.extract_strided_slice %106 {offsets = [0, 240], sizes = [8, 16], strides = [1, 1]} : vector<8x256xf32> to vector<8x16xf32>
    %108 = vector.extract_strided_slice %106 {offsets = [0, 0], sizes = [8, 240], strides = [1, 1]} : vector<8x256xf32> to vector<8x240xf32>
    %109 = tpu.concatenate %107, %108 in 1 : vector<8x16xf32>, vector<8x240xf32> -> vector<8x256xf32>
    %110 = vector.extract_strided_slice %106 {offsets = [0, 16], sizes = [8, 240], strides = [1, 1]} : vector<8x256xf32> to vector<8x240xf32>
    %111 = vector.extract_strided_slice %106 {offsets = [0, 0], sizes = [8, 16], strides = [1, 1]} : vector<8x256xf32> to vector<8x16xf32>
    %112 = tpu.concatenate %110, %111 in 1 : vector<8x240xf32>, vector<8x16xf32> -> vector<8x256xf32>
    %113 = vector.extract_strided_slice %79 {offsets = [0, 240], sizes = [8, 16], strides = [1, 1]} : vector<8x256xf32> to vector<8x16xf32>
    %114 = vector.extract_strided_slice %79 {offsets = [0, 0], sizes = [8, 240], strides = [1, 1]} : vector<8x256xf32> to vector<8x240xf32>
    %115 = tpu.concatenate %113, %114 in 1 : vector<8x16xf32>, vector<8x240xf32> -> vector<8x256xf32>
    %116 = vector.extract_strided_slice %79 {offsets = [0, 16], sizes = [8, 240], strides = [1, 1]} : vector<8x256xf32> to vector<8x240xf32>
    %117 = vector.extract_strided_slice %79 {offsets = [0, 0], sizes = [8, 16], strides = [1, 1]} : vector<8x256xf32> to vector<8x16xf32>
    %118 = tpu.concatenate %116, %117 in 1 : vector<8x240xf32>, vector<8x16xf32> -> vector<8x256xf32>
    %119 = tpu.iota {dimensions = array<i32: 1>} : vector<8x256xi32>
    %c16_i32_26 = arith.constant 16 : i32
    %c0_i32_27 = arith.constant 0 : i32
    %120 = arith.cmpi eq, %c16_i32_26, %c0_i32_27 : i32
    %c1_i32_28 = arith.constant 1 : i32
    %121 = arith.select %120, %c1_i32_28, %c16_i32_26 : i32
    %122 = vector.broadcast %121 : i32 to vector<8x256xi32>
    %123 = arith.remsi %119, %122 : vector<8x256xi32>
    %c0_i32_29 = arith.constant 0 : i32
    %124 = vector.broadcast %c0_i32_29 : i32 to vector<8x256xi32>
    %125 = arith.cmpi ne, %123, %124 : vector<8x256xi32>
    %c0_i32_30 = arith.constant 0 : i32
    %126 = vector.broadcast %c0_i32_30 : i32 to vector<8x256xi32>
    %127 = arith.cmpi slt, %123, %126 : vector<8x256xi32>
    %c0_i32_31 = arith.constant 0 : i32
    %128 = arith.cmpi slt, %121, %c0_i32_31 : i32
    %129 = vector.broadcast %128 : i1 to vector<8x256xi1>
    %130 = vector.broadcast %129 : vector<8x256xi1> to vector<8x256xi1>
    %131 = arith.xori %127, %130 : vector<8x256xi1>
    %132 = arith.andi %131, %125 : vector<8x256xi1>
    %133 = vector.broadcast %121 : i32 to vector<8x256xi32>
    %134 = arith.addi %123, %133 : vector<8x256xi32>
    %135 = arith.select %132, %134, %123 : vector<8x256xi1>, vector<8x256xi32>
    %c15_i32_32 = arith.constant 15 : i32
    %136 = vector.broadcast %c15_i32_32 : i32 to vector<8x256xi32>
    %137 = arith.cmpi sge, %135, %136 : vector<8x256xi32>
    %138 = vector.extract_strided_slice %79 {offsets = [0, 241], sizes = [8, 15], strides = [1, 1]} : vector<8x256xf32> to vector<8x15xf32>
    %139 = vector.extract_strided_slice %79 {offsets = [0, 0], sizes = [8, 241], strides = [1, 1]} : vector<8x256xf32> to vector<8x241xf32>
    %140 = tpu.concatenate %138, %139 in 1 : vector<8x15xf32>, vector<8x241xf32> -> vector<8x256xf32>
    %141 = vector.extract_strided_slice %79 {offsets = [0, 1], sizes = [8, 255], strides = [1, 1]} : vector<8x256xf32> to vector<8x255xf32>
    %142 = vector.extract_strided_slice %79 {offsets = [0, 0], sizes = [8, 1], strides = [1, 1]} : vector<8x256xf32> to vector<8x1xf32>
    %143 = tpu.concatenate %141, %142 in 1 : vector<8x255xf32>, vector<8x1xf32> -> vector<8x256xf32>
    %144 = arith.select %137, %140, %143 : vector<8x256xi1>, vector<8x256xf32>
    %145 = vector.extract_strided_slice %144 {offsets = [0, 240], sizes = [8, 16], strides = [1, 1]} : vector<8x256xf32> to vector<8x16xf32>
    %146 = vector.extract_strided_slice %144 {offsets = [0, 0], sizes = [8, 240], strides = [1, 1]} : vector<8x256xf32> to vector<8x240xf32>
    %147 = tpu.concatenate %145, %146 in 1 : vector<8x16xf32>, vector<8x240xf32> -> vector<8x256xf32>
    %148 = vector.extract_strided_slice %144 {offsets = [0, 16], sizes = [8, 240], strides = [1, 1]} : vector<8x256xf32> to vector<8x240xf32>
    %149 = vector.extract_strided_slice %144 {offsets = [0, 0], sizes = [8, 16], strides = [1, 1]} : vector<8x256xf32> to vector<8x16xf32>
    %150 = tpu.concatenate %148, %149 in 1 : vector<8x240xf32>, vector<8x16xf32> -> vector<8x256xf32>
    %151 = tpu.concatenate %109, %106, %112, %115, %79, %118, %147, %144, %150 in 0 : vector<8x256xf32>, vector<8x256xf32>, vector<8x256xf32>, vector<8x256xf32>, vector<8x256xf32>, vector<8x256xf32>, vector<8x256xf32>, vector<8x256xf32>, vector<8x256xf32> -> vector<72x256xf32>
    %cst_33 = arith.constant dense<0.000000e+00> : vector<8x256xf32>
    %152 = tpu.matmul %80, %151, %cst_33 {dimension_numbers = #tpu.dot_dimension_numbers<[1], [0], [0], [1], [0, 0, 1, 1], [], []>} : vector<8x72xf32>, vector<72x256xf32>, vector<8x256xf32> -> vector<8x256xf32>
    %153 = arith.addf %152, %1 : vector<8x256xf32>
    %c0_34 = arith.constant 0 : index
    %c0_35 = arith.constant 0 : index
    %c0_36 = arith.constant 0 : index
    %154 = vector.load %arg5[%c0_34, %c0_35, %c0_36] : memref<1x8x256xf32, #tpu.memory_space<vmem>>, vector<1x8x256xf32>
    %155 = vector.shape_cast %154 : vector<1x8x256xf32> to vector<8x256xf32>
    %156 = vector.shape_cast %153 : vector<8x256xf32> to vector<1x8x256xf32>
    tpu.vector_store %arg5[%c0_34, %c0_35, %c0_36], %156 {strides = array<i32>} : memref<1x8x256xf32, #tpu.memory_space<vmem>>, vector<1x8x256xf32>,
    return
  }
  func.func @transform_0(%arg0: i32) -> (i32, i32, i32) {
    %c0_i32 = arith.constant 0 : i32
    %c0_i32_0 = arith.constant 0 : i32
    %c0_i32_1 = arith.constant 0 : i32
    return %arg0, %c0_i32, %c0_i32_0 : i32, i32, i32
  }
  func.func @transform_1(%arg0: i32) -> (i32, i32) {
    %c0_i32 = arith.constant 0 : i32
    %c0_i32_0 = arith.constant 0 : i32
    %c0_i32_1 = arith.constant 0 : i32
    return %c0_i32, %c0_i32_0 : i32, i32
  }
  func.func @transform_2(%arg0: i32) -> (i32, i32) {
    %c0_i32 = arith.constant 0 : i32
    %c0_i32_0 = arith.constant 0 : i32
    %c0_i32_1 = arith.constant 0 : i32
    return %c0_i32, %c0_i32_0 : i32, i32
  }
  func.func @transform_3(%arg0: i32) -> (i32, i32) {
    %c0_i32 = arith.constant 0 : i32
    %c0_i32_0 = arith.constant 0 : i32
    %c0_i32_1 = arith.constant 0 : i32
    return %c0_i32, %c0_i32_0 : i32, i32
  }
  func.func @transform_4(%arg0: i32) -> (i32, i32, i32) {
    %c0_i32 = arith.constant 0 : i32
    %c0_i32_0 = arith.constant 0 : i32
    %c0_i32_1 = arith.constant 0 : i32
    return %arg0, %c0_i32, %c0_i32_0 : i32, i32, i32
  }
}

module attributes {stable_mosaic.version = 11 : i64} {
  func.func @_first_block_kernel(%arg0: i32, %arg1: memref<1x8x256xf32, #tpu.memory_space<vmem>>, %arg2: memref<8x72xf32, #tpu.memory_space<vmem>>, %arg3: memref<8x1xf32, #tpu.memory_space<vmem>>, %arg4: memref<8x2xf32, #tpu.memory_space<vmem>>, %arg5: memref<1x2xf32, #tpu.memory_space<vmem>>, %arg6: memref<8x2xf32, #tpu.memory_space<vmem>>, %arg7: memref<8x1xf32, #tpu.memory_space<vmem>>, %arg8: memref<1x8x256xf32, #tpu.memory_space<vmem>>) attributes {dimension_semantics = [#tpu.dimension_semantics<parallel>], iteration_bounds = array<i64: 2>, scalar_prefetch = 0 : i64, scratch_operands = 0 : i64, tpu.core_type = #tpu.core_type<tc>, window_params = [{transform_indices = @transform_0, window_bounds = array<i64: 1, 8, 256>}, {pipeline_mode = #tpu.pipeline_mode<synchronous>, transform_indices = @transform_1, window_bounds = array<i64: 8, 72>}, {pipeline_mode = #tpu.pipeline_mode<synchronous>, transform_indices = @transform_2, window_bounds = array<i64: 8, 1>}, {pipeline_mode = #tpu.pipeline_mode<synchronous>, transform_indices = @transform_3, window_bounds = array<i64: 8, 2>}, {pipeline_mode = #tpu.pipeline_mode<synchronous>, transform_indices = @transform_4, window_bounds = array<i64: 1, 2>}, {pipeline_mode = #tpu.pipeline_mode<synchronous>, transform_indices = @transform_5, window_bounds = array<i64: 8, 2>}, {pipeline_mode = #tpu.pipeline_mode<synchronous>, transform_indices = @transform_6, window_bounds = array<i64: 8, 1>}, {transform_indices = @transform_7, window_bounds = array<i64: 1, 8, 256>}]} {
    %c0 = arith.constant 0 : index
    %c0_0 = arith.constant 0 : index
    %c0_1 = arith.constant 0 : index
    %0 = vector.load %arg1[%c0, %c0_0, %c0_1] : memref<1x8x256xf32, #tpu.memory_space<vmem>>, vector<1x8x256xf32>
    %1 = vector.shape_cast %0 : vector<1x8x256xf32> to vector<8x256xf32>
    %c0_2 = arith.constant 0 : index
    %c0_3 = arith.constant 0 : index
    %2 = vector.load %arg2[%c0_2, %c0_3] : memref<8x72xf32, #tpu.memory_space<vmem>>, vector<8x72xf32>
    %c0_4 = arith.constant 0 : index
    %c0_5 = arith.constant 0 : index
    %3 = vector.load %arg3[%c0_4, %c0_5] : memref<8x1xf32, #tpu.memory_space<vmem>>, vector<8x1xf32>
    %4 = tpu.iota {dimensions = array<i32: 1>} : vector<8x256xi32>
    %c16_i32 = arith.constant 16 : i32
    %c0_i32 = arith.constant 0 : i32
    %5 = arith.cmpi eq, %c16_i32, %c0_i32 : i32
    %c1_i32 = arith.constant 1 : i32
    %6 = arith.select %5, %c1_i32, %c16_i32 : i32
    %7 = vector.broadcast %6 : i32 to vector<8x256xi32>
    %8 = arith.remsi %4, %7 : vector<8x256xi32>
    %c0_i32_6 = arith.constant 0 : i32
    %9 = vector.broadcast %c0_i32_6 : i32 to vector<8x256xi32>
    %10 = arith.cmpi ne, %8, %9 : vector<8x256xi32>
    %c0_i32_7 = arith.constant 0 : i32
    %11 = vector.broadcast %c0_i32_7 : i32 to vector<8x256xi32>
    %12 = arith.cmpi slt, %8, %11 : vector<8x256xi32>
    %c0_i32_8 = arith.constant 0 : i32
    %13 = arith.cmpi slt, %6, %c0_i32_8 : i32
    %14 = vector.broadcast %13 : i1 to vector<8x256xi1>
    %15 = vector.broadcast %14 : vector<8x256xi1> to vector<8x256xi1>
    %16 = arith.xori %12, %15 : vector<8x256xi1>
    %17 = arith.andi %16, %10 : vector<8x256xi1>
    %18 = vector.broadcast %6 : i32 to vector<8x256xi32>
    %19 = arith.addi %8, %18 : vector<8x256xi32>
    %20 = arith.select %17, %19, %8 : vector<8x256xi1>, vector<8x256xi32>
    %c1_i32_9 = arith.constant 1 : i32
    %21 = vector.broadcast %c1_i32_9 : i32 to vector<8x256xi32>
    %22 = arith.cmpi slt, %20, %21 : vector<8x256xi32>
    %23 = vector.extract_strided_slice %1 {offsets = [0, 15], sizes = [8, 241], strides = [1, 1]} : vector<8x256xf32> to vector<8x241xf32>
    %24 = vector.extract_strided_slice %1 {offsets = [0, 0], sizes = [8, 15], strides = [1, 1]} : vector<8x256xf32> to vector<8x15xf32>
    %25 = tpu.concatenate %23, %24 in 1 : vector<8x241xf32>, vector<8x15xf32> -> vector<8x256xf32>
    %26 = vector.extract_strided_slice %1 {offsets = [0, 255], sizes = [8, 1], strides = [1, 1]} : vector<8x256xf32> to vector<8x1xf32>
    %27 = vector.extract_strided_slice %1 {offsets = [0, 0], sizes = [8, 255], strides = [1, 1]} : vector<8x256xf32> to vector<8x255xf32>
    %28 = tpu.concatenate %26, %27 in 1 : vector<8x1xf32>, vector<8x255xf32> -> vector<8x256xf32>
    %29 = arith.select %22, %25, %28 : vector<8x256xi1>, vector<8x256xf32>
    %30 = vector.extract_strided_slice %29 {offsets = [0, 240], sizes = [8, 16], strides = [1, 1]} : vector<8x256xf32> to vector<8x16xf32>
    %31 = vector.extract_strided_slice %29 {offsets = [0, 0], sizes = [8, 240], strides = [1, 1]} : vector<8x256xf32> to vector<8x240xf32>
    %32 = tpu.concatenate %30, %31 in 1 : vector<8x16xf32>, vector<8x240xf32> -> vector<8x256xf32>
    %33 = vector.extract_strided_slice %29 {offsets = [0, 16], sizes = [8, 240], strides = [1, 1]} : vector<8x256xf32> to vector<8x240xf32>
    %34 = vector.extract_strided_slice %29 {offsets = [0, 0], sizes = [8, 16], strides = [1, 1]} : vector<8x256xf32> to vector<8x16xf32>
    %35 = tpu.concatenate %33, %34 in 1 : vector<8x240xf32>, vector<8x16xf32> -> vector<8x256xf32>
    %36 = vector.extract_strided_slice %1 {offsets = [0, 240], sizes = [8, 16], strides = [1, 1]} : vector<8x256xf32> to vector<8x16xf32>
    %37 = vector.extract_strided_slice %1 {offsets = [0, 0], sizes = [8, 240], strides = [1, 1]} : vector<8x256xf32> to vector<8x240xf32>
    %38 = tpu.concatenate %36, %37 in 1 : vector<8x16xf32>, vector<8x240xf32> -> vector<8x256xf32>
    %39 = vector.extract_strided_slice %1 {offsets = [0, 16], sizes = [8, 240], strides = [1, 1]} : vector<8x256xf32> to vector<8x240xf32>
    %40 = vector.extract_strided_slice %1 {offsets = [0, 0], sizes = [8, 16], strides = [1, 1]} : vector<8x256xf32> to vector<8x16xf32>
    %41 = tpu.concatenate %39, %40 in 1 : vector<8x240xf32>, vector<8x16xf32> -> vector<8x256xf32>
    %42 = tpu.iota {dimensions = array<i32: 1>} : vector<8x256xi32>
    %c16_i32_10 = arith.constant 16 : i32
    %c0_i32_11 = arith.constant 0 : i32
    %43 = arith.cmpi eq, %c16_i32_10, %c0_i32_11 : i32
    %c1_i32_12 = arith.constant 1 : i32
    %44 = arith.select %43, %c1_i32_12, %c16_i32_10 : i32
    %45 = vector.broadcast %44 : i32 to vector<8x256xi32>
    %46 = arith.remsi %42, %45 : vector<8x256xi32>
    %c0_i32_13 = arith.constant 0 : i32
    %47 = vector.broadcast %c0_i32_13 : i32 to vector<8x256xi32>
    %48 = arith.cmpi ne, %46, %47 : vector<8x256xi32>
    %c0_i32_14 = arith.constant 0 : i32
    %49 = vector.broadcast %c0_i32_14 : i32 to vector<8x256xi32>
    %50 = arith.cmpi slt, %46, %49 : vector<8x256xi32>
    %c0_i32_15 = arith.constant 0 : i32
    %51 = arith.cmpi slt, %44, %c0_i32_15 : i32
    %52 = vector.broadcast %51 : i1 to vector<8x256xi1>
    %53 = vector.broadcast %52 : vector<8x256xi1> to vector<8x256xi1>
    %54 = arith.xori %50, %53 : vector<8x256xi1>
    %55 = arith.andi %54, %48 : vector<8x256xi1>
    %56 = vector.broadcast %44 : i32 to vector<8x256xi32>
    %57 = arith.addi %46, %56 : vector<8x256xi32>
    %58 = arith.select %55, %57, %46 : vector<8x256xi1>, vector<8x256xi32>
    %c15_i32 = arith.constant 15 : i32
    %59 = vector.broadcast %c15_i32 : i32 to vector<8x256xi32>
    %60 = arith.cmpi sge, %58, %59 : vector<8x256xi32>
    %61 = vector.extract_strided_slice %1 {offsets = [0, 241], sizes = [8, 15], strides = [1, 1]} : vector<8x256xf32> to vector<8x15xf32>
    %62 = vector.extract_strided_slice %1 {offsets = [0, 0], sizes = [8, 241], strides = [1, 1]} : vector<8x256xf32> to vector<8x241xf32>
    %63 = tpu.concatenate %61, %62 in 1 : vector<8x15xf32>, vector<8x241xf32> -> vector<8x256xf32>
    %64 = vector.extract_strided_slice %1 {offsets = [0, 1], sizes = [8, 255], strides = [1, 1]} : vector<8x256xf32> to vector<8x255xf32>
    %65 = vector.extract_strided_slice %1 {offsets = [0, 0], sizes = [8, 1], strides = [1, 1]} : vector<8x256xf32> to vector<8x1xf32>
    %66 = tpu.concatenate %64, %65 in 1 : vector<8x255xf32>, vector<8x1xf32> -> vector<8x256xf32>
    %67 = arith.select %60, %63, %66 : vector<8x256xi1>, vector<8x256xf32>
    %68 = vector.extract_strided_slice %67 {offsets = [0, 240], sizes = [8, 16], strides = [1, 1]} : vector<8x256xf32> to vector<8x16xf32>
    %69 = vector.extract_strided_slice %67 {offsets = [0, 0], sizes = [8, 240], strides = [1, 1]} : vector<8x256xf32> to vector<8x240xf32>
    %70 = tpu.concatenate %68, %69 in 1 : vector<8x16xf32>, vector<8x240xf32> -> vector<8x256xf32>
    %71 = vector.extract_strided_slice %67 {offsets = [0, 16], sizes = [8, 240], strides = [1, 1]} : vector<8x256xf32> to vector<8x240xf32>
    %72 = vector.extract_strided_slice %67 {offsets = [0, 0], sizes = [8, 16], strides = [1, 1]} : vector<8x256xf32> to vector<8x16xf32>
    %73 = tpu.concatenate %71, %72 in 1 : vector<8x240xf32>, vector<8x16xf32> -> vector<8x256xf32>
    %74 = tpu.concatenate %32, %29, %35, %38, %1, %41, %70, %67, %73 in 0 : vector<8x256xf32>, vector<8x256xf32>, vector<8x256xf32>, vector<8x256xf32>, vector<8x256xf32>, vector<8x256xf32>, vector<8x256xf32>, vector<8x256xf32>, vector<8x256xf32> -> vector<72x256xf32>
    %cst = arith.constant dense<0.000000e+00> : vector<8x256xf32>
    %75 = tpu.matmul %2, %74, %cst {dimension_numbers = #tpu.dot_dimension_numbers<[1], [0], [0], [1], [0, 0, 1, 1], [], []>} : vector<8x72xf32>, vector<72x256xf32>, vector<8x256xf32> -> vector<8x256xf32>
    %76 = vector.broadcast %3 : vector<8x1xf32> to vector<8x256xf32>
    %77 = arith.addf %75, %76 : vector<8x256xf32>
    %c0_16 = arith.constant 0 : index
    %c0_17 = arith.constant 0 : index
    %78 = vector.load %arg4[%c0_16, %c0_17] : memref<8x2xf32, #tpu.memory_space<vmem>>, vector<8x2xf32>
    %c0_18 = arith.constant 0 : index
    %c0_19 = arith.constant 0 : index
    %79 = vector.load %arg5[%c0_18, %c0_19] : memref<1x2xf32, #tpu.memory_space<vmem>>, vector<1x2xf32>
    %c0_20 = arith.constant 0 : index
    %c0_21 = arith.constant 0 : index
    %80 = vector.load %arg6[%c0_20, %c0_21] : memref<8x2xf32, #tpu.memory_space<vmem>>, vector<8x2xf32>
    %c0_22 = arith.constant 0 : index
    %c0_23 = arith.constant 0 : index
    %81 = vector.load %arg7[%c0_22, %c0_23] : memref<8x1xf32, #tpu.memory_space<vmem>>, vector<8x1xf32>
    %cst_24 = arith.constant dense<0.000000e+00> : vector<8xf32>
    %82 = vector.multi_reduction <add>, %77, %cst_24 [1] : vector<8x256xf32> to vector<8xf32>
    %83 = vector.shape_cast %82 : vector<8xf32> to vector<8x1xf32>
    %cst_25 = arith.constant 3.906250e-03 : f32
    %84 = vector.broadcast %cst_25 : f32 to vector<8x1xf32>
    %85 = arith.mulf %83, %84 : vector<8x1xf32>
    %86 = vector.broadcast %85 : vector<8x1xf32> to vector<8x2xf32>
    %87 = arith.mulf %78, %86 : vector<8x2xf32>
    %cst_26 = arith.constant dense<0.000000e+00> : vector<2xf32>
    %88 = vector.multi_reduction <add>, %87, %cst_26 [0] : vector<8x2xf32> to vector<2xf32>
    %89 = vector.shape_cast %88 : vector<2xf32> to vector<1x2xf32>
    %90 = arith.addf %89, %79 : vector<1x2xf32>
    %cst_27 = arith.constant 0.000000e+00 : f32
    %91 = vector.broadcast %cst_27 : f32 to vector<1x2xf32>
    %92 = arith.maximumf %90, %91 : vector<1x2xf32>
    %93 = vector.broadcast %92 : vector<1x2xf32> to vector<8x2xf32>
    %94 = arith.mulf %80, %93 : vector<8x2xf32>
    %cst_28 = arith.constant dense<0.000000e+00> : vector<8xf32>
    %95 = vector.multi_reduction <add>, %94, %cst_28 [1] : vector<8x2xf32> to vector<8xf32>
    %96 = vector.shape_cast %95 : vector<8xf32> to vector<8x1xf32>
    %97 = arith.addf %96, %81 : vector<8x1xf32>
    %98 = arith.negf %97 : vector<8x1xf32>
    %99 = math.exp %98 : vector<8x1xf32>
    %cst_29 = arith.constant 1.000000e+00 : f32
    %100 = vector.broadcast %cst_29 : f32 to vector<8x1xf32>
    %101 = arith.addf %100, %99 : vector<8x1xf32>
    %102 = arith.divf %100, %101 : vector<8x1xf32>
    %103 = vector.broadcast %102 : vector<8x1xf32> to vector<8x256xf32>
    %104 = arith.mulf %77, %103 : vector<8x256xf32>
    %cst_30 = arith.constant 0.000000e+00 : f32
    %105 = vector.broadcast %cst_30 : f32 to vector<8x256xf32>
    %106 = arith.maximumf %104, %105 : vector<8x256xf32>
    %c0_31 = arith.constant 0 : index
    %c0_32 = arith.constant 0 : index
    %c0_33 = arith.constant 0 : index
    %107 = vector.load %arg8[%c0_31, %c0_32, %c0_33] : memref<1x8x256xf32, #tpu.memory_space<vmem>>, vector<1x8x256xf32>
    %108 = vector.shape_cast %107 : vector<1x8x256xf32> to vector<8x256xf32>
    %109 = vector.shape_cast %106 : vector<8x256xf32> to vector<1x8x256xf32>
    tpu.vector_store %arg8[%c0_31, %c0_32, %c0_33], %109 {strides = array<i32>} : memref<1x8x256xf32, #tpu.memory_space<vmem>>, vector<1x8x256xf32>,
    return
  }
  func.func @transform_0(%arg0: i32) -> (i32, i32, i32) {
    %c0_i32 = arith.constant 0 : i32
    %c0_i32_0 = arith.constant 0 : i32
    %c0_i32_1 = arith.constant 0 : i32
    return %arg0, %c0_i32, %c0_i32_0 : i32, i32, i32
  }
  func.func @transform_1(%arg0: i32) -> (i32, i32) {
    %c0_i32 = arith.constant 0 : i32
    %c0_i32_0 = arith.constant 0 : i32
    %c0_i32_1 = arith.constant 0 : i32
    return %c0_i32, %c0_i32_0 : i32, i32
  }
  func.func @transform_2(%arg0: i32) -> (i32, i32) {
    %c0_i32 = arith.constant 0 : i32
    %c0_i32_0 = arith.constant 0 : i32
    %c0_i32_1 = arith.constant 0 : i32
    return %c0_i32, %c0_i32_0 : i32, i32
  }
  func.func @transform_3(%arg0: i32) -> (i32, i32) {
    %c0_i32 = arith.constant 0 : i32
    %c0_i32_0 = arith.constant 0 : i32
    %c0_i32_1 = arith.constant 0 : i32
    return %c0_i32, %c0_i32_0 : i32, i32
  }
  func.func @transform_4(%arg0: i32) -> (i32, i32) {
    %c0_i32 = arith.constant 0 : i32
    %c0_i32_0 = arith.constant 0 : i32
    %c0_i32_1 = arith.constant 0 : i32
    return %c0_i32, %c0_i32_0 : i32, i32
  }
  func.func @transform_5(%arg0: i32) -> (i32, i32) {
    %c0_i32 = arith.constant 0 : i32
    %c0_i32_0 = arith.constant 0 : i32
    %c0_i32_1 = arith.constant 0 : i32
    return %c0_i32, %c0_i32_0 : i32, i32
  }
  func.func @transform_6(%arg0: i32) -> (i32, i32) {
    %c0_i32 = arith.constant 0 : i32
    %c0_i32_0 = arith.constant 0 : i32
    %c0_i32_1 = arith.constant 0 : i32
    return %c0_i32, %c0_i32_0 : i32, i32
  }
  func.func @transform_7(%arg0: i32) -> (i32, i32, i32) {
    %c0_i32 = arith.constant 0 : i32
    %c0_i32_0 = arith.constant 0 : i32
    %c0_i32_1 = arith.constant 0 : i32
    return %arg0, %c0_i32, %c0_i32_0 : i32, i32, i32
  }
}

module attributes {stable_mosaic.version = 11 : i64} {
  func.func @_last_block_kernel(%arg0: i32, %arg1: memref<1x16x256xf32, #tpu.memory_space<vmem>>, %arg2: memref<16x1xf32, #tpu.memory_space<vmem>>, %arg3: memref<16x1xf32, #tpu.memory_space<vmem>>, %arg4: memref<16x4xf32, #tpu.memory_space<vmem>>, %arg5: memref<1x4xf32, #tpu.memory_space<vmem>>, %arg6: memref<16x4xf32, #tpu.memory_space<vmem>>, %arg7: memref<16x1xf32, #tpu.memory_space<vmem>>, %arg8: memref<2x144xf32, #tpu.memory_space<vmem>>, %arg9: memref<1x2x256xf32, #tpu.memory_space<vmem>>) attributes {dimension_semantics = [#tpu.dimension_semantics<parallel>], iteration_bounds = array<i64: 2>, scalar_prefetch = 0 : i64, scratch_operands = 0 : i64, tpu.core_type = #tpu.core_type<tc>, window_params = [{transform_indices = @transform_0, window_bounds = array<i64: 1, 16, 256>}, {pipeline_mode = #tpu.pipeline_mode<synchronous>, transform_indices = @transform_1, window_bounds = array<i64: 16, 1>}, {pipeline_mode = #tpu.pipeline_mode<synchronous>, transform_indices = @transform_2, window_bounds = array<i64: 16, 1>}, {pipeline_mode = #tpu.pipeline_mode<synchronous>, transform_indices = @transform_3, window_bounds = array<i64: 16, 4>}, {pipeline_mode = #tpu.pipeline_mode<synchronous>, transform_indices = @transform_4, window_bounds = array<i64: 1, 4>}, {pipeline_mode = #tpu.pipeline_mode<synchronous>, transform_indices = @transform_5, window_bounds = array<i64: 16, 4>}, {pipeline_mode = #tpu.pipeline_mode<synchronous>, transform_indices = @transform_6, window_bounds = array<i64: 16, 1>}, {pipeline_mode = #tpu.pipeline_mode<synchronous>, transform_indices = @transform_7, window_bounds = array<i64: 2, 144>}, {transform_indices = @transform_8, window_bounds = array<i64: 1, 2, 256>}]} {
    %c0 = arith.constant 0 : index
    %c0_0 = arith.constant 0 : index
    %c0_1 = arith.constant 0 : index
    %0 = vector.load %arg1[%c0, %c0_0, %c0_1] : memref<1x16x256xf32, #tpu.memory_space<vmem>>, vector<1x16x256xf32>
    %1 = vector.shape_cast %0 : vector<1x16x256xf32> to vector<16x256xf32>
    %c0_2 = arith.constant 0 : index
    %c0_3 = arith.constant 0 : index
    %2 = vector.load %arg2[%c0_2, %c0_3] : memref<16x1xf32, #tpu.memory_space<vmem>>, vector<16x1xf32>
    %3 = vector.broadcast %2 : vector<16x1xf32> to vector<16x256xf32>
    %4 = arith.mulf %1, %3 : vector<16x256xf32>
    %c0_4 = arith.constant 0 : index
    %c0_5 = arith.constant 0 : index
    %5 = vector.load %arg3[%c0_4, %c0_5] : memref<16x1xf32, #tpu.memory_space<vmem>>, vector<16x1xf32>
    %6 = vector.broadcast %5 : vector<16x1xf32> to vector<16x256xf32>
    %7 = arith.addf %4, %6 : vector<16x256xf32>
    %c0_6 = arith.constant 0 : index
    %c0_7 = arith.constant 0 : index
    %8 = vector.load %arg4[%c0_6, %c0_7] : memref<16x4xf32, #tpu.memory_space<vmem>>, vector<16x4xf32>
    %c0_8 = arith.constant 0 : index
    %c0_9 = arith.constant 0 : index
    %9 = vector.load %arg5[%c0_8, %c0_9] : memref<1x4xf32, #tpu.memory_space<vmem>>, vector<1x4xf32>
    %c0_10 = arith.constant 0 : index
    %c0_11 = arith.constant 0 : index
    %10 = vector.load %arg6[%c0_10, %c0_11] : memref<16x4xf32, #tpu.memory_space<vmem>>, vector<16x4xf32>
    %c0_12 = arith.constant 0 : index
    %c0_13 = arith.constant 0 : index
    %11 = vector.load %arg7[%c0_12, %c0_13] : memref<16x1xf32, #tpu.memory_space<vmem>>, vector<16x1xf32>
    %cst = arith.constant dense<0.000000e+00> : vector<16xf32>
    %12 = vector.multi_reduction <add>, %7, %cst [1] : vector<16x256xf32> to vector<16xf32>
    %13 = vector.shape_cast %12 : vector<16xf32> to vector<16x1xf32>
    %cst_14 = arith.constant 3.906250e-03 : f32
    %14 = vector.broadcast %cst_14 : f32 to vector<16x1xf32>
    %15 = arith.mulf %13, %14 : vector<16x1xf32>
    %16 = vector.broadcast %15 : vector<16x1xf32> to vector<16x4xf32>
    %17 = arith.mulf %8, %16 : vector<16x4xf32>
    %cst_15 = arith.constant dense<0.000000e+00> : vector<4xf32>
    %18 = vector.multi_reduction <add>, %17, %cst_15 [0] : vector<16x4xf32> to vector<4xf32>
    %19 = vector.shape_cast %18 : vector<4xf32> to vector<1x4xf32>
    %20 = arith.addf %19, %9 : vector<1x4xf32>
    %cst_16 = arith.constant 0.000000e+00 : f32
    %21 = vector.broadcast %cst_16 : f32 to vector<1x4xf32>
    %22 = arith.maximumf %20, %21 : vector<1x4xf32>
    %23 = vector.broadcast %22 : vector<1x4xf32> to vector<16x4xf32>
    %24 = arith.mulf %10, %23 : vector<16x4xf32>
    %cst_17 = arith.constant dense<0.000000e+00> : vector<16xf32>
    %25 = vector.multi_reduction <add>, %24, %cst_17 [1] : vector<16x4xf32> to vector<16xf32>
    %26 = vector.shape_cast %25 : vector<16xf32> to vector<16x1xf32>
    %27 = arith.addf %26, %11 : vector<16x1xf32>
    %28 = arith.negf %27 : vector<16x1xf32>
    %29 = math.exp %28 : vector<16x1xf32>
    %cst_18 = arith.constant 1.000000e+00 : f32
    %30 = vector.broadcast %cst_18 : f32 to vector<16x1xf32>
    %31 = arith.addf %30, %29 : vector<16x1xf32>
    %32 = arith.divf %30, %31 : vector<16x1xf32>
    %33 = vector.broadcast %32 : vector<16x1xf32> to vector<16x256xf32>
    %34 = arith.mulf %7, %33 : vector<16x256xf32>
    %cst_19 = arith.constant 0.000000e+00 : f32
    %35 = vector.broadcast %cst_19 : f32 to vector<16x256xf32>
    %36 = arith.maximumf %34, %35 : vector<16x256xf32>
    %c0_20 = arith.constant 0 : index
    %c0_21 = arith.constant 0 : index
    %37 = vector.load %arg8[%c0_20, %c0_21] : memref<2x144xf32, #tpu.memory_space<vmem>>, vector<2x144xf32>
    %38 = tpu.iota {dimensions = array<i32: 1>} : vector<16x256xi32>
    %c16_i32 = arith.constant 16 : i32
    %c0_i32 = arith.constant 0 : i32
    %39 = arith.cmpi eq, %c16_i32, %c0_i32 : i32
    %c1_i32 = arith.constant 1 : i32
    %40 = arith.select %39, %c1_i32, %c16_i32 : i32
    %41 = vector.broadcast %40 : i32 to vector<16x256xi32>
    %42 = arith.remsi %38, %41 : vector<16x256xi32>
    %c0_i32_22 = arith.constant 0 : i32
    %43 = vector.broadcast %c0_i32_22 : i32 to vector<16x256xi32>
    %44 = arith.cmpi ne, %42, %43 : vector<16x256xi32>
    %c0_i32_23 = arith.constant 0 : i32
    %45 = vector.broadcast %c0_i32_23 : i32 to vector<16x256xi32>
    %46 = arith.cmpi slt, %42, %45 : vector<16x256xi32>
    %c0_i32_24 = arith.constant 0 : i32
    %47 = arith.cmpi slt, %40, %c0_i32_24 : i32
    %48 = vector.broadcast %47 : i1 to vector<16x256xi1>
    %49 = vector.broadcast %48 : vector<16x256xi1> to vector<16x256xi1>
    %50 = arith.xori %46, %49 : vector<16x256xi1>
    %51 = arith.andi %50, %44 : vector<16x256xi1>
    %52 = vector.broadcast %40 : i32 to vector<16x256xi32>
    %53 = arith.addi %42, %52 : vector<16x256xi32>
    %54 = arith.select %51, %53, %42 : vector<16x256xi1>, vector<16x256xi32>
    %c1_i32_25 = arith.constant 1 : i32
    %55 = vector.broadcast %c1_i32_25 : i32 to vector<16x256xi32>
    %56 = arith.cmpi slt, %54, %55 : vector<16x256xi32>
    %57 = vector.extract_strided_slice %36 {offsets = [0, 15], sizes = [16, 241], strides = [1, 1]} : vector<16x256xf32> to vector<16x241xf32>
    %58 = vector.extract_strided_slice %36 {offsets = [0, 0], sizes = [16, 15], strides = [1, 1]} : vector<16x256xf32> to vector<16x15xf32>
    %59 = tpu.concatenate %57, %58 in 1 : vector<16x241xf32>, vector<16x15xf32> -> vector<16x256xf32>
    %60 = vector.extract_strided_slice %36 {offsets = [0, 255], sizes = [16, 1], strides = [1, 1]} : vector<16x256xf32> to vector<16x1xf32>
    %61 = vector.extract_strided_slice %36 {offsets = [0, 0], sizes = [16, 255], strides = [1, 1]} : vector<16x256xf32> to vector<16x255xf32>
    %62 = tpu.concatenate %60, %61 in 1 : vector<16x1xf32>, vector<16x255xf32> -> vector<16x256xf32>
    %63 = arith.select %56, %59, %62 : vector<16x256xi1>, vector<16x256xf32>
    %64 = vector.extract_strided_slice %63 {offsets = [0, 240], sizes = [16, 16], strides = [1, 1]} : vector<16x256xf32> to vector<16x16xf32>
    %65 = vector.extract_strided_slice %63 {offsets = [0, 0], sizes = [16, 240], strides = [1, 1]} : vector<16x256xf32> to vector<16x240xf32>
    %66 = tpu.concatenate %64, %65 in 1 : vector<16x16xf32>, vector<16x240xf32> -> vector<16x256xf32>
    %67 = vector.extract_strided_slice %63 {offsets = [0, 16], sizes = [16, 240], strides = [1, 1]} : vector<16x256xf32> to vector<16x240xf32>
    %68 = vector.extract_strided_slice %63 {offsets = [0, 0], sizes = [16, 16], strides = [1, 1]} : vector<16x256xf32> to vector<16x16xf32>
    %69 = tpu.concatenate %67, %68 in 1 : vector<16x240xf32>, vector<16x16xf32> -> vector<16x256xf32>
    %70 = vector.extract_strided_slice %36 {offsets = [0, 240], sizes = [16, 16], strides = [1, 1]} : vector<16x256xf32> to vector<16x16xf32>
    %71 = vector.extract_strided_slice %36 {offsets = [0, 0], sizes = [16, 240], strides = [1, 1]} : vector<16x256xf32> to vector<16x240xf32>
    %72 = tpu.concatenate %70, %71 in 1 : vector<16x16xf32>, vector<16x240xf32> -> vector<16x256xf32>
    %73 = vector.extract_strided_slice %36 {offsets = [0, 16], sizes = [16, 240], strides = [1, 1]} : vector<16x256xf32> to vector<16x240xf32>
    %74 = vector.extract_strided_slice %36 {offsets = [0, 0], sizes = [16, 16], strides = [1, 1]} : vector<16x256xf32> to vector<16x16xf32>
    %75 = tpu.concatenate %73, %74 in 1 : vector<16x240xf32>, vector<16x16xf32> -> vector<16x256xf32>
    %76 = tpu.iota {dimensions = array<i32: 1>} : vector<16x256xi32>
    %c16_i32_26 = arith.constant 16 : i32
    %c0_i32_27 = arith.constant 0 : i32
    %77 = arith.cmpi eq, %c16_i32_26, %c0_i32_27 : i32
    %c1_i32_28 = arith.constant 1 : i32
    %78 = arith.select %77, %c1_i32_28, %c16_i32_26 : i32
    %79 = vector.broadcast %78 : i32 to vector<16x256xi32>
    %80 = arith.remsi %76, %79 : vector<16x256xi32>
    %c0_i32_29 = arith.constant 0 : i32
    %81 = vector.broadcast %c0_i32_29 : i32 to vector<16x256xi32>
    %82 = arith.cmpi ne, %80, %81 : vector<16x256xi32>
    %c0_i32_30 = arith.constant 0 : i32
    %83 = vector.broadcast %c0_i32_30 : i32 to vector<16x256xi32>
    %84 = arith.cmpi slt, %80, %83 : vector<16x256xi32>
    %c0_i32_31 = arith.constant 0 : i32
    %85 = arith.cmpi slt, %78, %c0_i32_31 : i32
    %86 = vector.broadcast %85 : i1 to vector<16x256xi1>
    %87 = vector.broadcast %86 : vector<16x256xi1> to vector<16x256xi1>
    %88 = arith.xori %84, %87 : vector<16x256xi1>
    %89 = arith.andi %88, %82 : vector<16x256xi1>
    %90 = vector.broadcast %78 : i32 to vector<16x256xi32>
    %91 = arith.addi %80, %90 : vector<16x256xi32>
    %92 = arith.select %89, %91, %80 : vector<16x256xi1>, vector<16x256xi32>
    %c15_i32 = arith.constant 15 : i32
    %93 = vector.broadcast %c15_i32 : i32 to vector<16x256xi32>
    %94 = arith.cmpi sge, %92, %93 : vector<16x256xi32>
    %95 = vector.extract_strided_slice %36 {offsets = [0, 241], sizes = [16, 15], strides = [1, 1]} : vector<16x256xf32> to vector<16x15xf32>
    %96 = vector.extract_strided_slice %36 {offsets = [0, 0], sizes = [16, 241], strides = [1, 1]} : vector<16x256xf32> to vector<16x241xf32>
    %97 = tpu.concatenate %95, %96 in 1 : vector<16x15xf32>, vector<16x241xf32> -> vector<16x256xf32>
    %98 = vector.extract_strided_slice %36 {offsets = [0, 1], sizes = [16, 255], strides = [1, 1]} : vector<16x256xf32> to vector<16x255xf32>
    %99 = vector.extract_strided_slice %36 {offsets = [0, 0], sizes = [16, 1], strides = [1, 1]} : vector<16x256xf32> to vector<16x1xf32>
    %100 = tpu.concatenate %98, %99 in 1 : vector<16x255xf32>, vector<16x1xf32> -> vector<16x256xf32>
    %101 = arith.select %94, %97, %100 : vector<16x256xi1>, vector<16x256xf32>
    %102 = vector.extract_strided_slice %101 {offsets = [0, 240], sizes = [16, 16], strides = [1, 1]} : vector<16x256xf32> to vector<16x16xf32>
    %103 = vector.extract_strided_slice %101 {offsets = [0, 0], sizes = [16, 240], strides = [1, 1]} : vector<16x256xf32> to vector<16x240xf32>
    %104 = tpu.concatenate %102, %103 in 1 : vector<16x16xf32>, vector<16x240xf32> -> vector<16x256xf32>
    %105 = vector.extract_strided_slice %101 {offsets = [0, 16], sizes = [16, 240], strides = [1, 1]} : vector<16x256xf32> to vector<16x240xf32>
    %106 = vector.extract_strided_slice %101 {offsets = [0, 0], sizes = [16, 16], strides = [1, 1]} : vector<16x256xf32> to vector<16x16xf32>
    %107 = tpu.concatenate %105, %106 in 1 : vector<16x240xf32>, vector<16x16xf32> -> vector<16x256xf32>
    %108 = tpu.concatenate %66, %63, %69, %72, %36, %75, %104, %101, %107 in 0 : vector<16x256xf32>, vector<16x256xf32>, vector<16x256xf32>, vector<16x256xf32>, vector<16x256xf32>, vector<16x256xf32>, vector<16x256xf32>, vector<16x256xf32>, vector<16x256xf32> -> vector<144x256xf32>
    %cst_32 = arith.constant dense<0.000000e+00> : vector<2x256xf32>
    %109 = tpu.matmul %37, %108, %cst_32 {dimension_numbers = #tpu.dot_dimension_numbers<[1], [0], [0], [1], [0, 0, 1, 1], [], []>} : vector<2x144xf32>, vector<144x256xf32>, vector<2x256xf32> -> vector<2x256xf32>
    %c0_33 = arith.constant 0 : index
    %c0_34 = arith.constant 0 : index
    %c0_35 = arith.constant 0 : index
    %110 = vector.load %arg9[%c0_33, %c0_34, %c0_35] : memref<1x2x256xf32, #tpu.memory_space<vmem>>, vector<1x2x256xf32>
    %111 = vector.shape_cast %110 : vector<1x2x256xf32> to vector<2x256xf32>
    %112 = vector.shape_cast %109 : vector<2x256xf32> to vector<1x2x256xf32>
    tpu.vector_store %arg9[%c0_33, %c0_34, %c0_35], %112 {strides = array<i32>} : memref<1x2x256xf32, #tpu.memory_space<vmem>>, vector<1x2x256xf32>,
    return
  }
  func.func @transform_0(%arg0: i32) -> (i32, i32, i32) {
    %c0_i32 = arith.constant 0 : i32
    %c0_i32_0 = arith.constant 0 : i32
    %c0_i32_1 = arith.constant 0 : i32
    return %arg0, %c0_i32, %c0_i32_0 : i32, i32, i32
  }
  func.func @transform_1(%arg0: i32) -> (i32, i32) {
    %c0_i32 = arith.constant 0 : i32
    %c0_i32_0 = arith.constant 0 : i32
    %c0_i32_1 = arith.constant 0 : i32
    return %c0_i32, %c0_i32_0 : i32, i32
  }
  func.func @transform_2(%arg0: i32) -> (i32, i32) {
    %c0_i32 = arith.constant 0 : i32
    %c0_i32_0 = arith.constant 0 : i32
    %c0_i32_1 = arith.constant 0 : i32
    return %c0_i32, %c0_i32_0 : i32, i32
  }
  func.func @transform_3(%arg0: i32) -> (i32, i32) {
    %c0_i32 = arith.constant 0 : i32
    %c0_i32_0 = arith.constant 0 : i32
    %c0_i32_1 = arith.constant 0 : i32
    return %c0_i32, %c0_i32_0 : i32, i32
  }
  func.func @transform_4(%arg0: i32) -> (i32, i32) {
    %c0_i32 = arith.constant 0 : i32
    %c0_i32_0 = arith.constant 0 : i32
    %c0_i32_1 = arith.constant 0 : i32
    return %c0_i32, %c0_i32_0 : i32, i32
  }
  func.func @transform_5(%arg0: i32) -> (i32, i32) {
    %c0_i32 = arith.constant 0 : i32
    %c0_i32_0 = arith.constant 0 : i32
    %c0_i32_1 = arith.constant 0 : i32
    return %c0_i32, %c0_i32_0 : i32, i32
  }
  func.func @transform_6(%arg0: i32) -> (i32, i32) {
    %c0_i32 = arith.constant 0 : i32
    %c0_i32_0 = arith.constant 0 : i32
    %c0_i32_1 = arith.constant 0 : i32
    return %c0_i32, %c0_i32_0 : i32, i32
  }
  func.func @transform_7(%arg0: i32) -> (i32, i32) {
    %c0_i32 = arith.constant 0 : i32
    %c0_i32_0 = arith.constant 0 : i32
    %c0_i32_1 = arith.constant 0 : i32
    return %c0_i32, %c0_i32_0 : i32, i32
  }
  func.func @transform_8(%arg0: i32) -> (i32, i32, i32) {
    %c0_i32 = arith.constant 0 : i32
    %c0_i32_0 = arith.constant 0 : i32
    %c0_i32_1 = arith.constant 0 : i32
    return %arg0, %c0_i32, %c0_i32_0 : i32, i32, i32
  }
}

</mosaic_0001>

<llo_original>
// kernel: se_resnet2d_forward.4
$region0: #{se_resnet2d_forward.4}
  #allocation0 [shape = 'u32[]', space=smem, size = 0x4, offset = 0x4, fixed_abs, tag = 'smem constant byte address 0x4 - core index']
  #allocation1 [shape = 'u32[144,128]{1,0:T(1,128)}', space=vmem, size = 0x12000, scoped, tag = 'internal scratch']
  %s0 = inlined_call_operand.vmem [shape: f32[2,8,256], index: 0, kind: input, shape index: {}]
  %s1 = inlined_call_operand.vmem [shape: f32[8,72], index: 1, kind: input, shape index: {}]
  %s2 = inlined_call_operand.vmem [shape: f32[8,1], index: 2, kind: input, shape index: {}]
  %s3 = inlined_call_operand.vmem [shape: f32[8,2], index: 3, kind: input, shape index: {}]
  %s4 = inlined_call_operand.vmem [shape: f32[1,2], index: 4, kind: input, shape index: {}]
  %s5 = inlined_call_operand.vmem [shape: f32[8,2], index: 5, kind: input, shape index: {}]
  %s6 = inlined_call_operand.vmem [shape: f32[8,1], index: 6, kind: input, shape index: {}]
  %s7 = inlined_call_operand.vmem [shape: f32[2,8,256], index: 7, kind: output, shape index: {}]
  %s8 = sld [smem:[#allocation0]]
  $region61: #{se_resnet2d_forward.4} parent=0
    _
  %s10 = ssub.s32 1, %s8
  %s11 = scalar_select 0, %s10, %s8
  loop: start=0, step=1, limit=4
  $region2: #{se_resnet2d_forward.4} parent=0 // loop_pre_header
    _
  $region3: #{se_resnet2d_forward.4} parent=0 // loop_header
    %s13 = sphi 0, %s17
    %p14 = scmp.ge.s32.totalorder %s13, 4
    %s23 = sphi 0, %s25
    %s26 = sphi 0, %s23
    %s27 = sphi 0, %s26
    %s43 = sphi 0, %s27
    %s47 = sphi 0, %s47
    %s49 = sphi 0, %s47
    %s50 = sphi 0, %s49
    %s64 = sphi 0, %s50
    %s68 = sphi 0, %s68
    %s70 = sphi 0, %s68
    %s71 = sphi 0, %s70
    %s85 = sphi 0, %s71
    %s89 = sphi 0, %s89
    %s91 = sphi 0, %s89
    %s92 = sphi 0, %s91
    %s106 = sphi 0, %s92
    %s110 = sphi 0, %s110
    %s112 = sphi 0, %s110
    %s113 = sphi 0, %s112
    %s127 = sphi 0, %s113
    %s131 = sphi 0, %s131
    %s133 = sphi 0, %s131
    %s134 = sphi 0, %s133
    %s148 = sphi 0, %s134
    %s152 = sphi 0, %s152
    %s154 = sphi 0, %s152
    %s155 = sphi 0, %s154
    %s169 = sphi 0, %s155
    %s175 = sphi 0, %s177
    %s178 = sphi 0, %s175
    %s179 = sphi 0, %s178
    %s195 = sphi 0, %s179
  $region4: #{se_resnet2d_forward.4} parent=0 // loop_header_branch
    %16 = sbr.rel (%p14) target = $region8
  $region5: #{se_resnet2d_forward.4} parent=0 // loop_body
    %s18 = ssub.s32 %s13, 1
    %s19 = ssub.s32 %s13, 2
    %s20 = sadd.s32 %s13, 1
    %s21 = ssub.s32 %s13, %s20
    %p22 = scmp.eq.s32.totalorder %s21, 0
    %s24 = sadd.s32 %s23, 1
    %s25 = scalar_select %p22, %s23, %s24
    %p28 = pneg %p22
    %p29 = scmp.eq.s32.totalorder %s13, 1
    %p30 = por %p28, %p29
    %p31 = scmp.ne.s32.totalorder %s23, %s26
    %p32 = scmp.eq.s32.totalorder %s13, 0
    %p33 = por %p31, %p32
    %p34 = scmp.ne.s32.totalorder %s23, %s26
    %p35 = scmp.eq.s32.totalorder %s18, 1
    %p36 = por %p34, %p35
    %p37 = scmp.ne.s32.totalorder %s26, %s27
    %p38 = scmp.eq.s32.totalorder %s18, 0
    %p39 = por %p37, %p38
    %p40 = scmp.ne.s32.totalorder %s26, %s27
    %p41 = scmp.eq.s32.totalorder %s19, 1
    %p42 = por %p40, %p41
    %p44 = scmp.ne.s32.totalorder %s27, %s43
    %p45 = scmp.eq.s32.totalorder %s19, 0
    %p46 = por %p44, %p45
    %s48 = sadd.s32 %s47, 1
    %p51 = scmp.eq.s32.totalorder %s13, 1
    %p52 = scmp.ne.s32.totalorder %s47, %s49
    %p53 = scmp.eq.s32.totalorder %s13, 0
    %p54 = por %p52, %p53
    %p55 = scmp.ne.s32.totalorder %s47, %s49
    %p56 = scmp.eq.s32.totalorder %s18, 1
    %p57 = por %p55, %p56
    %p58 = scmp.ne.s32.totalorder %s49, %s50
    %p59 = scmp.eq.s32.totalorder %s18, 0
    %p60 = por %p58, %p59
    %p61 = scmp.ne.s32.totalorder %s49, %s50
    %p62 = scmp.eq.s32.totalorder %s19, 1
    %p63 = por %p61, %p62
    %p65 = scmp.ne.s32.totalorder %s50, %s64
    %p66 = scmp.eq.s32.totalorder %s19, 0
    %p67 = por %p65, %p66
    %s69 = sadd.s32 %s68, 1
    %p72 = scmp.eq.s32.totalorder %s13, 1
    %p73 = scmp.ne.s32.totalorder %s68, %s70
    %p74 = scmp.eq.s32.totalorder %s13, 0
    %p75 = por %p73, %p74
    %p76 = scmp.ne.s32.totalorder %s68, %s70
    %p77 = scmp.eq.s32.totalorder %s18, 1
    %p78 = por %p76, %p77
    %p79 = scmp.ne.s32.totalorder %s70, %s71
    %p80 = scmp.eq.s32.totalorder %s18, 0
    %p81 = por %p79, %p80
    %p82 = scmp.ne.s32.totalorder %s70, %s71
    %p83 = scmp.eq.s32.totalorder %s19, 1
    %p84 = por %p82, %p83
    %p86 = scmp.ne.s32.totalorder %s71, %s85
    %p87 = scmp.eq.s32.totalorder %s19, 0
    %p88 = por %p86, %p87
    %s90 = sadd.s32 %s89, 1
    %p93 = scmp.eq.s32.totalorder %s13, 1
    %p94 = scmp.ne.s32.totalorder %s89, %s91
    %p95 = scmp.eq.s32.totalorder %s13, 0
    %p96 = por %p94, %p95
    %p97 = scmp.ne.s32.totalorder %s89, %s91
    %p98 = scmp.eq.s32.totalorder %s18, 1
    %p99 = por %p97, %p98
    %p100 = scmp.ne.s32.totalorder %s91, %s92
    %p101 = scmp.eq.s32.totalorder %s18, 0
    %p102 = por %p100, %p101
    %p103 = scmp.ne.s32.totalorder %s91, %s92
    %p104 = scmp.eq.s32.totalorder %s19, 1
    %p105 = por %p103, %p104
    %p107 = scmp.ne.s32.totalorder %s92, %s106
    %p108 = scmp.eq.s32.totalorder %s19, 0
    %p109 = por %p107, %p108
    %s111 = sadd.s32 %s110, 1
    %p114 = scmp.eq.s32.totalorder %s13, 1
    %p115 = scmp.ne.s32.totalorder %s110, %s112
    %p116 = scmp.eq.s32.totalorder %s13, 0
    %p117 = por %p115, %p116
    %p118 = scmp.ne.s32.totalorder %s110, %s112
    %p119 = scmp.eq.s32.totalorder %s18, 1
    %p120 = por %p118, %p119
    %p121 = scmp.ne.s32.totalorder %s112, %s113
    %p122 = scmp.eq.s32.totalorder %s18, 0
    %p123 = por %p121, %p122
    %p124 = scmp.ne.s32.totalorder %s112, %s113
    %p125 = scmp.eq.s32.totalorder %s19, 1
    %p126 = por %p124, %p125
    %p128 = scmp.ne.s32.totalorder %s113, %s127
    %p129 = scmp.eq.s32.totalorder %s19, 0
    %p130 = por %p128, %p129
    %s132 = sadd.s32 %s131, 1
    %p135 = scmp.eq.s32.totalorder %s13, 1
    %p136 = scmp.ne.s32.totalorder %s131, %s133
    %p137 = scmp.eq.s32.totalorder %s13, 0
    %p138 = por %p136, %p137
    %p139 = scmp.ne.s32.totalorder %s131, %s133
    %p140 = scmp.eq.s32.totalorder %s18, 1
    %p141 = por %p139, %p140
    %p142 = scmp.ne.s32.totalorder %s133, %s134
    %p143 = scmp.eq.s32.totalorder %s18, 0
    %p144 = por %p142, %p143
    %p145 = scmp.ne.s32.totalorder %s133, %s134
    %p146 = scmp.eq.s32.totalorder %s19, 1
    %p147 = por %p145, %p146
    %p149 = scmp.ne.s32.totalorder %s134, %s148
    %p150 = scmp.eq.s32.totalorder %s19, 0
    %p151 = por %p149, %p150
    %s153 = sadd.s32 %s152, 1
    %p156 = scmp.eq.s32.totalorder %s13, 1
    %p157 = scmp.ne.s32.totalorder %s152, %s154
    %p158 = scmp.eq.s32.totalorder %s13, 0
    %p159 = por %p157, %p158
    %p160 = scmp.ne.s32.totalorder %s152, %s154
    %p161 = scmp.eq.s32.totalorder %s18, 1
    %p162 = por %p160, %p161
    %p163 = scmp.ne.s32.totalorder %s154, %s155
    %p164 = scmp.eq.s32.totalorder %s18, 0
    %p165 = por %p163, %p164
    %p166 = scmp.ne.s32.totalorder %s154, %s155
    %p167 = scmp.eq.s32.totalorder %s19, 1
    %p168 = por %p166, %p167
    %p170 = scmp.ne.s32.totalorder %s155, %s169
    %p171 = scmp.eq.s32.totalorder %s19, 0
    %p172 = por %p170, %p171
    %s173 = ssub.s32 %s13, %s20
    %p174 = scmp.eq.s32.totalorder %s173, 0
    %s176 = sadd.s32 %s175, 1
    %s177 = scalar_select %p174, %s175, %s176
    %p180 = pneg %p174
    %p181 = scmp.eq.s32.totalorder %s13, 1
    %p182 = por %p180, %p181
    %p183 = scmp.ne.s32.totalorder %s175, %s178
    %p184 = scmp.eq.s32.totalorder %s13, 0
    %p185 = por %p183, %p184
    %p186 = scmp.ne.s32.totalorder %s175, %s178
    %p187 = scmp.eq.s32.totalorder %s18, 1
    %p188 = por %p186, %p187
    %p189 = scmp.ne.s32.totalorder %s178, %s179
    %p190 = scmp.eq.s32.totalorder %s18, 0
    %p191 = por %p189, %p190
    %p192 = scmp.ne.s32.totalorder %s178, %s179
    %p193 = scmp.eq.s32.totalorder %s19, 1
    %p194 = por %p192, %p193
    %p196 = scmp.ne.s32.totalorder %s179, %s195
    %p197 = scmp.eq.s32.totalorder %s19, 0
    %p198 = por %p196, %p197
    %p199 = scmp.le.s32.totalorder 1, %s13
    %p200 = scmp.lt.s32.totalorder %s13, 3
    %p201 = pnand %p199, %p200
    %p202 = pneg %p201
    // Predicated region
    $region9: #{se_resnet2d_forward.4} parent=5 // pred_check
      _
    $region10: #{se_resnet2d_forward.4} parent=5 // pred_check_branch
      %204 = sbr.rel (%p201) target = $region12
    $region11: #{se_resnet2d_forward.4} parent=5 // pred_region
      %s205 = ssub.s32 %s13, 1
      // Predicated region
      $region13: #{se_resnet2d_forward.4} parent=11 // pred_check
        %p206 = pneg %p60
      $region14: #{se_resnet2d_forward.4} parent=11 // pred_check_branch
        %208 = sbr.rel (%p206) target = $region16
      $region15: #{se_resnet2d_forward.4} parent=11 // pred_region
        _
      $region16: #{se_resnet2d_forward.4} parent=11 // pred_fallthru
        _
      // Predicated region
      $region17: #{se_resnet2d_forward.4} parent=11 // pred_check
        %p209 = pneg %p81
      $region18: #{se_resnet2d_forward.4} parent=11 // pred_check_branch
        %211 = sbr.rel (%p209) target = $region20
      $region19: #{se_resnet2d_forward.4} parent=11 // pred_region
        _
      $region20: #{se_resnet2d_forward.4} parent=11 // pred_fallthru
        _
      // Predicated region
      $region21: #{se_resnet2d_forward.4} parent=11 // pred_check
        %p212 = pneg %p102
      $region22: #{se_resnet2d_forward.4} parent=11 // pred_check_branch
        %214 = sbr.rel (%p212) target = $region24
      $region23: #{se_resnet2d_forward.4} parent=11 // pred_region
        _
      $region24: #{se_resnet2d_forward.4} parent=11 // pred_fallthru
        _
      // Predicated region
      $region25: #{se_resnet2d_forward.4} parent=11 // pred_check
        %p215 = pneg %p123
      $region26: #{se_resnet2d_forward.4} parent=11 // pred_check_branch
        %217 = sbr.rel (%p215) target = $region28
      $region27: #{se_resnet2d_forward.4} parent=11 // pred_region
        _
      $region28: #{se_resnet2d_forward.4} parent=11 // pred_fallthru
        _
      // Predicated region
      $region29: #{se_resnet2d_forward.4} parent=11 // pred_check
        %p218 = pneg %p144
      $region30: #{se_resnet2d_forward.4} parent=11 // pred_check_branch
        %220 = sbr.rel (%p218) target = $region32
      $region31: #{se_resnet2d_forward.4} parent=11 // pred_region
        _
      $region32: #{se_resnet2d_forward.4} parent=11 // pred_fallthru
        _
      // Predicated region
      $region33: #{se_resnet2d_forward.4} parent=11 // pred_check
        %p221 = pneg %p165
      $region34: #{se_resnet2d_forward.4} parent=11 // pred_check_branch
        %223 = sbr.rel (%p221) target = $region36
      $region35: #{se_resnet2d_forward.4} parent=11 // pred_region
        _
      $region36: #{se_resnet2d_forward.4} parent=11 // pred_fallthru
        _
    $region12: #{se_resnet2d_forward.4} parent=5 // pred_fallthru
      _
    %p224 = scmp.lt.s32.totalorder %s13, 2
    // Predicated region
    $region37: #{se_resnet2d_forward.4} parent=5 // pred_check
      %p225 = pneg %p224
    $region38: #{se_resnet2d_forward.4} parent=5 // pred_check_branch
      %227 = sbr.rel (%p225) target = $region40
    $region39: #{se_resnet2d_forward.4} parent=5 // pred_region
      // Predicated region
      $region41: #{se_resnet2d_forward.4} parent=39 // pred_check
        %p228 = pneg %p33
      $region42: #{se_resnet2d_forward.4} parent=39 // pred_check_branch
        %230 = sbr.rel (%p228) target = $region44
      $region43: #{se_resnet2d_forward.4} parent=39 // pred_region
        %p231 = scmp.lt.s32.totalorder %s13, 1
        %s232 = scalar_select %p231, %s13, 1
        %s233 = smul.addr %s232, 2
        %s234 = smul.addr %s233, 8
        %s235 = scalar_lea.vmem %s0, %s234
      $region44: #{se_resnet2d_forward.4} parent=39 // pred_fallthru
        _
    $region40: #{se_resnet2d_forward.4} parent=5 // pred_fallthru
      _
    %p236 = scmp.le.s32.totalorder 1, %s13
    %p237 = scmp.lt.s32.totalorder %s13, 3
    %p238 = pnand %p236, %p237
    %p239 = pneg %p238
    // Predicated region
    $region45: #{se_resnet2d_forward.4} parent=5 // pred_check
      _
    $region46: #{se_resnet2d_forward.4} parent=5 // pred_check_branch
      %241 = sbr.rel (%p238) target = $region48
    $region47: #{se_resnet2d_forward.4} parent=5 // pred_region
      %s242 = ssub.s32 %s13, 1
      %p243 = scmp.lt.s32.totalorder %s18, 1
      %s244 = scalar_select %p243, %s18, 1
      %s245 = smul.addr %s244, 2
      %s246 = smul.addr %s245, 8
      %s247 = scalar_lea.vmem %s0, %s246
      %p248 = pneg %p39
      %p249 = pneg %p36
      %p250 = pneg %p60
      %p251 = pneg %p57
      %p252 = pneg %p81
      %p253 = pneg %p78
      %p254 = pneg %p102
      %p255 = pneg %p99
      %p256 = pneg %p123
      %p257 = pneg %p120
      %p258 = pneg %p144
      %p259 = pneg %p141
      %p260 = pneg %p165
      %p261 = pneg %p162
      %p262 = pneg %p191
      %p263 = pneg %p188
      %p264 = scmp.lt.s32.totalorder %s18, 1
      %s265 = scalar_select %p264, %s18, 1
      %s266 = smul.addr %s265, 2
      %s267 = smul.addr %s266, 8
      %s268 = scalar_lea.vmem %s7, %s267
      %p269 = scmp.lt.s32.totalorder %s18, 1
      %s270 = scalar_select %p269, %s18, 1
      %s271 = smul.addr %s270, 2
      %s272 = smul.addr %s271, 8
      %s273 = scalar_lea.vmem %s0, %s272
      %p274 = scmp.lt.s32.totalorder %s18, 1
      %s275 = scalar_select %p274, %s18, 1
      %s276 = smul.addr %s275, 2
      %s277 = smul.addr %s276, 8
      %s278 = scalar_lea.vmem %s7, %s277
      %v279 = vld [vmem:[%s273] sm:$0xff]
      %v280 = vld [vmem:[%s273 + $0x8] sm:$0xff]
      %v281 = vld [vmem:[%s1] sm:$0xff]
      %v282 = vld [vmem:[%s2] sm:$0xff]
      %v283 = vlaneseq
      %v284 = vand.u32 %v283, 127
      %v285 = vadd.s32 %v284, 128
      %vm286 = vcmp.lt.s32.totalorder %v284, 0
      %v287 = vsub.s32 0, %v284
      %v288 = vsel %vm286, %v287, %v284
      %v289 = vshrl.u32 %v288, 4
      %v290 = vand.u32 %v288, 15
      %v291 = vsub.s32 0, %v290
      %v292 = vsel %vm286, %v291, %v290
      %vm293 = vcmp.lt.s32.totalorder %v285, 0
      %v294 = vsub.s32 0, %v285
      %v295 = vsel %vm293, %v294, %v285
      %v296 = vshrl.u32 %v295, 4
      %v297 = vand.u32 %v295, 15
      %v298 = vsub.s32 0, %v297
      %v299 = vsel %vm293, %v298, %v297
      %vm300 = vcmp.ne.s32.totalorder %v292, 0
      %vm301 = vcmp.ne.s32.totalorder %v299, 0
      %vm302 = vcmp.lt.s32.totalorder %v292, 0
      %vm303 = vcmp.lt.s32.totalorder %v299, 0
      %vm304 = vmand %vm302, %vm300
      %vm305 = vmand %vm303, %vm301
      %v306 = vadd.s32 %v292, 16
      %v307 = vadd.s32 %v299, 16
      %v308 = vsel %vm304, %v306, %v292
      %v309 = vsel %vm305, %v307, %v299
      %vm310 = vcmp.lt.s32.totalorder %v308, 1
      %vm311 = vcmp.lt.s32.totalorder %v309, 1
      %314 = vrot.lane.b32.xlu0 %v279, 113
      %v315 = vpop.permute.xlu0 %314
      %316 = vrot.lane.b32.xlu0 %v280, 113
      %v317 = vpop.permute.xlu0 %316
      %vm318 = vcmask 924672
      %v319 = vsel %vm318, %v315, %v317
      %v323 = vsel %vm318, %v317, %v315
      %324 = vrot.lane.b32.xlu0 %v280, 1
      %v325 = vpop.permute.xlu0 %324
      %327 = vrot.lane.b32.xlu0 %v279, 1
      %v328 = vpop.permute.xlu0 %327
      %vm329 = vcmask 7168
      %v330 = vsel %vm329, %v328, %v325
      %v333 = vsel %vm329, %v325, %v328
      %v334 = vsel %vm310, %v319, %v333
      %v335 = vsel %vm311, %v323, %v330
      %337 = vrot.lane.b32.xlu0 %v335, 16
      %v338 = vpop.permute.xlu0 %337
      %341 = vrot.lane.b32.xlu0 %v334, 16
      %v342 = vpop.permute.xlu0 %341
      %vm343 = vcmask 130048
      %v344 = vsel %vm343, %v342, %v338
      %v347 = vsel %vm343, %v338, %v342
      %348 = vrot.lane.b32.xlu0 %v334, 112
      %v349 = vpop.permute.xlu0 %348
      %350 = vrot.lane.b32.xlu0 %v335, 112
      %v351 = vpop.permute.xlu0 %350
      %vm352 = vcmask 916480
      %v353 = vsel %vm352, %v349, %v351
      %v357 = vsel %vm352, %v351, %v349
      %358 = vrot.lane.b32.xlu0 %v280, 16
      %v359 = vpop.permute.xlu0 %358
      %361 = vrot.lane.b32.xlu0 %v279, 16
      %v362 = vpop.permute.xlu0 %361
      %v363 = vsel %vm343, %v362, %v359
      %v366 = vsel %vm343, %v359, %v362
      %367 = vrot.lane.b32.xlu0 %v279, 112
      %v368 = vpop.permute.xlu0 %367
      %369 = vrot.lane.b32.xlu0 %v280, 112
      %v370 = vpop.permute.xlu0 %369
      %v371 = vsel %vm352, %v368, %v370
      %v375 = vsel %vm352, %v370, %v368
      %vm376 = vcmp.ge.s32.totalorder %v308, 15
      %vm377 = vcmp.ge.s32.totalorder %v309, 15
      %378 = vrot.lane.b32.xlu0 %v280, 15
      %v379 = vpop.permute.xlu0 %378
      %381 = vrot.lane.b32.xlu0 %v279, 15
      %v382 = vpop.permute.xlu0 %381
      %vm383 = vcmask 121856
      %v384 = vsel %vm383, %v382, %v379
      %v387 = vsel %vm383, %v379, %v382
      %388 = vrot.lane.b32.xlu0 %v279, 127
      %v389 = vpop.permute.xlu0 %388
      %390 = vrot.lane.b32.xlu0 %v280, 127
      %v391 = vpop.permute.xlu0 %390
      %vm392 = vcmask 1039360
      %v393 = vsel %vm392, %v389, %v391
      %v397 = vsel %vm392, %v391, %v389
      %v398 = vsel %vm376, %v387, %v393
      %v399 = vsel %vm377, %v384, %v397
      %401 = vrot.lane.b32.xlu0 %v399, 16
      %v402 = vpop.permute.xlu0 %401
      %405 = vrot.lane.b32.xlu0 %v398, 16
      %v406 = vpop.permute.xlu0 %405
      %v407 = vsel %vm343, %v406, %v402
      %v410 = vsel %vm343, %v402, %v406
      %411 = vrot.lane.b32.xlu0 %v398, 112
      %v412 = vpop.permute.xlu0 %411
      %413 = vrot.lane.b32.xlu0 %v399, 112
      %v414 = vpop.permute.xlu0 %413
      %v415 = vsel %vm352, %v412, %v414
      %v419 = vsel %vm352, %v414, %v412
      %421 = vset.pattern.permute.xlu0 0
      %422 = vperm.xlu0 %421, %v282
      %v423 = vpop.permute.xlu0 %422
      %vm425 = vcmask 588800
      %v427 = vsel %vm425, %v281, 0
      %429 = vmatprep.subr.mxu0 0.0
      %430 = vmatpush1.msra.mxu0 0.0
      %431 = vmatprep.subr.mxu0 0.0
      %432 = vmatpush1.msra.mxu0 0.0
      %433 = vmatprep.subr.mxu0 0.0
      %434 = vmatpush1.msra.mxu0 0.0
      %435 = vmatprep.subr.mxu0 0.0
      %436 = vmatpush1.msra.mxu0 0.0
      %437 = vmatprep.subr.mxu0 0.0
      %438 = vmatpush1.msra.mxu0 0.0
      %439 = vmatprep.subr.mxu0 0.0
      %440 = vmatpush1.msra.mxu0 0.0
      %441 = vmatprep.subr.mxu0 0.0
      %442 = vmatpush1.msra.mxu0 0.0
      %443 = vmatprep.subr.mxu0 %v419
      %444 = vmatpush1.msra.mxu0 %v415
      %445 = vmatprep.subr.mxu0 %v399
      %446 = vmatpush1.msra.mxu0 %v398
      %447 = vmatprep.subr.mxu0 %v407
      %448 = vmatpush1.msra.mxu0 %v410
      %449 = vmatprep.subr.mxu0 %v375
      %450 = vmatpush1.msra.mxu0 %v371
      %451 = vmatprep.subr.mxu0 %v280
      %452 = vmatpush1.msra.mxu0 %v279
      %453 = vmatprep.subr.mxu0 %v363
      %454 = vmatpush1.msra.mxu0 %v366
      %455 = vmatprep.subr.mxu0 %v357
      %456 = vmatpush1.msra.mxu0 %v353
      %457 = vmatprep.subr.mxu0 %v335
      %458 = vmatpush1.msra.mxu0 %v334
      %459 = vmatprep.subr.mxu0 %v344
      %460 = vmatpush1.msra.mxu0 %v347
      %461 = vmatprep.subr.mxu0 0.0
      %462 = vmatpush2.msra.mxu0 0.0
      %463 = vmatprep.subr.mxu0 0.0
      %464 = vmatpush2.msra.mxu0 0.0
      %465 = vmatprep.subr.mxu0 0.0
      %466 = vmatpush2.msra.mxu0 0.0
      %467 = vmatprep.subr.mxu0 0.0
      %468 = vmatpush2.msra.mxu0 0.0
      %469 = vmatprep.subr.mxu0 0.0
      %470 = vmatpush2.msra.mxu0 0.0
      %471 = vmatprep.subr.mxu0 0.0
      %472 = vmatpush2.msra.mxu0 0.0
      %473 = vmatprep.subr.mxu0 0.0
      %474 = vmatpush2.msra.mxu0 0.0
      %475 = vmatprep.subr.mxu0 0.0
      %476 = vmatpush2.msra.mxu0 0.0
      %477 = vmatprep.subr.mxu0 0.0
      %478 = vmatpush2.msra.mxu0 0.0
      %479 = vmatprep.subr.mxu0 0.0
      %480 = vmatpush2.msra.mxu0 0.0
      %481 = vmatprep.subr.mxu0 0.0
      %482 = vmatpush2.msra.mxu0 0.0
      %483 = vmatprep.subr.mxu0 0.0
      %484 = vmatpush2.msra.mxu0 0.0
      %485 = vmatprep.subr.mxu0 0.0
      %486 = vmatpush2.msra.mxu0 0.0
      %487 = vmatprep.subr.mxu0 0.0
      %488 = vmatpush2.msra.mxu0 0.0
      %489 = vmatprep.subr.mxu0 0.0
      %490 = vmatpush2.msra.mxu0 0.0
      %491 = vmatprep.subr.mxu0 0.0
      %492 = vmatpush2.msra.mxu0 0.0
      %493 = vmatprep.mubr.f32.mxu0 0.0
      %494 = vmatmul.mubr.f32.gmra.mxu0 %v427
      %v495 = vpop.f32.mrf.mxu0
      %v496 = vadd.f32 %v423, %v495
      %v497 = vpop.f32.mrf.mxu0
      %v498 = vadd.f32 %v423, %v497
      %499 = vdwg.mxu0
      %v500 = vld [vmem:[%s3] sm:$0xff]
      %v501 = vld [vmem:[%s4] sm:$0x1]
      %v502 = vld [vmem:[%s5] sm:$0xff]
      %v503 = vld [vmem:[%s6] sm:$0xff]
      %v504 = vadd.f32 %v496, %v498
      %505 = vadd.xlane.f32.xlu0 %v504
      %v506 = vpop.xlane.xlu0 %505
      %v507 = vmul.f32 %v506, 0.00390625
      %v508 = vmul.f32 %v500, %v507
      %vm509 = vcmask 15360
      %v510 = vsel %vm509, %v508, 0.0
      %v511 = vrot.slane %v510, 4
      %v512 = vadd.f32 %v510, %v511
      %v513 = vrot.slane %v512, 2
      %v514 = vadd.f32 %v512, %v513
      %v515 = vrot.slane %v514, 1
      %v516 = vadd.f32 %v514, %v515
      %v517 = vadd.f32 %v516, %v501
      %v518 = vmax.f32 %v517, 0.0
      %v519 = vlaneseq
      %v520 = vshrl.u32 %v519, 7
      %v521 = vsub.s32 0, %v520
      %v522 = vrot.slane %v518, %v521
      %v523 = vmul.f32 %v502, %v522
      %v524 = vsel %vm509, %v523, 0.0
      %525 = vadd.xlane.f32.xlu0 %v524
      %v526 = vpop.xlane.xlu0 %525
      %v527 = vadd.f32 %v526, %v503
      %v528 = vxor.u32 %v527, 2147483648
      %v529 = vmul.f32 %v528, 1.442695
      %v530 = vpow.pop %v529
      %v531 = vadd.f32 %v530, 1.0
      %v532 = vrcp.pop %v531
      %v533 = vmul.f32 1.0, %v532
      %535 = vset.pattern.permute.xlu0 0
      %536 = vperm.xlu0 %535, %v533
      %v537 = vpop.permute.xlu0 %536
      %v539 = vmul.f32 %v496, %v537
      %v540 = vmul.f32 %v498, %v537
      %v541 = vmax.f32 %v539, 0.0
      %v542 = vmax.f32 %v540, 0.0
      %543 = vst [vmem:[%s278] sm:$0xff] %v541
      %544 = vst [vmem:[%s278 + $0x8] sm:$0xff] %v542
      %p545 = scmp.lt.s32.totalorder %s18, 1
      %s546 = scalar_select %p545, %s18, 1
      %s547 = smul.addr %s546, 2
      %s548 = smul.addr %s547, 8
      %s549 = scalar_lea.vmem %s7, %s548
      // Predicated region
      $region49: #{se_resnet2d_forward.4} parent=47 // pred_check
        %p550 = pneg %p188
      $region50: #{se_resnet2d_forward.4} parent=47 // pred_check_branch
        %552 = sbr.rel (%p550) target = $region52
      $region51: #{se_resnet2d_forward.4} parent=47 // pred_region
        _
      $region52: #{se_resnet2d_forward.4} parent=47 // pred_fallthru
        _
    $region48: #{se_resnet2d_forward.4} parent=5 // pred_fallthru
      _
    %p553 = scmp.le.s32.totalorder 2, %s13
    // Predicated region
    $region53: #{se_resnet2d_forward.4} parent=5 // pred_check
      %p554 = pneg %p553
    $region54: #{se_resnet2d_forward.4} parent=5 // pred_check_branch
      %556 = sbr.rel (%p554) target = $region56
    $region55: #{se_resnet2d_forward.4} parent=5 // pred_region
      %s557 = ssub.s32 %s13, 2
      // Predicated region
      $region57: #{se_resnet2d_forward.4} parent=55 // pred_check
        %p558 = pneg %p194
      $region58: #{se_resnet2d_forward.4} parent=55 // pred_check_branch
        %560 = sbr.rel (%p558) target = $region60
      $region59: #{se_resnet2d_forward.4} parent=55 // pred_region
        %p561 = scmp.lt.s32.totalorder %s19, 1
        %s562 = scalar_select %p561, %s19, 1
        %s563 = smul.addr %s562, 2
        %s564 = smul.addr %s563, 8
        %s565 = scalar_lea.vmem %s7, %s564
      $region60: #{se_resnet2d_forward.4} parent=55 // pred_fallthru
        _
    $region56: #{se_resnet2d_forward.4} parent=5 // pred_fallthru
      _
  $region6: #{se_resnet2d_forward.4} parent=0 // loop_footer
    %s17 = sadd.s32 1, %s13
  $region7: #{se_resnet2d_forward.4} parent=0 // loop_footer_branch
    %12 = sbr.rel target = $region3
  $region8: #{se_resnet2d_forward.4} parent=0 // loop_exit
    _

// kernel: se_resnet2d_forward.5
$region0: #{se_resnet2d_forward.5}
  #allocation0 [shape = 'u32[]', space=smem, size = 0x4, offset = 0x4, fixed_abs, tag = 'smem constant byte address 0x4 - core index']
  #allocation1 [shape = 'u32[144,128]{1,0:T(1,128)}', space=vmem, size = 0x12000, scoped, tag = 'internal scratch']
  %s0 = inlined_call_operand.vmem [shape: f32[2,8,256], index: 0, kind: input, shape index: {}]
  %s1 = inlined_call_operand.vmem [shape: f32[8,72], index: 1, kind: input, shape index: {}]
  %s2 = inlined_call_operand.vmem [shape: f32[8,1], index: 2, kind: input, shape index: {}]
  %s3 = inlined_call_operand.vmem [shape: f32[8,72], index: 3, kind: input, shape index: {}]
  %s4 = inlined_call_operand.vmem [shape: f32[2,8,256], index: 4, kind: output, shape index: {}]
  %s5 = sld [smem:[#allocation0]]
  $region49: #{se_resnet2d_forward.5} parent=0
    _
  %s7 = ssub.s32 1, %s5
  %s8 = scalar_select 0, %s7, %s5
  loop: start=0, step=1, limit=4
  $region2: #{se_resnet2d_forward.5} parent=0 // loop_pre_header
    _
  $region3: #{se_resnet2d_forward.5} parent=0 // loop_header
    %s10 = sphi 0, %s14
    %p11 = scmp.ge.s32.totalorder %s10, 4
    %s20 = sphi 0, %s22
    %s23 = sphi 0, %s20
    %s24 = sphi 0, %s23
    %s40 = sphi 0, %s24
    %s44 = sphi 0, %s44
    %s46 = sphi 0, %s44
    %s47 = sphi 0, %s46
    %s61 = sphi 0, %s47
    %s65 = sphi 0, %s65
    %s67 = sphi 0, %s65
    %s68 = sphi 0, %s67
    %s82 = sphi 0, %s68
    %s86 = sphi 0, %s86
    %s88 = sphi 0, %s86
    %s89 = sphi 0, %s88
    %s103 = sphi 0, %s89
    %s109 = sphi 0, %s111
    %s112 = sphi 0, %s109
    %s113 = sphi 0, %s112
    %s129 = sphi 0, %s113
  $region4: #{se_resnet2d_forward.5} parent=0 // loop_header_branch
    %13 = sbr.rel (%p11) target = $region8
  $region5: #{se_resnet2d_forward.5} parent=0 // loop_body
    %s15 = ssub.s32 %s10, 1
    %s16 = ssub.s32 %s10, 2
    %s17 = sadd.s32 %s10, 1
    %s18 = ssub.s32 %s10, %s17
    %p19 = scmp.eq.s32.totalorder %s18, 0
    %s21 = sadd.s32 %s20, 1
    %s22 = scalar_select %p19, %s20, %s21
    %p25 = pneg %p19
    %p26 = scmp.eq.s32.totalorder %s10, 1
    %p27 = por %p25, %p26
    %p28 = scmp.ne.s32.totalorder %s20, %s23
    %p29 = scmp.eq.s32.totalorder %s10, 0
    %p30 = por %p28, %p29
    %p31 = scmp.ne.s32.totalorder %s20, %s23
    %p32 = scmp.eq.s32.totalorder %s15, 1
    %p33 = por %p31, %p32
    %p34 = scmp.ne.s32.totalorder %s23, %s24
    %p35 = scmp.eq.s32.totalorder %s15, 0
    %p36 = por %p34, %p35
    %p37 = scmp.ne.s32.totalorder %s23, %s24
    %p38 = scmp.eq.s32.totalorder %s16, 1
    %p39 = por %p37, %p38
    %p41 = scmp.ne.s32.totalorder %s24, %s40
    %p42 = scmp.eq.s32.totalorder %s16, 0
    %p43 = por %p41, %p42
    %s45 = sadd.s32 %s44, 1
    %p48 = scmp.eq.s32.totalorder %s10, 1
    %p49 = scmp.ne.s32.totalorder %s44, %s46
    %p50 = scmp.eq.s32.totalorder %s10, 0
    %p51 = por %p49, %p50
    %p52 = scmp.ne.s32.totalorder %s44, %s46
    %p53 = scmp.eq.s32.totalorder %s15, 1
    %p54 = por %p52, %p53
    %p55 = scmp.ne.s32.totalorder %s46, %s47
    %p56 = scmp.eq.s32.totalorder %s15, 0
    %p57 = por %p55, %p56
    %p58 = scmp.ne.s32.totalorder %s46, %s47
    %p59 = scmp.eq.s32.totalorder %s16, 1
    %p60 = por %p58, %p59
    %p62 = scmp.ne.s32.totalorder %s47, %s61
    %p63 = scmp.eq.s32.totalorder %s16, 0
    %p64 = por %p62, %p63
    %s66 = sadd.s32 %s65, 1
    %p69 = scmp.eq.s32.totalorder %s10, 1
    %p70 = scmp.ne.s32.totalorder %s65, %s67
    %p71 = scmp.eq.s32.totalorder %s10, 0
    %p72 = por %p70, %p71
    %p73 = scmp.ne.s32.totalorder %s65, %s67
    %p74 = scmp.eq.s32.totalorder %s15, 1
    %p75 = por %p73, %p74
    %p76 = scmp.ne.s32.totalorder %s67, %s68
    %p77 = scmp.eq.s32.totalorder %s15, 0
    %p78 = por %p76, %p77
    %p79 = scmp.ne.s32.totalorder %s67, %s68
    %p80 = scmp.eq.s32.totalorder %s16, 1
    %p81 = por %p79, %p80
    %p83 = scmp.ne.s32.totalorder %s68, %s82
    %p84 = scmp.eq.s32.totalorder %s16, 0
    %p85 = por %p83, %p84
    %s87 = sadd.s32 %s86, 1
    %p90 = scmp.eq.s32.totalorder %s10, 1
    %p91 = scmp.ne.s32.totalorder %s86, %s88
    %p92 = scmp.eq.s32.totalorder %s10, 0
    %p93 = por %p91, %p92
    %p94 = scmp.ne.s32.totalorder %s86, %s88
    %p95 = scmp.eq.s32.totalorder %s15, 1
    %p96 = por %p94, %p95
    %p97 = scmp.ne.s32.totalorder %s88, %s89
    %p98 = scmp.eq.s32.totalorder %s15, 0
    %p99 = por %p97, %p98
    %p100 = scmp.ne.s32.totalorder %s88, %s89
    %p101 = scmp.eq.s32.totalorder %s16, 1
    %p102 = por %p100, %p101
    %p104 = scmp.ne.s32.totalorder %s89, %s103
    %p105 = scmp.eq.s32.totalorder %s16, 0
    %p106 = por %p104, %p105
    %s107 = ssub.s32 %s10, %s17
    %p108 = scmp.eq.s32.totalorder %s107, 0
    %s110 = sadd.s32 %s109, 1
    %s111 = scalar_select %p108, %s109, %s110
    %p114 = pneg %p108
    %p115 = scmp.eq.s32.totalorder %s10, 1
    %p116 = por %p114, %p115
    %p117 = scmp.ne.s32.totalorder %s109, %s112
    %p118 = scmp.eq.s32.totalorder %s10, 0
    %p119 = por %p117, %p118
    %p120 = scmp.ne.s32.totalorder %s109, %s112
    %p121 = scmp.eq.s32.totalorder %s15, 1
    %p122 = por %p120, %p121
    %p123 = scmp.ne.s32.totalorder %s112, %s113
    %p124 = scmp.eq.s32.totalorder %s15, 0
    %p125 = por %p123, %p124
    %p126 = scmp.ne.s32.totalorder %s112, %s113
    %p127 = scmp.eq.s32.totalorder %s16, 1
    %p128 = por %p126, %p127
    %p130 = scmp.ne.s32.totalorder %s113, %s129
    %p131 = scmp.eq.s32.totalorder %s16, 0
    %p132 = por %p130, %p131
    %p133 = scmp.le.s32.totalorder 1, %s10
    %p134 = scmp.lt.s32.totalorder %s10, 3
    %p135 = pnand %p133, %p134
    %p136 = pneg %p135
    // Predicated region
    $region9: #{se_resnet2d_forward.5} parent=5 // pred_check
      _
    $region10: #{se_resnet2d_forward.5} parent=5 // pred_check_branch
      %138 = sbr.rel (%p135) target = $region12
    $region11: #{se_resnet2d_forward.5} parent=5 // pred_region
      %s139 = ssub.s32 %s10, 1
      // Predicated region
      $region13: #{se_resnet2d_forward.5} parent=11 // pred_check
        %p140 = pneg %p57
      $region14: #{se_resnet2d_forward.5} parent=11 // pred_check_branch
        %142 = sbr.rel (%p140) target = $region16
      $region15: #{se_resnet2d_forward.5} parent=11 // pred_region
        _
      $region16: #{se_resnet2d_forward.5} parent=11 // pred_fallthru
        _
      // Predicated region
      $region17: #{se_resnet2d_forward.5} parent=11 // pred_check
        %p143 = pneg %p78
      $region18: #{se_resnet2d_forward.5} parent=11 // pred_check_branch
        %145 = sbr.rel (%p143) target = $region20
      $region19: #{se_resnet2d_forward.5} parent=11 // pred_region
        _
      $region20: #{se_resnet2d_forward.5} parent=11 // pred_fallthru
        _
      // Predicated region
      $region21: #{se_resnet2d_forward.5} parent=11 // pred_check
        %p146 = pneg %p99
      $region22: #{se_resnet2d_forward.5} parent=11 // pred_check_branch
        %148 = sbr.rel (%p146) target = $region24
      $region23: #{se_resnet2d_forward.5} parent=11 // pred_region
        _
      $region24: #{se_resnet2d_forward.5} parent=11 // pred_fallthru
        _
    $region12: #{se_resnet2d_forward.5} parent=5 // pred_fallthru
      _
    %p149 = scmp.lt.s32.totalorder %s10, 2
    // Predicated region
    $region25: #{se_resnet2d_forward.5} parent=5 // pred_check
      %p150 = pneg %p149
    $region26: #{se_resnet2d_forward.5} parent=5 // pred_check_branch
      %152 = sbr.rel (%p150) target = $region28
    $region27: #{se_resnet2d_forward.5} parent=5 // pred_region
      // Predicated region
      $region29: #{se_resnet2d_forward.5} parent=27 // pred_check
        %p153 = pneg %p30
      $region30: #{se_resnet2d_forward.5} parent=27 // pred_check_branch
        %155 = sbr.rel (%p153) target = $region32
      $region31: #{se_resnet2d_forward.5} parent=27 // pred_region
        %p156 = scmp.lt.s32.totalorder %s10, 1
        %s157 = scalar_select %p156, %s10, 1
        %s158 = smul.addr %s157, 2
        %s159 = smul.addr %s158, 8
        %s160 = scalar_lea.vmem %s0, %s159
      $region32: #{se_resnet2d_forward.5} parent=27 // pred_fallthru
        _
    $region28: #{se_resnet2d_forward.5} parent=5 // pred_fallthru
      _
    %p161 = scmp.le.s32.totalorder 1, %s10
    %p162 = scmp.lt.s32.totalorder %s10, 3
    %p163 = pnand %p161, %p162
    %p164 = pneg %p163
    // Predicated region
    $region33: #{se_resnet2d_forward.5} parent=5 // pred_check
      _
    $region34: #{se_resnet2d_forward.5} parent=5 // pred_check_branch
      %166 = sbr.rel (%p163) target = $region36
    $region35: #{se_resnet2d_forward.5} parent=5 // pred_region
      %s167 = ssub.s32 %s10, 1
      %p168 = scmp.lt.s32.totalorder %s15, 1
      %s169 = scalar_select %p168, %s15, 1
      %s170 = smul.addr %s169, 2
      %s171 = smul.addr %s170, 8
      %s172 = scalar_lea.vmem %s0, %s171
      %p173 = pneg %p36
      %p174 = pneg %p33
      %p175 = pneg %p57
      %p176 = pneg %p54
      %p177 = pneg %p78
      %p178 = pneg %p75
      %p179 = pneg %p99
      %p180 = pneg %p96
      %p181 = pneg %p125
      %p182 = pneg %p122
      %p183 = scmp.lt.s32.totalorder %s15, 1
      %s184 = scalar_select %p183, %s15, 1
      %s185 = smul.addr %s184, 2
      %s186 = smul.addr %s185, 8
      %s187 = scalar_lea.vmem %s4, %s186
      %p188 = scmp.lt.s32.totalorder %s15, 1
      %s189 = scalar_select %p188, %s15, 1
      %s190 = smul.addr %s189, 2
      %s191 = smul.addr %s190, 8
      %s192 = scalar_lea.vmem %s0, %s191
      %p193 = scmp.lt.s32.totalorder %s15, 1
      %s194 = scalar_select %p193, %s15, 1
      %s195 = smul.addr %s194, 2
      %s196 = smul.addr %s195, 8
      %s197 = scalar_lea.vmem %s4, %s196
      %v198 = vld [vmem:[%s192] sm:$0xff]
      %v199 = vld [vmem:[%s192 + $0x8] sm:$0xff]
      %v200 = vld [vmem:[%s1] sm:$0xff]
      %v201 = vld [vmem:[%s2] sm:$0xff]
      %v202 = vlaneseq
      %v203 = vand.u32 %v202, 127
      %v204 = vadd.s32 %v203, 128
      %vm205 = vcmp.lt.s32.totalorder %v203, 0
      %v206 = vsub.s32 0, %v203
      %v207 = vsel %vm205, %v206, %v203
      %v208 = vshrl.u32 %v207, 4
      %v209 = vand.u32 %v207, 15
      %v210 = vsub.s32 0, %v209
      %v211 = vsel %vm205, %v210, %v209
      %vm212 = vcmp.lt.s32.totalorder %v204, 0
      %v213 = vsub.s32 0, %v204
      %v214 = vsel %vm212, %v213, %v204
      %v215 = vshrl.u32 %v214, 4
      %v216 = vand.u32 %v214, 15
      %v217 = vsub.s32 0, %v216
      %v218 = vsel %vm212, %v217, %v216
      %vm219 = vcmp.ne.s32.totalorder %v211, 0
      %vm220 = vcmp.ne.s32.totalorder %v218, 0
      %vm221 = vcmp.lt.s32.totalorder %v211, 0
      %vm222 = vcmp.lt.s32.totalorder %v218, 0
      %vm223 = vmand %vm221, %vm219
      %vm224 = vmand %vm222, %vm220
      %v225 = vadd.s32 %v211, 16
      %v226 = vadd.s32 %v218, 16
      %v227 = vsel %vm223, %v225, %v211
      %v228 = vsel %vm224, %v226, %v218
      %vm229 = vcmp.lt.s32.totalorder %v227, 1
      %vm230 = vcmp.lt.s32.totalorder %v228, 1
      %233 = vrot.lane.b32.xlu0 %v198, 113
      %v234 = vpop.permute.xlu0 %233
      %235 = vrot.lane.b32.xlu0 %v199, 113
      %v236 = vpop.permute.xlu0 %235
      %vm237 = vcmask 924672
      %v238 = vsel %vm237, %v234, %v236
      %v242 = vsel %vm237, %v236, %v234
      %243 = vrot.lane.b32.xlu0 %v199, 1
      %v244 = vpop.permute.xlu0 %243
      %246 = vrot.lane.b32.xlu0 %v198, 1
      %v247 = vpop.permute.xlu0 %246
      %vm248 = vcmask 7168
      %v249 = vsel %vm248, %v247, %v244
      %v252 = vsel %vm248, %v244, %v247
      %v253 = vsel %vm229, %v238, %v252
      %v254 = vsel %vm230, %v242, %v249
      %256 = vrot.lane.b32.xlu0 %v254, 16
      %v257 = vpop.permute.xlu0 %256
      %260 = vrot.lane.b32.xlu0 %v253, 16
      %v261 = vpop.permute.xlu0 %260
      %vm262 = vcmask 130048
      %v263 = vsel %vm262, %v261, %v257
      %v266 = vsel %vm262, %v257, %v261
      %267 = vrot.lane.b32.xlu0 %v253, 112
      %v268 = vpop.permute.xlu0 %267
      %269 = vrot.lane.b32.xlu0 %v254, 112
      %v270 = vpop.permute.xlu0 %269
      %vm271 = vcmask 916480
      %v272 = vsel %vm271, %v268, %v270
      %v276 = vsel %vm271, %v270, %v268
      %277 = vrot.lane.b32.xlu0 %v199, 16
      %v278 = vpop.permute.xlu0 %277
      %280 = vrot.lane.b32.xlu0 %v198, 16
      %v281 = vpop.permute.xlu0 %280
      %v282 = vsel %vm262, %v281, %v278
      %v285 = vsel %vm262, %v278, %v281
      %286 = vrot.lane.b32.xlu0 %v198, 112
      %v287 = vpop.permute.xlu0 %286
      %288 = vrot.lane.b32.xlu0 %v199, 112
      %v289 = vpop.permute.xlu0 %288
      %v290 = vsel %vm271, %v287, %v289
      %v294 = vsel %vm271, %v289, %v287
      %vm295 = vcmp.ge.s32.totalorder %v227, 15
      %vm296 = vcmp.ge.s32.totalorder %v228, 15
      %297 = vrot.lane.b32.xlu0 %v199, 15
      %v298 = vpop.permute.xlu0 %297
      %300 = vrot.lane.b32.xlu0 %v198, 15
      %v301 = vpop.permute.xlu0 %300
      %vm302 = vcmask 121856
      %v303 = vsel %vm302, %v301, %v298
      %v306 = vsel %vm302, %v298, %v301
      %307 = vrot.lane.b32.xlu0 %v198, 127
      %v308 = vpop.permute.xlu0 %307
      %309 = vrot.lane.b32.xlu0 %v199, 127
      %v310 = vpop.permute.xlu0 %309
      %vm311 = vcmask 1039360
      %v312 = vsel %vm311, %v308, %v310
      %v316 = vsel %vm311, %v310, %v308
      %v317 = vsel %vm295, %v306, %v312
      %v318 = vsel %vm296, %v303, %v316
      %320 = vrot.lane.b32.xlu0 %v318, 16
      %v321 = vpop.permute.xlu0 %320
      %324 = vrot.lane.b32.xlu0 %v317, 16
      %v325 = vpop.permute.xlu0 %324
      %v326 = vsel %vm262, %v325, %v321
      %v329 = vsel %vm262, %v321, %v325
      %330 = vrot.lane.b32.xlu0 %v317, 112
      %v331 = vpop.permute.xlu0 %330
      %332 = vrot.lane.b32.xlu0 %v318, 112
      %v333 = vpop.permute.xlu0 %332
      %v334 = vsel %vm271, %v331, %v333
      %v338 = vsel %vm271, %v333, %v331
      %340 = vset.pattern.permute.xlu0 0
      %341 = vperm.xlu0 %340, %v201
      %v342 = vpop.permute.xlu0 %341
      %vm344 = vcmask 588800
      %v346 = vsel %vm344, %v200, 0
      %348 = vmatprep.subr.mxu0 0.0
      %349 = vmatpush1.msra.mxu0 0.0
      %350 = vmatprep.subr.mxu0 0.0
      %351 = vmatpush1.msra.mxu0 0.0
      %352 = vmatprep.subr.mxu0 0.0
      %353 = vmatpush1.msra.mxu0 0.0
      %354 = vmatprep.subr.mxu0 0.0
      %355 = vmatpush1.msra.mxu0 0.0
      %356 = vmatprep.subr.mxu0 0.0
      %357 = vmatpush1.msra.mxu0 0.0
      %358 = vmatprep.subr.mxu0 0.0
      %359 = vmatpush1.msra.mxu0 0.0
      %360 = vmatprep.subr.mxu0 0.0
      %361 = vmatpush1.msra.mxu0 0.0
      %362 = vmatprep.subr.mxu0 %v338
      %363 = vmatpush1.msra.mxu0 %v334
      %364 = vmatprep.subr.mxu0 %v318
      %365 = vmatpush1.msra.mxu0 %v317
      %366 = vmatprep.subr.mxu0 %v326
      %367 = vmatpush1.msra.mxu0 %v329
      %368 = vmatprep.subr.mxu0 %v294
      %369 = vmatpush1.msra.mxu0 %v290
      %370 = vmatprep.subr.mxu0 %v199
      %371 = vmatpush1.msra.mxu0 %v198
      %372 = vmatprep.subr.mxu0 %v282
      %373 = vmatpush1.msra.mxu0 %v285
      %374 = vmatprep.subr.mxu0 %v276
      %375 = vmatpush1.msra.mxu0 %v272
      %376 = vmatprep.subr.mxu0 %v254
      %377 = vmatpush1.msra.mxu0 %v253
      %378 = vmatprep.subr.mxu0 %v263
      %379 = vmatpush1.msra.mxu0 %v266
      %380 = vmatprep.subr.mxu0 0.0
      %381 = vmatpush2.msra.mxu0 0.0
      %382 = vmatprep.subr.mxu0 0.0
      %383 = vmatpush2.msra.mxu0 0.0
      %384 = vmatprep.subr.mxu0 0.0
      %385 = vmatpush2.msra.mxu0 0.0
      %386 = vmatprep.subr.mxu0 0.0
      %387 = vmatpush2.msra.mxu0 0.0
      %388 = vmatprep.subr.mxu0 0.0
      %389 = vmatpush2.msra.mxu0 0.0
      %390 = vmatprep.subr.mxu0 0.0
      %391 = vmatpush2.msra.mxu0 0.0
      %392 = vmatprep.subr.mxu0 0.0
      %393 = vmatpush2.msra.mxu0 0.0
      %394 = vmatprep.subr.mxu0 0.0
      %395 = vmatpush2.msra.mxu0 0.0
      %396 = vmatprep.subr.mxu0 0.0
      %397 = vmatpush2.msra.mxu0 0.0
      %398 = vmatprep.subr.mxu0 0.0
      %399 = vmatpush2.msra.mxu0 0.0
      %400 = vmatprep.subr.mxu0 0.0
      %401 = vmatpush2.msra.mxu0 0.0
      %402 = vmatprep.subr.mxu0 0.0
      %403 = vmatpush2.msra.mxu0 0.0
      %404 = vmatprep.subr.mxu0 0.0
      %405 = vmatpush2.msra.mxu0 0.0
      %406 = vmatprep.subr.mxu0 0.0
      %407 = vmatpush2.msra.mxu0 0.0
      %408 = vmatprep.subr.mxu0 0.0
      %409 = vmatpush2.msra.mxu0 0.0
      %410 = vmatprep.subr.mxu0 0.0
      %411 = vmatpush2.msra.mxu0 0.0
      %412 = vmatprep.mubr.f32.mxu0 0.0
      %413 = vmatmul.mubr.f32.gmra.mxu0 %v346
      %v414 = vpop.f32.mrf.mxu0
      %v415 = vadd.f32 %v342, %v414
      %v416 = vpop.f32.mrf.mxu0
      %v417 = vadd.f32 %v342, %v416
      %418 = vdwg.mxu0
      %v419 = vmax.f32 %v415, 0.0
      %v420 = vmax.f32 %v417, 0.0
      %v421 = vld [vmem:[%s3] sm:$0xff]
      %424 = vrot.lane.b32.xlu0 %v419, 113
      %v425 = vpop.permute.xlu0 %424
      %426 = vrot.lane.b32.xlu0 %v420, 113
      %v427 = vpop.permute.xlu0 %426
      %v428 = vsel %vm237, %v425, %v427
      %v432 = vsel %vm237, %v427, %v425
      %433 = vrot.lane.b32.xlu0 %v420, 1
      %v434 = vpop.permute.xlu0 %433
      %436 = vrot.lane.b32.xlu0 %v419, 1
      %v437 = vpop.permute.xlu0 %436
      %v438 = vsel %vm248, %v437, %v434
      %v441 = vsel %vm248, %v434, %v437
      %v442 = vsel %vm229, %v428, %v441
      %v443 = vsel %vm230, %v432, %v438
      %445 = vrot.lane.b32.xlu0 %v443, 16
      %v446 = vpop.permute.xlu0 %445
      %449 = vrot.lane.b32.xlu0 %v442, 16
      %v450 = vpop.permute.xlu0 %449
      %v451 = vsel %vm262, %v450, %v446
      %v454 = vsel %vm262, %v446, %v450
      %455 = vrot.lane.b32.xlu0 %v442, 112
      %v456 = vpop.permute.xlu0 %455
      %457 = vrot.lane.b32.xlu0 %v443, 112
      %v458 = vpop.permute.xlu0 %457
      %v459 = vsel %vm271, %v456, %v458
      %v463 = vsel %vm271, %v458, %v456
      %464 = vrot.lane.b32.xlu0 %v420, 16
      %v465 = vpop.permute.xlu0 %464
      %467 = vrot.lane.b32.xlu0 %v419, 16
      %v468 = vpop.permute.xlu0 %467
      %v469 = vsel %vm262, %v468, %v465
      %v472 = vsel %vm262, %v465, %v468
      %473 = vrot.lane.b32.xlu0 %v419, 112
      %v474 = vpop.permute.xlu0 %473
      %475 = vrot.lane.b32.xlu0 %v420, 112
      %v476 = vpop.permute.xlu0 %475
      %v477 = vsel %vm271, %v474, %v476
      %v481 = vsel %vm271, %v476, %v474
      %482 = vrot.lane.b32.xlu0 %v420, 15
      %v483 = vpop.permute.xlu0 %482
      %485 = vrot.lane.b32.xlu0 %v419, 15
      %v486 = vpop.permute.xlu0 %485
      %v487 = vsel %vm302, %v486, %v483
      %v490 = vsel %vm302, %v483, %v486
      %491 = vrot.lane.b32.xlu0 %v419, 127
      %v492 = vpop.permute.xlu0 %491
      %493 = vrot.lane.b32.xlu0 %v420, 127
      %v494 = vpop.permute.xlu0 %493
      %v495 = vsel %vm311, %v492, %v494
      %v499 = vsel %vm311, %v494, %v492
      %v500 = vsel %vm295, %v490, %v495
      %v501 = vsel %vm296, %v487, %v499
      %503 = vrot.lane.b32.xlu0 %v501, 16
      %v504 = vpop.permute.xlu0 %503
      %507 = vrot.lane.b32.xlu0 %v500, 16
      %v508 = vpop.permute.xlu0 %507
      %v509 = vsel %vm262, %v508, %v504
      %v512 = vsel %vm262, %v504, %v508
      %513 = vrot.lane.b32.xlu0 %v500, 112
      %v514 = vpop.permute.xlu0 %513
      %515 = vrot.lane.b32.xlu0 %v501, 112
      %v516 = vpop.permute.xlu0 %515
      %v517 = vsel %vm271, %v514, %v516
      %v521 = vsel %vm271, %v516, %v514
      %v523 = vsel %vm344, %v421, 0
      %525 = vmatprep.subr.mxu0 0.0
      %526 = vmatpush1.msra.mxu0 0.0
      %527 = vmatprep.subr.mxu0 0.0
      %528 = vmatpush1.msra.mxu0 0.0
      %529 = vmatprep.subr.mxu0 0.0
      %530 = vmatpush1.msra.mxu0 0.0
      %531 = vmatprep.subr.mxu0 0.0
      %532 = vmatpush1.msra.mxu0 0.0
      %533 = vmatprep.subr.mxu0 0.0
      %534 = vmatpush1.msra.mxu0 0.0
      %535 = vmatprep.subr.mxu0 0.0
      %536 = vmatpush1.msra.mxu0 0.0
      %537 = vmatprep.subr.mxu0 0.0
      %538 = vmatpush1.msra.mxu0 0.0
      %539 = vmatprep.subr.mxu0 %v521
      %540 = vmatpush1.msra.mxu0 %v517
      %541 = vmatprep.subr.mxu0 %v501
      %542 = vmatpush1.msra.mxu0 %v500
      %543 = vmatprep.subr.mxu0 %v509
      %544 = vmatpush1.msra.mxu0 %v512
      %545 = vmatprep.subr.mxu0 %v481
      %546 = vmatpush1.msra.mxu0 %v477
      %547 = vmatprep.subr.mxu0 %v420
      %548 = vmatpush1.msra.mxu0 %v419
      %549 = vmatprep.subr.mxu0 %v469
      %550 = vmatpush1.msra.mxu0 %v472
      %551 = vmatprep.subr.mxu0 %v463
      %552 = vmatpush1.msra.mxu0 %v459
      %553 = vmatprep.subr.mxu0 %v443
      %554 = vmatpush1.msra.mxu0 %v442
      %555 = vmatprep.subr.mxu0 %v451
      %556 = vmatpush1.msra.mxu0 %v454
      %557 = vmatprep.subr.mxu0 0.0
      %558 = vmatpush2.msra.mxu0 0.0
      %559 = vmatprep.subr.mxu0 0.0
      %560 = vmatpush2.msra.mxu0 0.0
      %561 = vmatprep.subr.mxu0 0.0
      %562 = vmatpush2.msra.mxu0 0.0
      %563 = vmatprep.subr.mxu0 0.0
      %564 = vmatpush2.msra.mxu0 0.0
      %565 = vmatprep.subr.mxu0 0.0
      %566 = vmatpush2.msra.mxu0 0.0
      %567 = vmatprep.subr.mxu0 0.0
      %568 = vmatpush2.msra.mxu0 0.0
      %569 = vmatprep.subr.mxu0 0.0
      %570 = vmatpush2.msra.mxu0 0.0
      %571 = vmatprep.subr.mxu0 0.0
      %572 = vmatpush2.msra.mxu0 0.0
      %573 = vmatprep.subr.mxu0 0.0
      %574 = vmatpush2.msra.mxu0 0.0
      %575 = vmatprep.subr.mxu0 0.0
      %576 = vmatpush2.msra.mxu0 0.0
      %577 = vmatprep.subr.mxu0 0.0
      %578 = vmatpush2.msra.mxu0 0.0
      %579 = vmatprep.subr.mxu0 0.0
      %580 = vmatpush2.msra.mxu0 0.0
      %581 = vmatprep.subr.mxu0 0.0
      %582 = vmatpush2.msra.mxu0 0.0
      %583 = vmatprep.subr.mxu0 0.0
      %584 = vmatpush2.msra.mxu0 0.0
      %585 = vmatprep.subr.mxu0 0.0
      %586 = vmatpush2.msra.mxu0 0.0
      %587 = vmatprep.subr.mxu0 0.0
      %588 = vmatpush2.msra.mxu0 0.0
      %589 = vmatprep.mubr.f32.mxu0 0.0
      %590 = vmatmul.mubr.f32.gmra.mxu0 %v523
      %v591 = vpop.f32.mrf.mxu0
      %v592 = vadd.f32 %v198, %v591
      %v593 = vpop.f32.mrf.mxu0
      %v594 = vadd.f32 %v199, %v593
      %595 = vdwg.mxu0
      %596 = vst [vmem:[%s197] sm:$0xff] %v592
      %597 = vst [vmem:[%s197 + $0x8] sm:$0xff] %v594
      %p598 = scmp.lt.s32.totalorder %s15, 1
      %s599 = scalar_select %p598, %s15, 1
      %s600 = smul.addr %s599, 2
      %s601 = smul.addr %s600, 8
      %s602 = scalar_lea.vmem %s4, %s601
      // Predicated region
      $region37: #{se_resnet2d_forward.5} parent=35 // pred_check
        %p603 = pneg %p122
      $region38: #{se_resnet2d_forward.5} parent=35 // pred_check_branch
        %605 = sbr.rel (%p603) target = $region40
      $region39: #{se_resnet2d_forward.5} parent=35 // pred_region
        _
      $region40: #{se_resnet2d_forward.5} parent=35 // pred_fallthru
        _
    $region36: #{se_resnet2d_forward.5} parent=5 // pred_fallthru
      _
    %p606 = scmp.le.s32.totalorder 2, %s10
    // Predicated region
    $region41: #{se_resnet2d_forward.5} parent=5 // pred_check
      %p607 = pneg %p606
    $region42: #{se_resnet2d_forward.5} parent=5 // pred_check_branch
      %609 = sbr.rel (%p607) target = $region44
    $region43: #{se_resnet2d_forward.5} parent=5 // pred_region
      %s610 = ssub.s32 %s10, 2
      // Predicated region
      $region45: #{se_resnet2d_forward.5} parent=43 // pred_check
        %p611 = pneg %p128
      $region46: #{se_resnet2d_forward.5} parent=43 // pred_check_branch
        %613 = sbr.rel (%p611) target = $region48
      $region47: #{se_resnet2d_forward.5} parent=43 // pred_region
        %p614 = scmp.lt.s32.totalorder %s16, 1
        %s615 = scalar_select %p614, %s16, 1
        %s616 = smul.addr %s615, 2
        %s617 = smul.addr %s616, 8
        %s618 = scalar_lea.vmem %s4, %s617
      $region48: #{se_resnet2d_forward.5} parent=43 // pred_fallthru
        _
    $region44: #{se_resnet2d_forward.5} parent=5 // pred_fallthru
      _
  $region6: #{se_resnet2d_forward.5} parent=0 // loop_footer
    %s14 = sadd.s32 1, %s10
  $region7: #{se_resnet2d_forward.5} parent=0 // loop_footer_branch
    %9 = sbr.rel target = $region3
  $region8: #{se_resnet2d_forward.5} parent=0 // loop_exit
    _

// kernel: se_resnet2d_forward.6
$region0: #{se_resnet2d_forward.6}
  #allocation0 [shape = 'u32[]', space=smem, size = 0x4, offset = 0x4, fixed_abs, tag = 'smem constant byte address 0x4 - core index']
  #allocation1 [shape = 'u32[144,128]{1,0:T(1,128)}', space=vmem, size = 0x12000, scoped, tag = 'internal scratch']
  %s0 = inlined_call_operand.vmem [shape: f32[2,8,256], index: 0, kind: input, shape index: {}]
  %s1 = inlined_call_operand.vmem [shape: f32[8,1], index: 1, kind: input, shape index: {}]
  %s2 = inlined_call_operand.vmem [shape: f32[8,1], index: 2, kind: input, shape index: {}]
  %s3 = inlined_call_operand.vmem [shape: f32[8,2], index: 3, kind: input, shape index: {}]
  %s4 = inlined_call_operand.vmem [shape: f32[1,2], index: 4, kind: input, shape index: {}]
  %s5 = inlined_call_operand.vmem [shape: f32[8,2], index: 5, kind: input, shape index: {}]
  %s6 = inlined_call_operand.vmem [shape: f32[8,1], index: 6, kind: input, shape index: {}]
  %s7 = inlined_call_operand.vmem [shape: f32[16,72], index: 7, kind: input, shape index: {}]
  %s8 = inlined_call_operand.vmem [shape: f32[16,1], index: 8, kind: input, shape index: {}]
  %s9 = inlined_call_operand.vmem [shape: f32[16,144], index: 9, kind: input, shape index: {}]
  %s10 = inlined_call_operand.vmem [shape: f32[2,16,256], index: 10, kind: output, shape index: {}]
  %s11 = sld [smem:[#allocation0]]
  $region73: #{se_resnet2d_forward.6} parent=0
    _
  %s13 = ssub.s32 1, %s11
  %s14 = scalar_select 0, %s13, %s11
  loop: start=0, step=1, limit=4
  $region2: #{se_resnet2d_forward.6} parent=0 // loop_pre_header
    _
  $region3: #{se_resnet2d_forward.6} parent=0 // loop_header
    %s16 = sphi 0, %s20
    %p17 = scmp.ge.s32.totalorder %s16, 4
    %s26 = sphi 0, %s28
    %s29 = sphi 0, %s26
    %s30 = sphi 0, %s29
    %s46 = sphi 0, %s30
    %s50 = sphi 0, %s50
    %s52 = sphi 0, %s50
    %s53 = sphi 0, %s52
    %s67 = sphi 0, %s53
    %s71 = sphi 0, %s71
    %s73 = sphi 0, %s71
    %s74 = sphi 0, %s73
    %s88 = sphi 0, %s74
    %s92 = sphi 0, %s92
    %s94 = sphi 0, %s92
    %s95 = sphi 0, %s94
    %s109 = sphi 0, %s95
    %s113 = sphi 0, %s113
    %s115 = sphi 0, %s113
    %s116 = sphi 0, %s115
    %s130 = sphi 0, %s116
    %s134 = sphi 0, %s134
    %s136 = sphi 0, %s134
    %s137 = sphi 0, %s136
    %s151 = sphi 0, %s137
    %s155 = sphi 0, %s155
    %s157 = sphi 0, %s155
    %s158 = sphi 0, %s157
    %s172 = sphi 0, %s158
    %s176 = sphi 0, %s176
    %s178 = sphi 0, %s176
    %s179 = sphi 0, %s178
    %s193 = sphi 0, %s179
    %s197 = sphi 0, %s197
    %s199 = sphi 0, %s197
    %s200 = sphi 0, %s199
    %s214 = sphi 0, %s200
    %s218 = sphi 0, %s218
    %s220 = sphi 0, %s218
    %s221 = sphi 0, %s220
    %s235 = sphi 0, %s221
    %s241 = sphi 0, %s243
    %s244 = sphi 0, %s241
    %s245 = sphi 0, %s244
    %s261 = sphi 0, %s245
  $region4: #{se_resnet2d_forward.6} parent=0 // loop_header_branch
    %19 = sbr.rel (%p17) target = $region8
  $region5: #{se_resnet2d_forward.6} parent=0 // loop_body
    %s21 = ssub.s32 %s16, 1
    %s22 = ssub.s32 %s16, 2
    %s23 = sadd.s32 %s16, 1
    %s24 = ssub.s32 %s16, %s23
    %p25 = scmp.eq.s32.totalorder %s24, 0
    %s27 = sadd.s32 %s26, 1
    %s28 = scalar_select %p25, %s26, %s27
    %p31 = pneg %p25
    %p32 = scmp.eq.s32.totalorder %s16, 1
    %p33 = por %p31, %p32
    %p34 = scmp.ne.s32.totalorder %s26, %s29
    %p35 = scmp.eq.s32.totalorder %s16, 0
    %p36 = por %p34, %p35
    %p37 = scmp.ne.s32.totalorder %s26, %s29
    %p38 = scmp.eq.s32.totalorder %s21, 1
    %p39 = por %p37, %p38
    %p40 = scmp.ne.s32.totalorder %s29, %s30
    %p41 = scmp.eq.s32.totalorder %s21, 0
    %p42 = por %p40, %p41
    %p43 = scmp.ne.s32.totalorder %s29, %s30
    %p44 = scmp.eq.s32.totalorder %s22, 1
    %p45 = por %p43, %p44
    %p47 = scmp.ne.s32.totalorder %s30, %s46
    %p48 = scmp.eq.s32.totalorder %s22, 0
    %p49 = por %p47, %p48
    %s51 = sadd.s32 %s50, 1
    %p54 = scmp.eq.s32.totalorder %s16, 1
    %p55 = scmp.ne.s32.totalorder %s50, %s52
    %p56 = scmp.eq.s32.totalorder %s16, 0
    %p57 = por %p55, %p56
    %p58 = scmp.ne.s32.totalorder %s50, %s52
    %p59 = scmp.eq.s32.totalorder %s21, 1
    %p60 = por %p58, %p59
    %p61 = scmp.ne.s32.totalorder %s52, %s53
    %p62 = scmp.eq.s32.totalorder %s21, 0
    %p63 = por %p61, %p62
    %p64 = scmp.ne.s32.totalorder %s52, %s53
    %p65 = scmp.eq.s32.totalorder %s22, 1
    %p66 = por %p64, %p65
    %p68 = scmp.ne.s32.totalorder %s53, %s67
    %p69 = scmp.eq.s32.totalorder %s22, 0
    %p70 = por %p68, %p69
    %s72 = sadd.s32 %s71, 1
    %p75 = scmp.eq.s32.totalorder %s16, 1
    %p76 = scmp.ne.s32.totalorder %s71, %s73
    %p77 = scmp.eq.s32.totalorder %s16, 0
    %p78 = por %p76, %p77
    %p79 = scmp.ne.s32.totalorder %s71, %s73
    %p80 = scmp.eq.s32.totalorder %s21, 1
    %p81 = por %p79, %p80
    %p82 = scmp.ne.s32.totalorder %s73, %s74
    %p83 = scmp.eq.s32.totalorder %s21, 0
    %p84 = por %p82, %p83
    %p85 = scmp.ne.s32.totalorder %s73, %s74
    %p86 = scmp.eq.s32.totalorder %s22, 1
    %p87 = por %p85, %p86
    %p89 = scmp.ne.s32.totalorder %s74, %s88
    %p90 = scmp.eq.s32.totalorder %s22, 0
    %p91 = por %p89, %p90
    %s93 = sadd.s32 %s92, 1
    %p96 = scmp.eq.s32.totalorder %s16, 1
    %p97 = scmp.ne.s32.totalorder %s92, %s94
    %p98 = scmp.eq.s32.totalorder %s16, 0
    %p99 = por %p97, %p98
    %p100 = scmp.ne.s32.totalorder %s92, %s94
    %p101 = scmp.eq.s32.totalorder %s21, 1
    %p102 = por %p100, %p101
    %p103 = scmp.ne.s32.totalorder %s94, %s95
    %p104 = scmp.eq.s32.totalorder %s21, 0
    %p105 = por %p103, %p104
    %p106 = scmp.ne.s32.totalorder %s94, %s95
    %p107 = scmp.eq.s32.totalorder %s22, 1
    %p108 = por %p106, %p107
    %p110 = scmp.ne.s32.totalorder %s95, %s109
    %p111 = scmp.eq.s32.totalorder %s22, 0
    %p112 = por %p110, %p111
    %s114 = sadd.s32 %s113, 1
    %p117 = scmp.eq.s32.totalorder %s16, 1
    %p118 = scmp.ne.s32.totalorder %s113, %s115
    %p119 = scmp.eq.s32.totalorder %s16, 0
    %p120 = por %p118, %p119
    %p121 = scmp.ne.s32.totalorder %s113, %s115
    %p122 = scmp.eq.s32.totalorder %s21, 1
    %p123 = por %p121, %p122
    %p124 = scmp.ne.s32.totalorder %s115, %s116
    %p125 = scmp.eq.s32.totalorder %s21, 0
    %p126 = por %p124, %p125
    %p127 = scmp.ne.s32.totalorder %s115, %s116
    %p128 = scmp.eq.s32.totalorder %s22, 1
    %p129 = por %p127, %p128
    %p131 = scmp.ne.s32.totalorder %s116, %s130
    %p132 = scmp.eq.s32.totalorder %s22, 0
    %p133 = por %p131, %p132
    %s135 = sadd.s32 %s134, 1
    %p138 = scmp.eq.s32.totalorder %s16, 1
    %p139 = scmp.ne.s32.totalorder %s134, %s136
    %p140 = scmp.eq.s32.totalorder %s16, 0
    %p141 = por %p139, %p140
    %p142 = scmp.ne.s32.totalorder %s134, %s136
    %p143 = scmp.eq.s32.totalorder %s21, 1
    %p144 = por %p142, %p143
    %p145 = scmp.ne.s32.totalorder %s136, %s137
    %p146 = scmp.eq.s32.totalorder %s21, 0
    %p147 = por %p145, %p146
    %p148 = scmp.ne.s32.totalorder %s136, %s137
    %p149 = scmp.eq.s32.totalorder %s22, 1
    %p150 = por %p148, %p149
    %p152 = scmp.ne.s32.totalorder %s137, %s151
    %p153 = scmp.eq.s32.totalorder %s22, 0
    %p154 = por %p152, %p153
    %s156 = sadd.s32 %s155, 1
    %p159 = scmp.eq.s32.totalorder %s16, 1
    %p160 = scmp.ne.s32.totalorder %s155, %s157
    %p161 = scmp.eq.s32.totalorder %s16, 0
    %p162 = por %p160, %p161
    %p163 = scmp.ne.s32.totalorder %s155, %s157
    %p164 = scmp.eq.s32.totalorder %s21, 1
    %p165 = por %p163, %p164
    %p166 = scmp.ne.s32.totalorder %s157, %s158
    %p167 = scmp.eq.s32.totalorder %s21, 0
    %p168 = por %p166, %p167
    %p169 = scmp.ne.s32.totalorder %s157, %s158
    %p170 = scmp.eq.s32.totalorder %s22, 1
    %p171 = por %p169, %p170
    %p173 = scmp.ne.s32.totalorder %s158, %s172
    %p174 = scmp.eq.s32.totalorder %s22, 0
    %p175 = por %p173, %p174
    %s177 = sadd.s32 %s176, 1
    %p180 = scmp.eq.s32.totalorder %s16, 1
    %p181 = scmp.ne.s32.totalorder %s176, %s178
    %p182 = scmp.eq.s32.totalorder %s16, 0
    %p183 = por %p181, %p182
    %p184 = scmp.ne.s32.totalorder %s176, %s178
    %p185 = scmp.eq.s32.totalorder %s21, 1
    %p186 = por %p184, %p185
    %p187 = scmp.ne.s32.totalorder %s178, %s179
    %p188 = scmp.eq.s32.totalorder %s21, 0
    %p189 = por %p187, %p188
    %p190 = scmp.ne.s32.totalorder %s178, %s179
    %p191 = scmp.eq.s32.totalorder %s22, 1
    %p192 = por %p190, %p191
    %p194 = scmp.ne.s32.totalorder %s179, %s193
    %p195 = scmp.eq.s32.totalorder %s22, 0
    %p196 = por %p194, %p195
    %s198 = sadd.s32 %s197, 1
    %p201 = scmp.eq.s32.totalorder %s16, 1
    %p202 = scmp.ne.s32.totalorder %s197, %s199
    %p203 = scmp.eq.s32.totalorder %s16, 0
    %p204 = por %p202, %p203
    %p205 = scmp.ne.s32.totalorder %s197, %s199
    %p206 = scmp.eq.s32.totalorder %s21, 1
    %p207 = por %p205, %p206
    %p208 = scmp.ne.s32.totalorder %s199, %s200
    %p209 = scmp.eq.s32.totalorder %s21, 0
    %p210 = por %p208, %p209
    %p211 = scmp.ne.s32.totalorder %s199, %s200
    %p212 = scmp.eq.s32.totalorder %s22, 1
    %p213 = por %p211, %p212
    %p215 = scmp.ne.s32.totalorder %s200, %s214
    %p216 = scmp.eq.s32.totalorder %s22, 0
    %p217 = por %p215, %p216
    %s219 = sadd.s32 %s218, 1
    %p222 = scmp.eq.s32.totalorder %s16, 1
    %p223 = scmp.ne.s32.totalorder %s218, %s220
    %p224 = scmp.eq.s32.totalorder %s16, 0
    %p225 = por %p223, %p224
    %p226 = scmp.ne.s32.totalorder %s218, %s220
    %p227 = scmp.eq.s32.totalorder %s21, 1
    %p228 = por %p226, %p227
    %p229 = scmp.ne.s32.totalorder %s220, %s221
    %p230 = scmp.eq.s32.totalorder %s21, 0
    %p231 = por %p229, %p230
    %p232 = scmp.ne.s32.totalorder %s220, %s221
    %p233 = scmp.eq.s32.totalorder %s22, 1
    %p234 = por %p232, %p233
    %p236 = scmp.ne.s32.totalorder %s221, %s235
    %p237 = scmp.eq.s32.totalorder %s22, 0
    %p238 = por %p236, %p237
    %s239 = ssub.s32 %s16, %s23
    %p240 = scmp.eq.s32.totalorder %s239, 0
    %s242 = sadd.s32 %s241, 1
    %s243 = scalar_select %p240, %s241, %s242
    %p246 = pneg %p240
    %p247 = scmp.eq.s32.totalorder %s16, 1
    %p248 = por %p246, %p247
    %p249 = scmp.ne.s32.totalorder %s241, %s244
    %p250 = scmp.eq.s32.totalorder %s16, 0
    %p251 = por %p249, %p250
    %p252 = scmp.ne.s32.totalorder %s241, %s244
    %p253 = scmp.eq.s32.totalorder %s21, 1
    %p254 = por %p252, %p253
    %p255 = scmp.ne.s32.totalorder %s244, %s245
    %p256 = scmp.eq.s32.totalorder %s21, 0
    %p257 = por %p255, %p256
    %p258 = scmp.ne.s32.totalorder %s244, %s245
    %p259 = scmp.eq.s32.totalorder %s22, 1
    %p260 = por %p258, %p259
    %p262 = scmp.ne.s32.totalorder %s245, %s261
    %p263 = scmp.eq.s32.totalorder %s22, 0
    %p264 = por %p262, %p263
    %p265 = scmp.le.s32.totalorder 1, %s16
    %p266 = scmp.lt.s32.totalorder %s16, 3
    %p267 = pnand %p265, %p266
    %p268 = pneg %p267
    // Predicated region
    $region9: #{se_resnet2d_forward.6} parent=5 // pred_check
      _
    $region10: #{se_resnet2d_forward.6} parent=5 // pred_check_branch
      %270 = sbr.rel (%p267) target = $region12
    $region11: #{se_resnet2d_forward.6} parent=5 // pred_region
      %s271 = ssub.s32 %s16, 1
      // Predicated region
      $region13: #{se_resnet2d_forward.6} parent=11 // pred_check
        %p272 = pneg %p63
      $region14: #{se_resnet2d_forward.6} parent=11 // pred_check_branch
        %274 = sbr.rel (%p272) target = $region16
      $region15: #{se_resnet2d_forward.6} parent=11 // pred_region
        _
      $region16: #{se_resnet2d_forward.6} parent=11 // pred_fallthru
        _
      // Predicated region
      $region17: #{se_resnet2d_forward.6} parent=11 // pred_check
        %p275 = pneg %p84
      $region18: #{se_resnet2d_forward.6} parent=11 // pred_check_branch
        %277 = sbr.rel (%p275) target = $region20
      $region19: #{se_resnet2d_forward.6} parent=11 // pred_region
        _
      $region20: #{se_resnet2d_forward.6} parent=11 // pred_fallthru
        _
      // Predicated region
      $region21: #{se_resnet2d_forward.6} parent=11 // pred_check
        %p278 = pneg %p105
      $region22: #{se_resnet2d_forward.6} parent=11 // pred_check_branch
        %280 = sbr.rel (%p278) target = $region24
      $region23: #{se_resnet2d_forward.6} parent=11 // pred_region
        _
      $region24: #{se_resnet2d_forward.6} parent=11 // pred_fallthru
        _
      // Predicated region
      $region25: #{se_resnet2d_forward.6} parent=11 // pred_check
        %p281 = pneg %p126
      $region26: #{se_resnet2d_forward.6} parent=11 // pred_check_branch
        %283 = sbr.rel (%p281) target = $region28
      $region27: #{se_resnet2d_forward.6} parent=11 // pred_region
        _
      $region28: #{se_resnet2d_forward.6} parent=11 // pred_fallthru
        _
      // Predicated region
      $region29: #{se_resnet2d_forward.6} parent=11 // pred_check
        %p284 = pneg %p147
      $region30: #{se_resnet2d_forward.6} parent=11 // pred_check_branch
        %286 = sbr.rel (%p284) target = $region32
      $region31: #{se_resnet2d_forward.6} parent=11 // pred_region
        _
      $region32: #{se_resnet2d_forward.6} parent=11 // pred_fallthru
        _
      // Predicated region
      $region33: #{se_resnet2d_forward.6} parent=11 // pred_check
        %p287 = pneg %p168
      $region34: #{se_resnet2d_forward.6} parent=11 // pred_check_branch
        %289 = sbr.rel (%p287) target = $region36
      $region35: #{se_resnet2d_forward.6} parent=11 // pred_region
        _
      $region36: #{se_resnet2d_forward.6} parent=11 // pred_fallthru
        _
      // Predicated region
      $region37: #{se_resnet2d_forward.6} parent=11 // pred_check
        %p290 = pneg %p189
      $region38: #{se_resnet2d_forward.6} parent=11 // pred_check_branch
        %292 = sbr.rel (%p290) target = $region40
      $region39: #{se_resnet2d_forward.6} parent=11 // pred_region
        _
      $region40: #{se_resnet2d_forward.6} parent=11 // pred_fallthru
        _
      // Predicated region
      $region41: #{se_resnet2d_forward.6} parent=11 // pred_check
        %p293 = pneg %p210
      $region42: #{se_resnet2d_forward.6} parent=11 // pred_check_branch
        %295 = sbr.rel (%p293) target = $region44
      $region43: #{se_resnet2d_forward.6} parent=11 // pred_region
        _
      $region44: #{se_resnet2d_forward.6} parent=11 // pred_fallthru
        _
      // Predicated region
      $region45: #{se_resnet2d_forward.6} parent=11 // pred_check
        %p296 = pneg %p231
      $region46: #{se_resnet2d_forward.6} parent=11 // pred_check_branch
        %298 = sbr.rel (%p296) target = $region48
      $region47: #{se_resnet2d_forward.6} parent=11 // pred_region
        _
      $region48: #{se_resnet2d_forward.6} parent=11 // pred_fallthru
        _
    $region12: #{se_resnet2d_forward.6} parent=5 // pred_fallthru
      _
    %p299 = scmp.lt.s32.totalorder %s16, 2
    // Predicated region
    $region49: #{se_resnet2d_forward.6} parent=5 // pred_check
      %p300 = pneg %p299
    $region50: #{se_resnet2d_forward.6} parent=5 // pred_check_branch
      %302 = sbr.rel (%p300) target = $region52
    $region51: #{se_resnet2d_forward.6} parent=5 // pred_region
      // Predicated region
      $region53: #{se_resnet2d_forward.6} parent=51 // pred_check
        %p303 = pneg %p36
      $region54: #{se_resnet2d_forward.6} parent=51 // pred_check_branch
        %305 = sbr.rel (%p303) target = $region56
      $region55: #{se_resnet2d_forward.6} parent=51 // pred_region
        %p306 = scmp.lt.s32.totalorder %s16, 1
        %s307 = scalar_select %p306, %s16, 1
        %s308 = smul.addr %s307, 2
        %s309 = smul.addr %s308, 8
        %s310 = scalar_lea.vmem %s0, %s309
      $region56: #{se_resnet2d_forward.6} parent=51 // pred_fallthru
        _
    $region52: #{se_resnet2d_forward.6} parent=5 // pred_fallthru
      _
    %p311 = scmp.le.s32.totalorder 1, %s16
    %p312 = scmp.lt.s32.totalorder %s16, 3
    %p313 = pnand %p311, %p312
    %p314 = pneg %p313
    // Predicated region
    $region57: #{se_resnet2d_forward.6} parent=5 // pred_check
      _
    $region58: #{se_resnet2d_forward.6} parent=5 // pred_check_branch
      %316 = sbr.rel (%p313) target = $region60
    $region59: #{se_resnet2d_forward.6} parent=5 // pred_region
      %s317 = ssub.s32 %s16, 1
      %p318 = scmp.lt.s32.totalorder %s21, 1
      %s319 = scalar_select %p318, %s21, 1
      %s320 = smul.addr %s319, 2
      %s321 = smul.addr %s320, 8
      %s322 = scalar_lea.vmem %s0, %s321
      %p323 = pneg %p42
      %p324 = pneg %p39
      %p325 = pneg %p63
      %p326 = pneg %p60
      %p327 = pneg %p84
      %p328 = pneg %p81
      %p329 = pneg %p105
      %p330 = pneg %p102
      %p331 = pneg %p126
      %p332 = pneg %p123
      %p333 = pneg %p147
      %p334 = pneg %p144
      %p335 = pneg %p168
      %p336 = pneg %p165
      %p337 = pneg %p189
      %p338 = pneg %p186
      %p339 = pneg %p210
      %p340 = pneg %p207
      %p341 = pneg %p231
      %p342 = pneg %p228
      %p343 = pneg %p257
      %p344 = pneg %p254
      %p345 = scmp.lt.s32.totalorder %s21, 1
      %s346 = scalar_select %p345, %s21, 1
      %s347 = smul.addr %s346, 4
      %s348 = smul.addr %s347, 8
      %s349 = scalar_lea.vmem %s10, %s348
      %p350 = scmp.lt.s32.totalorder %s21, 1
      %s351 = scalar_select %p350, %s21, 1
      %s352 = smul.addr %s351, 2
      %s353 = smul.addr %s352, 8
      %s354 = scalar_lea.vmem %s0, %s353
      %p355 = scmp.lt.s32.totalorder %s21, 1
      %s356 = scalar_select %p355, %s21, 1
      %s357 = smul.addr %s356, 4
      %s358 = smul.addr %s357, 8
      %s359 = scalar_lea.vmem %s10, %s358
      %v360 = vld [vmem:[%s354] sm:$0xff]
      %v361 = vld [vmem:[%s354 + $0x8] sm:$0xff]
      %v362 = vld [vmem:[%s1] sm:$0xff]
      %364 = vset.pattern.permute.xlu0 0
      %365 = vperm.xlu0 %364, %v362
      %v366 = vpop.permute.xlu0 %365
      %v368 = vmul.f32 %v360, %v366
      %v369 = vmul.f32 %v361, %v366
      %v370 = vld [vmem:[%s2] sm:$0xff]
      %372 = vset.pattern.permute.xlu0 0
      %373 = vperm.xlu0 %372, %v370
      %v374 = vpop.permute.xlu0 %373
      %v376 = vadd.f32 %v368, %v374
      %v377 = vadd.f32 %v369, %v374
      %v378 = vld [vmem:[%s3] sm:$0xff]
      %v379 = vld [vmem:[%s4] sm:$0x1]
      %v380 = vld [vmem:[%s5] sm:$0xff]
      %v381 = vld [vmem:[%s6] sm:$0xff]
      %v382 = vadd.f32 %v376, %v377
      %383 = vadd.xlane.f32.xlu0 %v382
      %v384 = vpop.xlane.xlu0 %383
      %v385 = vmul.f32 %v384, 0.00390625
      %v386 = vmul.f32 %v378, %v385
      %vm387 = vcmask 15360
      %v388 = vsel %vm387, %v386, 0.0
      %v389 = vrot.slane %v388, 4
      %v390 = vadd.f32 %v388, %v389
      %v391 = vrot.slane %v390, 2
      %v392 = vadd.f32 %v390, %v391
      %v393 = vrot.slane %v392, 1
      %v394 = vadd.f32 %v392, %v393
      %v395 = vadd.f32 %v394, %v379
      %v396 = vmax.f32 %v395, 0.0
      %v397 = vlaneseq
      %v398 = vshrl.u32 %v397, 7
      %v399 = vsub.s32 0, %v398
      %v400 = vrot.slane %v396, %v399
      %v401 = vmul.f32 %v380, %v400
      %v402 = vsel %vm387, %v401, 0.0
      %403 = vadd.xlane.f32.xlu0 %v402
      %v404 = vpop.xlane.xlu0 %403
      %v405 = vadd.f32 %v404, %v381
      %v406 = vxor.u32 %v405, 2147483648
      %v407 = vmul.f32 %v406, 1.442695
      %v408 = vpow.pop %v407
      %v409 = vadd.f32 %v408, 1.0
      %v410 = vrcp.pop %v409
      %v411 = vmul.f32 1.0, %v410
      %413 = vset.pattern.permute.xlu0 0
      %414 = vperm.xlu0 %413, %v411
      %v415 = vpop.permute.xlu0 %414
      %v417 = vmul.f32 %v376, %v415
      %v418 = vmul.f32 %v377, %v415
      %v419 = vmax.f32 %v417, 0.0
      %v420 = vmax.f32 %v418, 0.0
      %v421 = vld [vmem:[%s7] sm:$0xff]
      %v422 = vld [vmem:[%s7 + $0x8] sm:$0xff]
      %v423 = vld [vmem:[%s8] sm:$0xff]
      %v424 = vld [vmem:[%s8 + $0x8] sm:$0xff]
      %v425 = vlaneseq
      %v426 = vand.u32 %v425, 127
      %v427 = vadd.s32 %v426, 128
      %vm428 = vcmp.lt.s32.totalorder %v426, 0
      %v429 = vsub.s32 0, %v426
      %v430 = vsel %vm428, %v429, %v426
      %v431 = vshrl.u32 %v430, 4
      %v432 = vand.u32 %v430, 15
      %v433 = vsub.s32 0, %v432
      %v434 = vsel %vm428, %v433, %v432
      %vm435 = vcmp.lt.s32.totalorder %v427, 0
      %v436 = vsub.s32 0, %v427
      %v437 = vsel %vm435, %v436, %v427
      %v438 = vshrl.u32 %v437, 4
      %v439 = vand.u32 %v437, 15
      %v440 = vsub.s32 0, %v439
      %v441 = vsel %vm435, %v440, %v439
      %vm442 = vcmp.ne.s32.totalorder %v434, 0
      %vm443 = vcmp.ne.s32.totalorder %v441, 0
      %vm444 = vcmp.lt.s32.totalorder %v434, 0
      %vm445 = vcmp.lt.s32.totalorder %v441, 0
      %vm446 = vmand %vm444, %vm442
      %vm447 = vmand %vm445, %vm443
      %v448 = vadd.s32 %v434, 16
      %v449 = vadd.s32 %v441, 16
      %v450 = vsel %vm446, %v448, %v434
      %v451 = vsel %vm447, %v449, %v441
      %vm452 = vcmp.lt.s32.totalorder %v450, 1
      %vm453 = vcmp.lt.s32.totalorder %v451, 1
      %456 = vrot.lane.b32.xlu0 %v419, 113
      %v457 = vpop.permute.xlu0 %456
      %458 = vrot.lane.b32.xlu0 %v420, 113
      %v459 = vpop.permute.xlu0 %458
      %vm460 = vcmask 924672
      %v461 = vsel %vm460, %v457, %v459
      %v465 = vsel %vm460, %v459, %v457
      %466 = vrot.lane.b32.xlu0 %v420, 1
      %v467 = vpop.permute.xlu0 %466
      %469 = vrot.lane.b32.xlu0 %v419, 1
      %v470 = vpop.permute.xlu0 %469
      %vm471 = vcmask 7168
      %v472 = vsel %vm471, %v470, %v467
      %v475 = vsel %vm471, %v467, %v470
      %v476 = vsel %vm452, %v461, %v475
      %v477 = vsel %vm453, %v465, %v472
      %479 = vrot.lane.b32.xlu0 %v477, 16
      %v480 = vpop.permute.xlu0 %479
      %483 = vrot.lane.b32.xlu0 %v476, 16
      %v484 = vpop.permute.xlu0 %483
      %vm485 = vcmask 130048
      %v486 = vsel %vm485, %v484, %v480
      %v489 = vsel %vm485, %v480, %v484
      %490 = vrot.lane.b32.xlu0 %v476, 112
      %v491 = vpop.permute.xlu0 %490
      %492 = vrot.lane.b32.xlu0 %v477, 112
      %v493 = vpop.permute.xlu0 %492
      %vm494 = vcmask 916480
      %v495 = vsel %vm494, %v491, %v493
      %v499 = vsel %vm494, %v493, %v491
      %500 = vrot.lane.b32.xlu0 %v420, 16
      %v501 = vpop.permute.xlu0 %500
      %503 = vrot.lane.b32.xlu0 %v419, 16
      %v504 = vpop.permute.xlu0 %503
      %v505 = vsel %vm485, %v504, %v501
      %v508 = vsel %vm485, %v501, %v504
      %509 = vrot.lane.b32.xlu0 %v419, 112
      %v510 = vpop.permute.xlu0 %509
      %511 = vrot.lane.b32.xlu0 %v420, 112
      %v512 = vpop.permute.xlu0 %511
      %v513 = vsel %vm494, %v510, %v512
      %v517 = vsel %vm494, %v512, %v510
      %vm518 = vcmp.ge.s32.totalorder %v450, 15
      %vm519 = vcmp.ge.s32.totalorder %v451, 15
      %520 = vrot.lane.b32.xlu0 %v420, 15
      %v521 = vpop.permute.xlu0 %520
      %523 = vrot.lane.b32.xlu0 %v419, 15
      %v524 = vpop.permute.xlu0 %523
      %vm525 = vcmask 121856
      %v526 = vsel %vm525, %v524, %v521
      %v529 = vsel %vm525, %v521, %v524
      %530 = vrot.lane.b32.xlu0 %v419, 127
      %v531 = vpop.permute.xlu0 %530
      %532 = vrot.lane.b32.xlu0 %v420, 127
      %v533 = vpop.permute.xlu0 %532
      %vm534 = vcmask 1039360
      %v535 = vsel %vm534, %v531, %v533
      %v539 = vsel %vm534, %v533, %v531
      %v540 = vsel %vm518, %v529, %v535
      %v541 = vsel %vm519, %v526, %v539
      %543 = vrot.lane.b32.xlu0 %v541, 16
      %v544 = vpop.permute.xlu0 %543
      %547 = vrot.lane.b32.xlu0 %v540, 16
      %v548 = vpop.permute.xlu0 %547
      %v549 = vsel %vm485, %v548, %v544
      %v552 = vsel %vm485, %v544, %v548
      %553 = vrot.lane.b32.xlu0 %v540, 112
      %v554 = vpop.permute.xlu0 %553
      %555 = vrot.lane.b32.xlu0 %v541, 112
      %v556 = vpop.permute.xlu0 %555
      %v557 = vsel %vm494, %v554, %v556
      %v561 = vsel %vm494, %v556, %v554
      %563 = vset.pattern.permute.xlu0 0
      %564 = vperm.xlu0 %563, %v423
      %v565 = vpop.permute.xlu0 %564
      %568 = vset.pattern.permute.xlu0 0
      %569 = vperm.xlu0 %568, %v424
      %v570 = vpop.permute.xlu0 %569
      %vm572 = vcmask 588800
      %v574 = vsel %vm572, %v421, 0
      %v577 = vsel %vm572, %v422, 0
      %579 = vmatprep.subr.mxu0 0.0
      %580 = vmatpush1.msra.mxu0 0.0
      %581 = vmatprep.subr.mxu0 0.0
      %582 = vmatpush1.msra.mxu0 0.0
      %583 = vmatprep.subr.mxu0 0.0
      %584 = vmatpush1.msra.mxu0 0.0
      %585 = vmatprep.subr.mxu0 0.0
      %586 = vmatpush1.msra.mxu0 0.0
      %587 = vmatprep.subr.mxu0 0.0
      %588 = vmatpush1.msra.mxu0 0.0
      %589 = vmatprep.subr.mxu0 0.0
      %590 = vmatpush1.msra.mxu0 0.0
      %591 = vmatprep.subr.mxu0 0.0
      %592 = vmatpush1.msra.mxu0 0.0
      %593 = vmatprep.subr.mxu0 %v561
      %594 = vmatpush1.msra.mxu0 %v557
      %595 = vmatprep.subr.mxu0 %v541
      %596 = vmatpush1.msra.mxu0 %v540
      %597 = vmatprep.subr.mxu0 %v549
      %598 = vmatpush1.msra.mxu0 %v552
      %599 = vmatprep.subr.mxu0 %v517
      %600 = vmatpush1.msra.mxu0 %v513
      %601 = vmatprep.subr.mxu0 %v420
      %602 = vmatpush1.msra.mxu0 %v419
      %603 = vmatprep.subr.mxu0 %v505
      %604 = vmatpush1.msra.mxu0 %v508
      %605 = vmatprep.subr.mxu0 %v499
      %606 = vmatpush1.msra.mxu0 %v495
      %607 = vmatprep.subr.mxu0 %v477
      %608 = vmatpush1.msra.mxu0 %v476
      %609 = vmatprep.subr.mxu0 %v486
      %610 = vmatpush1.msra.mxu0 %v489
      %611 = vmatprep.subr.mxu0 0.0
      %612 = vmatpush2.msra.mxu0 0.0
      %613 = vmatprep.subr.mxu0 0.0
      %614 = vmatpush2.msra.mxu0 0.0
      %615 = vmatprep.subr.mxu0 0.0
      %616 = vmatpush2.msra.mxu0 0.0
      %617 = vmatprep.subr.mxu0 0.0
      %618 = vmatpush2.msra.mxu0 0.0
      %619 = vmatprep.subr.mxu0 0.0
      %620 = vmatpush2.msra.mxu0 0.0
      %621 = vmatprep.subr.mxu0 0.0
      %622 = vmatpush2.msra.mxu0 0.0
      %623 = vmatprep.subr.mxu0 0.0
      %624 = vmatpush2.msra.mxu0 0.0
      %625 = vmatprep.subr.mxu0 0.0
      %626 = vmatpush2.msra.mxu0 0.0
      %627 = vmatprep.subr.mxu0 0.0
      %628 = vmatpush2.msra.mxu0 0.0
      %629 = vmatprep.subr.mxu0 0.0
      %630 = vmatpush2.msra.mxu0 0.0
      %631 = vmatprep.subr.mxu0 0.0
      %632 = vmatpush2.msra.mxu0 0.0
      %633 = vmatprep.subr.mxu0 0.0
      %634 = vmatpush2.msra.mxu0 0.0
      %635 = vmatprep.subr.mxu0 0.0
      %636 = vmatpush2.msra.mxu0 0.0
      %637 = vmatprep.subr.mxu0 0.0
      %638 = vmatpush2.msra.mxu0 0.0
      %639 = vmatprep.subr.mxu0 0.0
      %640 = vmatpush2.msra.mxu0 0.0
      %641 = vmatprep.subr.mxu0 0.0
      %642 = vmatpush2.msra.mxu0 0.0
      %643 = vmatprep.mubr.f32.mxu0 0.0
      %644 = vmatmul.mubr.f32.gmra.mxu0 %v574
      %v645 = vpop.f32.mrf.mxu0
      %v646 = vadd.f32 %v565, %v645
      %v647 = vpop.f32.mrf.mxu0
      %v648 = vadd.f32 %v565, %v647
      %649 = vmatprep.mubr.f32.mxu0 0.0
      %650 = vmatmul.mubr.f32.gmra.mxu0 %v577
      %v651 = vpop.f32.mrf.mxu0
      %v652 = vadd.f32 %v570, %v651
      %v653 = vpop.f32.mrf.mxu0
      %v654 = vadd.f32 %v570, %v653
      %655 = vdwg.mxu0
      %v656 = vmax.f32 %v646, 0.0
      %v657 = vmax.f32 %v648, 0.0
      %v658 = vmax.f32 %v652, 0.0
      %v659 = vmax.f32 %v654, 0.0
      %v660 = vld [vmem:[%s9] sm:$0xff]
      %v661 = vld [vmem:[%s9 + $0x8] sm:$0xff]
      %v662 = vld [vmem:[%s9 + $0x10] sm:$0xff]
      %v663 = vld [vmem:[%s9 + $0x18] sm:$0xff]
      %668 = vrot.lane.b32.xlu0 %v656, 113
      %v669 = vpop.permute.xlu0 %668
      %670 = vrot.lane.b32.xlu0 %v657, 113
      %v671 = vpop.permute.xlu0 %670
      %672 = vrot.lane.b32.xlu0 %v658, 113
      %v673 = vpop.permute.xlu0 %672
      %674 = vrot.lane.b32.xlu0 %v659, 113
      %v675 = vpop.permute.xlu0 %674
      %v676 = vsel %vm460, %v669, %v671
      %v677 = vsel %vm460, %v673, %v675
      %v684 = vsel %vm460, %v671, %v669
      %v685 = vsel %vm460, %v675, %v673
      %686 = vrot.lane.b32.xlu0 %v657, 1
      %v687 = vpop.permute.xlu0 %686
      %688 = vrot.lane.b32.xlu0 %v659, 1
      %v689 = vpop.permute.xlu0 %688
      %692 = vrot.lane.b32.xlu0 %v656, 1
      %v693 = vpop.permute.xlu0 %692
      %694 = vrot.lane.b32.xlu0 %v658, 1
      %v695 = vpop.permute.xlu0 %694
      %v696 = vsel %vm471, %v693, %v687
      %v697 = vsel %vm471, %v695, %v689
      %v702 = vsel %vm471, %v687, %v693
      %v703 = vsel %vm471, %v689, %v695
      %v704 = vsel %vm452, %v676, %v702
      %v705 = vsel %vm453, %v684, %v696
      %v706 = vsel %vm452, %v677, %v703
      %v707 = vsel %vm453, %v685, %v697
      %710 = vrot.lane.b32.xlu0 %v705, 16
      %v711 = vpop.permute.xlu0 %710
      %712 = vrot.lane.b32.xlu0 %v707, 16
      %v713 = vpop.permute.xlu0 %712
      %718 = vrot.lane.b32.xlu0 %v704, 16
      %v719 = vpop.permute.xlu0 %718
      %720 = vrot.lane.b32.xlu0 %v706, 16
      %v721 = vpop.permute.xlu0 %720
      %v722 = vsel %vm485, %v719, %v711
      %v723 = vsel %vm485, %v721, %v713
      %v728 = vsel %vm485, %v711, %v719
      %v729 = vsel %vm485, %v713, %v721
      %730 = vrot.lane.b32.xlu0 %v704, 112
      %v731 = vpop.permute.xlu0 %730
      %732 = vrot.lane.b32.xlu0 %v705, 112
      %v733 = vpop.permute.xlu0 %732
      %734 = vrot.lane.b32.xlu0 %v706, 112
      %v735 = vpop.permute.xlu0 %734
      %736 = vrot.lane.b32.xlu0 %v707, 112
      %v737 = vpop.permute.xlu0 %736
      %v738 = vsel %vm494, %v731, %v733
      %v739 = vsel %vm494, %v735, %v737
      %v746 = vsel %vm494, %v733, %v731
      %v747 = vsel %vm494, %v737, %v735
      %748 = vrot.lane.b32.xlu0 %v657, 16
      %v749 = vpop.permute.xlu0 %748
      %750 = vrot.lane.b32.xlu0 %v659, 16
      %v751 = vpop.permute.xlu0 %750
      %754 = vrot.lane.b32.xlu0 %v656, 16
      %v755 = vpop.permute.xlu0 %754
      %756 = vrot.lane.b32.xlu0 %v658, 16
      %v757 = vpop.permute.xlu0 %756
      %v758 = vsel %vm485, %v755, %v749
      %v759 = vsel %vm485, %v757, %v751
      %v764 = vsel %vm485, %v749, %v755
      %v765 = vsel %vm485, %v751, %v757
      %766 = vrot.lane.b32.xlu0 %v656, 112
      %v767 = vpop.permute.xlu0 %766
      %768 = vrot.lane.b32.xlu0 %v657, 112
      %v769 = vpop.permute.xlu0 %768
      %770 = vrot.lane.b32.xlu0 %v658, 112
      %v771 = vpop.permute.xlu0 %770
      %772 = vrot.lane.b32.xlu0 %v659, 112
      %v773 = vpop.permute.xlu0 %772
      %v774 = vsel %vm494, %v767, %v769
      %v775 = vsel %vm494, %v771, %v773
      %v782 = vsel %vm494, %v769, %v767
      %v783 = vsel %vm494, %v773, %v771
      %784 = vrot.lane.b32.xlu0 %v657, 15
      %v785 = vpop.permute.xlu0 %784
      %786 = vrot.lane.b32.xlu0 %v659, 15
      %v787 = vpop.permute.xlu0 %786
      %790 = vrot.lane.b32.xlu0 %v656, 15
      %v791 = vpop.permute.xlu0 %790
      %792 = vrot.lane.b32.xlu0 %v658, 15
      %v793 = vpop.permute.xlu0 %792
      %v794 = vsel %vm525, %v791, %v785
      %v795 = vsel %vm525, %v793, %v787
      %v800 = vsel %vm525, %v785, %v791
      %v801 = vsel %vm525, %v787, %v793
      %802 = vrot.lane.b32.xlu0 %v656, 127
      %v803 = vpop.permute.xlu0 %802
      %804 = vrot.lane.b32.xlu0 %v657, 127
      %v805 = vpop.permute.xlu0 %804
      %806 = vrot.lane.b32.xlu0 %v658, 127
      %v807 = vpop.permute.xlu0 %806
      %808 = vrot.lane.b32.xlu0 %v659, 127
      %v809 = vpop.permute.xlu0 %808
      %v810 = vsel %vm534, %v803, %v805
      %v811 = vsel %vm534, %v807, %v809
      %v818 = vsel %vm534, %v805, %v803
      %v819 = vsel %vm534, %v809, %v807
      %v820 = vsel %vm518, %v800, %v810
      %v821 = vsel %vm519, %v794, %v818
      %v822 = vsel %vm518, %v801, %v811
      %v823 = vsel %vm519, %v795, %v819
      %826 = vrot.lane.b32.xlu0 %v821, 16
      %v827 = vpop.permute.xlu0 %826
      %828 = vrot.lane.b32.xlu0 %v823, 16
      %v829 = vpop.permute.xlu0 %828
      %834 = vrot.lane.b32.xlu0 %v820, 16
      %v835 = vpop.permute.xlu0 %834
      %836 = vrot.lane.b32.xlu0 %v822, 16
      %v837 = vpop.permute.xlu0 %836
      %v838 = vsel %vm485, %v835, %v827
      %v839 = vsel %vm485, %v837, %v829
      %v844 = vsel %vm485, %v827, %v835
      %v845 = vsel %vm485, %v829, %v837
      %846 = vrot.lane.b32.xlu0 %v820, 112
      %v847 = vpop.permute.xlu0 %846
      %848 = vrot.lane.b32.xlu0 %v821, 112
      %v849 = vpop.permute.xlu0 %848
      %850 = vrot.lane.b32.xlu0 %v822, 112
      %v851 = vpop.permute.xlu0 %850
      %852 = vrot.lane.b32.xlu0 %v823, 112
      %v853 = vpop.permute.xlu0 %852
      %v854 = vsel %vm494, %v847, %v849
      %v855 = vsel %vm494, %v851, %v853
      %v862 = vsel %vm494, %v849, %v847
      %v863 = vsel %vm494, %v853, %v851
      %v864 = vlaneseq
      %v865 = vshrl.u32 %v864, 7
      %v866 = vadd.s32 %v865, 8
      %v867 = vadd.s32 %v426, 4
      %vm868 = vcmp.eq.s32.totalorder %v865, %v867
      %vm869 = vcmp.eq.s32.totalorder %v866, %v867
      %v870 = vsel %vm868, 1, 0
      %v871 = vsel %vm869, 1, 0
      %v872 = vcvt.s32.f32 %v870
      %v873 = vcvt.s32.f32 %v871
      %vm874 = vcmask 64512
      %v876 = vsel %vm874, %v872, 0
      %v879 = vsel %vm874, %v873, 0
      %881 = vmatprep.subr.mxu0 0.0
      %882 = vmatpush1.msra.mxu0 0.0
      %883 = vmatprep.subr.mxu0 0.0
      %884 = vmatpush1.msra.mxu0 0.0
      %885 = vmatprep.subr.mxu0 0.0
      %886 = vmatpush1.msra.mxu0 0.0
      %887 = vmatprep.subr.mxu0 0.0
      %888 = vmatpush1.msra.mxu0 0.0
      %889 = vmatprep.subr.mxu0 0.0
      %890 = vmatpush1.msra.mxu0 0.0
      %891 = vmatprep.subr.mxu0 0.0
      %892 = vmatpush1.msra.mxu0 0.0
      %893 = vmatprep.subr.mxu0 0.0
      %894 = vmatpush1.msra.mxu0 0.0
      %895 = vmatprep.subr.mxu0 0.0
      %896 = vmatpush1.msra.mxu0 0.0
      %897 = vmatprep.subr.mxu0 0.0
      %898 = vmatpush1.msra.mxu0 0.0
      %899 = vmatprep.subr.mxu0 0.0
      %900 = vmatpush1.msra.mxu0 0.0
      %901 = vmatprep.subr.mxu0 0.0
      %902 = vmatpush1.msra.mxu0 0.0
      %903 = vmatprep.subr.mxu0 0.0
      %904 = vmatpush1.msra.mxu0 0.0
      %905 = vmatprep.subr.mxu0 0.0
      %906 = vmatpush1.msra.mxu0 0.0
      %907 = vmatprep.subr.mxu0 0.0
      %908 = vmatpush1.msra.mxu0 0.0
      %909 = vmatprep.subr.mxu0 0.0
      %910 = vmatpush1.msra.mxu0 0.0
      %911 = vmatprep.subr.mxu0 %v361
      %912 = vmatpush1.msra.mxu0 %v360
      %913 = vmatprep.subr.mxu0 0.0
      %914 = vmatpush2.msra.mxu0 0.0
      %915 = vmatprep.subr.mxu0 0.0
      %916 = vmatpush2.msra.mxu0 0.0
      %917 = vmatprep.subr.mxu0 0.0
      %918 = vmatpush2.msra.mxu0 0.0
      %919 = vmatprep.subr.mxu0 0.0
      %920 = vmatpush2.msra.mxu0 0.0
      %921 = vmatprep.subr.mxu0 0.0
      %922 = vmatpush2.msra.mxu0 0.0
      %923 = vmatprep.subr.mxu0 0.0
      %924 = vmatpush2.msra.mxu0 0.0
      %925 = vmatprep.subr.mxu0 0.0
      %926 = vmatpush2.msra.mxu0 0.0
      %927 = vmatprep.subr.mxu0 0.0
      %928 = vmatpush2.msra.mxu0 0.0
      %929 = vmatprep.subr.mxu0 0.0
      %930 = vmatpush2.msra.mxu0 0.0
      %931 = vmatprep.subr.mxu0 0.0
      %932 = vmatpush2.msra.mxu0 0.0
      %933 = vmatprep.subr.mxu0 0.0
      %934 = vmatpush2.msra.mxu0 0.0
      %935 = vmatprep.subr.mxu0 0.0
      %936 = vmatpush2.msra.mxu0 0.0
      %937 = vmatprep.subr.mxu0 0.0
      %938 = vmatpush2.msra.mxu0 0.0
      %939 = vmatprep.subr.mxu0 0.0
      %940 = vmatpush2.msra.mxu0 0.0
      %941 = vmatprep.subr.mxu0 0.0
      %942 = vmatpush2.msra.mxu0 0.0
      %943 = vmatprep.subr.mxu0 0.0
      %944 = vmatpush2.msra.mxu0 0.0
      %945 = vmatprep.mubr.f32.mxu0 0.0
      %946 = vmatmul.mubr.f32.gmra.mxu0 %v876
      %v947 = vpop.f32.mrf.mxu0
      %v948 = vadd.f32 0.0, %v947
      %v949 = vpop.f32.mrf.mxu0
      %v950 = vadd.f32 0.0, %v949
      %951 = vmatprep.mubr.f32.mxu0 0.0
      %952 = vmatmul.mubr.f32.gmra.mxu0 %v879
      %v953 = vpop.f32.mrf.mxu0
      %v954 = vadd.f32 0.0, %v953
      %v955 = vpop.f32.mrf.mxu0
      %v956 = vadd.f32 0.0, %v955
      %957 = vdwg.mxu0
      %v959 = vsel %vm485, %v661, 0
      %v962 = vsel %vm485, %v663, 0
      %964 = vmatprep.subr.mxu0 %v823
      %965 = vmatpush1.msra.mxu0 %v822
      %966 = vmatprep.subr.mxu0 %v821
      %967 = vmatpush1.msra.mxu0 %v820
      %968 = vmatprep.subr.mxu0 %v839
      %969 = vmatpush1.msra.mxu0 %v845
      %970 = vmatprep.subr.mxu0 %v838
      %971 = vmatpush1.msra.mxu0 %v844
      %972 = vmatprep.subr.mxu0 %v783
      %973 = vmatpush1.msra.mxu0 %v775
      %974 = vmatprep.subr.mxu0 %v782
      %975 = vmatpush1.msra.mxu0 %v774
      %976 = vmatprep.subr.mxu0 %v659
      %977 = vmatpush1.msra.mxu0 %v658
      %978 = vmatprep.subr.mxu0 %v657
      %979 = vmatpush1.msra.mxu0 %v656
      %980 = vmatprep.subr.mxu0 %v759
      %981 = vmatpush1.msra.mxu0 %v765
      %982 = vmatprep.subr.mxu0 %v758
      %983 = vmatpush1.msra.mxu0 %v764
      %984 = vmatprep.subr.mxu0 %v747
      %985 = vmatpush1.msra.mxu0 %v739
      %986 = vmatprep.subr.mxu0 %v746
      %987 = vmatpush1.msra.mxu0 %v738
      %988 = vmatprep.subr.mxu0 %v707
      %989 = vmatpush1.msra.mxu0 %v706
      %990 = vmatprep.subr.mxu0 %v705
      %991 = vmatpush1.msra.mxu0 %v704
      %992 = vmatprep.subr.mxu0 %v723
      %993 = vmatpush1.msra.mxu0 %v729
      %994 = vmatprep.subr.mxu0 %v722
      %995 = vmatpush1.msra.mxu0 %v728
      %996 = vmatprep.subr.mxu0 0.0
      %997 = vmatpush2.msra.mxu0 0.0
      %998 = vmatprep.subr.mxu0 0.0
      %999 = vmatpush2.msra.mxu0 0.0
      %1000 = vmatprep.subr.mxu0 0.0
      %1001 = vmatpush2.msra.mxu0 0.0
      %1002 = vmatprep.subr.mxu0 0.0
      %1003 = vmatpush2.msra.mxu0 0.0
      %1004 = vmatprep.subr.mxu0 0.0
      %1005 = vmatpush2.msra.mxu0 0.0
      %1006 = vmatprep.subr.mxu0 0.0
      %1007 = vmatpush2.msra.mxu0 0.0
      %1008 = vmatprep.subr.mxu0 0.0
      %1009 = vmatpush2.msra.mxu0 0.0
      %1010 = vmatprep.subr.mxu0 0.0
      %1011 = vmatpush2.msra.mxu0 0.0
      %1012 = vmatprep.subr.mxu0 0.0
      %1013 = vmatpush2.msra.mxu0 0.0
      %1014 = vmatprep.subr.mxu0 0.0
      %1015 = vmatpush2.msra.mxu0 0.0
      %1016 = vmatprep.subr.mxu0 0.0
      %1017 = vmatpush2.msra.mxu0 0.0
      %1018 = vmatprep.subr.mxu0 0.0
      %1019 = vmatpush2.msra.mxu0 0.0
      %1020 = vmatprep.subr.mxu0 0.0
      %1021 = vmatpush2.msra.mxu0 0.0
      %1022 = vmatprep.subr.mxu0 0.0
      %1023 = vmatpush2.msra.mxu0 0.0
      %1024 = vmatprep.subr.mxu0 %v863
      %1025 = vmatpush2.msra.mxu0 %v855
      %1026 = vmatprep.subr.mxu0 %v862
      %1027 = vmatpush2.msra.mxu0 %v854
      %1028 = vmatprep.mubr.f32.mxu0 %v959
      %1029 = vmatmul.mubr.f32.gmra.mxu0 %v660
      %v1030 = vpop.f32.mrf.mxu0
      %v1031 = vadd.f32 %v948, %v1030
      %v1032 = vpop.f32.mrf.mxu0
      %v1033 = vadd.f32 %v950, %v1032
      %1034 = vmatprep.mubr.f32.mxu0 %v962
      %1035 = vmatmul.mubr.f32.gmra.mxu0 %v662
      %v1036 = vpop.f32.mrf.mxu0
      %v1037 = vadd.f32 %v954, %v1036
      %v1038 = vpop.f32.mrf.mxu0
      %v1039 = vadd.f32 %v956, %v1038
      %1040 = vdwg.mxu0
      %1041 = vst [vmem:[%s359] sm:$0xff] %v1031
      %1042 = vst [vmem:[%s359 + $0x8] sm:$0xff] %v1033
      %1043 = vst [vmem:[%s359 + $0x10] sm:$0xff] %v1037
      %1044 = vst [vmem:[%s359 + $0x18] sm:$0xff] %v1039
      %p1045 = scmp.lt.s32.totalorder %s21, 1
      %s1046 = scalar_select %p1045, %s21, 1
      %s1047 = smul.addr %s1046, 4
      %s1048 = smul.addr %s1047, 8
      %s1049 = scalar_lea.vmem %s10, %s1048
      // Predicated region
      $region61: #{se_resnet2d_forward.6} parent=59 // pred_check
        %p1050 = pneg %p254
      $region62: #{se_resnet2d_forward.6} parent=59 // pred_check_branch
        %1052 = sbr.rel (%p1050) target = $region64
      $region63: #{se_resnet2d_forward.6} parent=59 // pred_region
        _
      $region64: #{se_resnet2d_forward.6} parent=59 // pred_fallthru
        _
    $region60: #{se_resnet2d_forward.6} parent=5 // pred_fallthru
      _
    %p1053 = scmp.le.s32.totalorder 2, %s16
    // Predicated region
    $region65: #{se_resnet2d_forward.6} parent=5 // pred_check
      %p1054 = pneg %p1053
    $region66: #{se_resnet2d_forward.6} parent=5 // pred_check_branch
      %1056 = sbr.rel (%p1054) target = $region68
    $region67: #{se_resnet2d_forward.6} parent=5 // pred_region
      %s1057 = ssub.s32 %s16, 2
      // Predicated region
      $region69: #{se_resnet2d_forward.6} parent=67 // pred_check
        %p1058 = pneg %p260
      $region70: #{se_resnet2d_forward.6} parent=67 // pred_check_branch
        %1060 = sbr.rel (%p1058) target = $region72
      $region71: #{se_resnet2d_forward.6} parent=67 // pred_region
        %p1061 = scmp.lt.s32.totalorder %s22, 1
        %s1062 = scalar_select %p1061, %s22, 1
        %s1063 = smul.addr %s1062, 4
        %s1064 = smul.addr %s1063, 8
        %s1065 = scalar_lea.vmem %s10, %s1064
      $region72: #{se_resnet2d_forward.6} parent=67 // pred_fallthru
        _
    $region68: #{se_resnet2d_forward.6} parent=5 // pred_fallthru
      _
  $region6: #{se_resnet2d_forward.6} parent=0 // loop_footer
    %s20 = sadd.s32 1, %s16
  $region7: #{se_resnet2d_forward.6} parent=0 // loop_footer_branch
    %15 = sbr.rel target = $region3
  $region8: #{se_resnet2d_forward.6} parent=0 // loop_exit
    _

// kernel: se_resnet2d_forward.7
$region0: #{se_resnet2d_forward.7}
  #allocation0 [shape = 'u32[]', space=smem, size = 0x4, offset = 0x4, fixed_abs, tag = 'smem constant byte address 0x4 - core index']
  #allocation1 [shape = 'u32[144,128]{1,0:T(1,128)}', space=vmem, size = 0x12000, scoped, tag = 'internal scratch']
  %s0 = inlined_call_operand.vmem [shape: f32[2,16,256], index: 0, kind: input, shape index: {}]
  %s1 = inlined_call_operand.vmem [shape: f32[16,1], index: 1, kind: input, shape index: {}]
  %s2 = inlined_call_operand.vmem [shape: f32[16,1], index: 2, kind: input, shape index: {}]
  %s3 = inlined_call_operand.vmem [shape: f32[16,4], index: 3, kind: input, shape index: {}]
  %s4 = inlined_call_operand.vmem [shape: f32[1,4], index: 4, kind: input, shape index: {}]
  %s5 = inlined_call_operand.vmem [shape: f32[16,4], index: 5, kind: input, shape index: {}]
  %s6 = inlined_call_operand.vmem [shape: f32[16,1], index: 6, kind: input, shape index: {}]
  %s7 = inlined_call_operand.vmem [shape: f32[2,144], index: 7, kind: input, shape index: {}]
  %s8 = inlined_call_operand.vmem [shape: f32[2,2,256], index: 8, kind: output, shape index: {}]
  %s9 = sld [smem:[#allocation0]]
  $region65: #{se_resnet2d_forward.7} parent=0
    _
  %s11 = ssub.s32 1, %s9
  %s12 = scalar_select 0, %s11, %s9
  loop: start=0, step=1, limit=4
  $region2: #{se_resnet2d_forward.7} parent=0 // loop_pre_header
    _
  $region3: #{se_resnet2d_forward.7} parent=0 // loop_header
    %s14 = sphi 0, %s18
    %p15 = scmp.ge.s32.totalorder %s14, 4
    %s24 = sphi 0, %s26
    %s27 = sphi 0, %s24
    %s28 = sphi 0, %s27
    %s44 = sphi 0, %s28
    %s48 = sphi 0, %s48
    %s50 = sphi 0, %s48
    %s51 = sphi 0, %s50
    %s65 = sphi 0, %s51
    %s69 = sphi 0, %s69
    %s71 = sphi 0, %s69
    %s72 = sphi 0, %s71
    %s86 = sphi 0, %s72
    %s90 = sphi 0, %s90
    %s92 = sphi 0, %s90
    %s93 = sphi 0, %s92
    %s107 = sphi 0, %s93
    %s111 = sphi 0, %s111
    %s113 = sphi 0, %s111
    %s114 = sphi 0, %s113
    %s128 = sphi 0, %s114
    %s132 = sphi 0, %s132
    %s134 = sphi 0, %s132
    %s135 = sphi 0, %s134
    %s149 = sphi 0, %s135
    %s153 = sphi 0, %s153
    %s155 = sphi 0, %s153
    %s156 = sphi 0, %s155
    %s170 = sphi 0, %s156
    %s174 = sphi 0, %s174
    %s176 = sphi 0, %s174
    %s177 = sphi 0, %s176
    %s191 = sphi 0, %s177
    %s197 = sphi 0, %s199
    %s200 = sphi 0, %s197
    %s201 = sphi 0, %s200
    %s217 = sphi 0, %s201
  $region4: #{se_resnet2d_forward.7} parent=0 // loop_header_branch
    %17 = sbr.rel (%p15) target = $region8
  $region5: #{se_resnet2d_forward.7} parent=0 // loop_body
    %s19 = ssub.s32 %s14, 1
    %s20 = ssub.s32 %s14, 2
    %s21 = sadd.s32 %s14, 1
    %s22 = ssub.s32 %s14, %s21
    %p23 = scmp.eq.s32.totalorder %s22, 0
    %s25 = sadd.s32 %s24, 1
    %s26 = scalar_select %p23, %s24, %s25
    %p29 = pneg %p23
    %p30 = scmp.eq.s32.totalorder %s14, 1
    %p31 = por %p29, %p30
    %p32 = scmp.ne.s32.totalorder %s24, %s27
    %p33 = scmp.eq.s32.totalorder %s14, 0
    %p34 = por %p32, %p33
    %p35 = scmp.ne.s32.totalorder %s24, %s27
    %p36 = scmp.eq.s32.totalorder %s19, 1
    %p37 = por %p35, %p36
    %p38 = scmp.ne.s32.totalorder %s27, %s28
    %p39 = scmp.eq.s32.totalorder %s19, 0
    %p40 = por %p38, %p39
    %p41 = scmp.ne.s32.totalorder %s27, %s28
    %p42 = scmp.eq.s32.totalorder %s20, 1
    %p43 = por %p41, %p42
    %p45 = scmp.ne.s32.totalorder %s28, %s44
    %p46 = scmp.eq.s32.totalorder %s20, 0
    %p47 = por %p45, %p46
    %s49 = sadd.s32 %s48, 1
    %p52 = scmp.eq.s32.totalorder %s14, 1
    %p53 = scmp.ne.s32.totalorder %s48, %s50
    %p54 = scmp.eq.s32.totalorder %s14, 0
    %p55 = por %p53, %p54
    %p56 = scmp.ne.s32.totalorder %s48, %s50
    %p57 = scmp.eq.s32.totalorder %s19, 1
    %p58 = por %p56, %p57
    %p59 = scmp.ne.s32.totalorder %s50, %s51
    %p60 = scmp.eq.s32.totalorder %s19, 0
    %p61 = por %p59, %p60
    %p62 = scmp.ne.s32.totalorder %s50, %s51
    %p63 = scmp.eq.s32.totalorder %s20, 1
    %p64 = por %p62, %p63
    %p66 = scmp.ne.s32.totalorder %s51, %s65
    %p67 = scmp.eq.s32.totalorder %s20, 0
    %p68 = por %p66, %p67
    %s70 = sadd.s32 %s69, 1
    %p73 = scmp.eq.s32.totalorder %s14, 1
    %p74 = scmp.ne.s32.totalorder %s69, %s71
    %p75 = scmp.eq.s32.totalorder %s14, 0
    %p76 = por %p74, %p75
    %p77 = scmp.ne.s32.totalorder %s69, %s71
    %p78 = scmp.eq.s32.totalorder %s19, 1
    %p79 = por %p77, %p78
    %p80 = scmp.ne.s32.totalorder %s71, %s72
    %p81 = scmp.eq.s32.totalorder %s19, 0
    %p82 = por %p80, %p81
    %p83 = scmp.ne.s32.totalorder %s71, %s72
    %p84 = scmp.eq.s32.totalorder %s20, 1
    %p85 = por %p83, %p84
    %p87 = scmp.ne.s32.totalorder %s72, %s86
    %p88 = scmp.eq.s32.totalorder %s20, 0
    %p89 = por %p87, %p88
    %s91 = sadd.s32 %s90, 1
    %p94 = scmp.eq.s32.totalorder %s14, 1
    %p95 = scmp.ne.s32.totalorder %s90, %s92
    %p96 = scmp.eq.s32.totalorder %s14, 0
    %p97 = por %p95, %p96
    %p98 = scmp.ne.s32.totalorder %s90, %s92
    %p99 = scmp.eq.s32.totalorder %s19, 1
    %p100 = por %p98, %p99
    %p101 = scmp.ne.s32.totalorder %s92, %s93
    %p102 = scmp.eq.s32.totalorder %s19, 0
    %p103 = por %p101, %p102
    %p104 = scmp.ne.s32.totalorder %s92, %s93
    %p105 = scmp.eq.s32.totalorder %s20, 1
    %p106 = por %p104, %p105
    %p108 = scmp.ne.s32.totalorder %s93, %s107
    %p109 = scmp.eq.s32.totalorder %s20, 0
    %p110 = por %p108, %p109
    %s112 = sadd.s32 %s111, 1
    %p115 = scmp.eq.s32.totalorder %s14, 1
    %p116 = scmp.ne.s32.totalorder %s111, %s113
    %p117 = scmp.eq.s32.totalorder %s14, 0
    %p118 = por %p116, %p117
    %p119 = scmp.ne.s32.totalorder %s111, %s113
    %p120 = scmp.eq.s32.totalorder %s19, 1
    %p121 = por %p119, %p120
    %p122 = scmp.ne.s32.totalorder %s113, %s114
    %p123 = scmp.eq.s32.totalorder %s19, 0
    %p124 = por %p122, %p123
    %p125 = scmp.ne.s32.totalorder %s113, %s114
    %p126 = scmp.eq.s32.totalorder %s20, 1
    %p127 = por %p125, %p126
    %p129 = scmp.ne.s32.totalorder %s114, %s128
    %p130 = scmp.eq.s32.totalorder %s20, 0
    %p131 = por %p129, %p130
    %s133 = sadd.s32 %s132, 1
    %p136 = scmp.eq.s32.totalorder %s14, 1
    %p137 = scmp.ne.s32.totalorder %s132, %s134
    %p138 = scmp.eq.s32.totalorder %s14, 0
    %p139 = por %p137, %p138
    %p140 = scmp.ne.s32.totalorder %s132, %s134
    %p141 = scmp.eq.s32.totalorder %s19, 1
    %p142 = por %p140, %p141
    %p143 = scmp.ne.s32.totalorder %s134, %s135
    %p144 = scmp.eq.s32.totalorder %s19, 0
    %p145 = por %p143, %p144
    %p146 = scmp.ne.s32.totalorder %s134, %s135
    %p147 = scmp.eq.s32.totalorder %s20, 1
    %p148 = por %p146, %p147
    %p150 = scmp.ne.s32.totalorder %s135, %s149
    %p151 = scmp.eq.s32.totalorder %s20, 0
    %p152 = por %p150, %p151
    %s154 = sadd.s32 %s153, 1
    %p157 = scmp.eq.s32.totalorder %s14, 1
    %p158 = scmp.ne.s32.totalorder %s153, %s155
    %p159 = scmp.eq.s32.totalorder %s14, 0
    %p160 = por %p158, %p159
    %p161 = scmp.ne.s32.totalorder %s153, %s155
    %p162 = scmp.eq.s32.totalorder %s19, 1
    %p163 = por %p161, %p162
    %p164 = scmp.ne.s32.totalorder %s155, %s156
    %p165 = scmp.eq.s32.totalorder %s19, 0
    %p166 = por %p164, %p165
    %p167 = scmp.ne.s32.totalorder %s155, %s156
    %p168 = scmp.eq.s32.totalorder %s20, 1
    %p169 = por %p167, %p168
    %p171 = scmp.ne.s32.totalorder %s156, %s170
    %p172 = scmp.eq.s32.totalorder %s20, 0
    %p173 = por %p171, %p172
    %s175 = sadd.s32 %s174, 1
    %p178 = scmp.eq.s32.totalorder %s14, 1
    %p179 = scmp.ne.s32.totalorder %s174, %s176
    %p180 = scmp.eq.s32.totalorder %s14, 0
    %p181 = por %p179, %p180
    %p182 = scmp.ne.s32.totalorder %s174, %s176
    %p183 = scmp.eq.s32.totalorder %s19, 1
    %p184 = por %p182, %p183
    %p185 = scmp.ne.s32.totalorder %s176, %s177
    %p186 = scmp.eq.s32.totalorder %s19, 0
    %p187 = por %p185, %p186
    %p188 = scmp.ne.s32.totalorder %s176, %s177
    %p189 = scmp.eq.s32.totalorder %s20, 1
    %p190 = por %p188, %p189
    %p192 = scmp.ne.s32.totalorder %s177, %s191
    %p193 = scmp.eq.s32.totalorder %s20, 0
    %p194 = por %p192, %p193
    %s195 = ssub.s32 %s14, %s21
    %p196 = scmp.eq.s32.totalorder %s195, 0
    %s198 = sadd.s32 %s197, 1
    %s199 = scalar_select %p196, %s197, %s198
    %p202 = pneg %p196
    %p203 = scmp.eq.s32.totalorder %s14, 1
    %p204 = por %p202, %p203
    %p205 = scmp.ne.s32.totalorder %s197, %s200
    %p206 = scmp.eq.s32.totalorder %s14, 0
    %p207 = por %p205, %p206
    %p208 = scmp.ne.s32.totalorder %s197, %s200
    %p209 = scmp.eq.s32.totalorder %s19, 1
    %p210 = por %p208, %p209
    %p211 = scmp.ne.s32.totalorder %s200, %s201
    %p212 = scmp.eq.s32.totalorder %s19, 0
    %p213 = por %p211, %p212
    %p214 = scmp.ne.s32.totalorder %s200, %s201
    %p215 = scmp.eq.s32.totalorder %s20, 1
    %p216 = por %p214, %p215
    %p218 = scmp.ne.s32.totalorder %s201, %s217
    %p219 = scmp.eq.s32.totalorder %s20, 0
    %p220 = por %p218, %p219
    %p221 = scmp.le.s32.totalorder 1, %s14
    %p222 = scmp.lt.s32.totalorder %s14, 3
    %p223 = pnand %p221, %p222
    %p224 = pneg %p223
    // Predicated region
    $region9: #{se_resnet2d_forward.7} parent=5 // pred_check
      _
    $region10: #{se_resnet2d_forward.7} parent=5 // pred_check_branch
      %226 = sbr.rel (%p223) target = $region12
    $region11: #{se_resnet2d_forward.7} parent=5 // pred_region
      %s227 = ssub.s32 %s14, 1
      // Predicated region
      $region13: #{se_resnet2d_forward.7} parent=11 // pred_check
        %p228 = pneg %p61
      $region14: #{se_resnet2d_forward.7} parent=11 // pred_check_branch
        %230 = sbr.rel (%p228) target = $region16
      $region15: #{se_resnet2d_forward.7} parent=11 // pred_region
        _
      $region16: #{se_resnet2d_forward.7} parent=11 // pred_fallthru
        _
      // Predicated region
      $region17: #{se_resnet2d_forward.7} parent=11 // pred_check
        %p231 = pneg %p82
      $region18: #{se_resnet2d_forward.7} parent=11 // pred_check_branch
        %233 = sbr.rel (%p231) target = $region20
      $region19: #{se_resnet2d_forward.7} parent=11 // pred_region
        _
      $region20: #{se_resnet2d_forward.7} parent=11 // pred_fallthru
        _
      // Predicated region
      $region21: #{se_resnet2d_forward.7} parent=11 // pred_check
        %p234 = pneg %p103
      $region22: #{se_resnet2d_forward.7} parent=11 // pred_check_branch
        %236 = sbr.rel (%p234) target = $region24
      $region23: #{se_resnet2d_forward.7} parent=11 // pred_region
        _
      $region24: #{se_resnet2d_forward.7} parent=11 // pred_fallthru
        _
      // Predicated region
      $region25: #{se_resnet2d_forward.7} parent=11 // pred_check
        %p237 = pneg %p124
      $region26: #{se_resnet2d_forward.7} parent=11 // pred_check_branch
        %239 = sbr.rel (%p237) target = $region28
      $region27: #{se_resnet2d_forward.7} parent=11 // pred_region
        _
      $region28: #{se_resnet2d_forward.7} parent=11 // pred_fallthru
        _
      // Predicated region
      $region29: #{se_resnet2d_forward.7} parent=11 // pred_check
        %p240 = pneg %p145
      $region30: #{se_resnet2d_forward.7} parent=11 // pred_check_branch
        %242 = sbr.rel (%p240) target = $region32
      $region31: #{se_resnet2d_forward.7} parent=11 // pred_region
        _
      $region32: #{se_resnet2d_forward.7} parent=11 // pred_fallthru
        _
      // Predicated region
      $region33: #{se_resnet2d_forward.7} parent=11 // pred_check
        %p243 = pneg %p166
      $region34: #{se_resnet2d_forward.7} parent=11 // pred_check_branch
        %245 = sbr.rel (%p243) target = $region36
      $region35: #{se_resnet2d_forward.7} parent=11 // pred_region
        _
      $region36: #{se_resnet2d_forward.7} parent=11 // pred_fallthru
        _
      // Predicated region
      $region37: #{se_resnet2d_forward.7} parent=11 // pred_check
        %p246 = pneg %p187
      $region38: #{se_resnet2d_forward.7} parent=11 // pred_check_branch
        %248 = sbr.rel (%p246) target = $region40
      $region39: #{se_resnet2d_forward.7} parent=11 // pred_region
        _
      $region40: #{se_resnet2d_forward.7} parent=11 // pred_fallthru
        _
    $region12: #{se_resnet2d_forward.7} parent=5 // pred_fallthru
      _
    %p249 = scmp.lt.s32.totalorder %s14, 2
    // Predicated region
    $region41: #{se_resnet2d_forward.7} parent=5 // pred_check
      %p250 = pneg %p249
    $region42: #{se_resnet2d_forward.7} parent=5 // pred_check_branch
      %252 = sbr.rel (%p250) target = $region44
    $region43: #{se_resnet2d_forward.7} parent=5 // pred_region
      // Predicated region
      $region45: #{se_resnet2d_forward.7} parent=43 // pred_check
        %p253 = pneg %p34
      $region46: #{se_resnet2d_forward.7} parent=43 // pred_check_branch
        %255 = sbr.rel (%p253) target = $region48
      $region47: #{se_resnet2d_forward.7} parent=43 // pred_region
        %p256 = scmp.lt.s32.totalorder %s14, 1
        %s257 = scalar_select %p256, %s14, 1
        %s258 = smul.addr %s257, 4
        %s259 = smul.addr %s258, 8
        %s260 = scalar_lea.vmem %s0, %s259
      $region48: #{se_resnet2d_forward.7} parent=43 // pred_fallthru
        _
    $region44: #{se_resnet2d_forward.7} parent=5 // pred_fallthru
      _
    %p261 = scmp.le.s32.totalorder 1, %s14
    %p262 = scmp.lt.s32.totalorder %s14, 3
    %p263 = pnand %p261, %p262
    %p264 = pneg %p263
    // Predicated region
    $region49: #{se_resnet2d_forward.7} parent=5 // pred_check
      _
    $region50: #{se_resnet2d_forward.7} parent=5 // pred_check_branch
      %266 = sbr.rel (%p263) target = $region52
    $region51: #{se_resnet2d_forward.7} parent=5 // pred_region
      %s267 = ssub.s32 %s14, 1
      %p268 = scmp.lt.s32.totalorder %s19, 1
      %s269 = scalar_select %p268, %s19, 1
      %s270 = smul.addr %s269, 4
      %s271 = smul.addr %s270, 8
      %s272 = scalar_lea.vmem %s0, %s271
      %p273 = pneg %p40
      %p274 = pneg %p37
      %p275 = pneg %p61
      %p276 = pneg %p58
      %p277 = pneg %p82
      %p278 = pneg %p79
      %p279 = pneg %p103
      %p280 = pneg %p100
      %p281 = pneg %p124
      %p282 = pneg %p121
      %p283 = pneg %p145
      %p284 = pneg %p142
      %p285 = pneg %p166
      %p286 = pneg %p163
      %p287 = pneg %p187
      %p288 = pneg %p184
      %p289 = pneg %p213
      %p290 = pneg %p210
      %p291 = scmp.lt.s32.totalorder %s19, 1
      %s292 = scalar_select %p291, %s19, 1
      %s293 = smul.addr %s292, 2
      %s294 = smul.addr %s293, 2
      %s295 = scalar_lea.vmem %s8, %s294
      %p296 = scmp.lt.s32.totalorder %s19, 1
      %s297 = scalar_select %p296, %s19, 1
      %s298 = smul.addr %s297, 4
      %s299 = smul.addr %s298, 8
      %s300 = scalar_lea.vmem %s0, %s299
      %p301 = scmp.lt.s32.totalorder %s19, 1
      %s302 = scalar_select %p301, %s19, 1
      %s303 = smul.addr %s302, 2
      %s304 = smul.addr %s303, 2
      %s305 = scalar_lea.vmem %s8, %s304
      %v306 = vld [vmem:[%s300] sm:$0xff]
      %v307 = vld [vmem:[%s300 + $0x8] sm:$0xff]
      %v308 = vld [vmem:[%s300 + $0x10] sm:$0xff]
      %v309 = vld [vmem:[%s300 + $0x18] sm:$0xff]
      %v310 = vld [vmem:[%s1] sm:$0xff]
      %v311 = vld [vmem:[%s1 + $0x8] sm:$0xff]
      %313 = vset.pattern.permute.xlu0 0
      %314 = vperm.xlu0 %313, %v310
      %v315 = vpop.permute.xlu0 %314
      %318 = vset.pattern.permute.xlu0 0
      %319 = vperm.xlu0 %318, %v311
      %v320 = vpop.permute.xlu0 %319
      %v322 = vmul.f32 %v306, %v315
      %v323 = vmul.f32 %v307, %v315
      %v324 = vmul.f32 %v308, %v320
      %v325 = vmul.f32 %v309, %v320
      %v326 = vld [vmem:[%s2] sm:$0xff]
      %v327 = vld [vmem:[%s2 + $0x8] sm:$0xff]
      %329 = vset.pattern.permute.xlu0 0
      %330 = vperm.xlu0 %329, %v326
      %v331 = vpop.permute.xlu0 %330
      %334 = vset.pattern.permute.xlu0 0
      %335 = vperm.xlu0 %334, %v327
      %v336 = vpop.permute.xlu0 %335
      %v338 = vadd.f32 %v322, %v331
      %v339 = vadd.f32 %v323, %v331
      %v340 = vadd.f32 %v324, %v336
      %v341 = vadd.f32 %v325, %v336
      %v342 = vld [vmem:[%s3] sm:$0xff]
      %v343 = vld [vmem:[%s3 + $0x8] sm:$0xff]
      %v344 = vld [vmem:[%s4] sm:$0x1]
      %v345 = vld [vmem:[%s5] sm:$0xff]
      %v346 = vld [vmem:[%s5 + $0x8] sm:$0xff]
      %v347 = vld [vmem:[%s6] sm:$0xff]
      %v348 = vld [vmem:[%s6 + $0x8] sm:$0xff]
      %v349 = vadd.f32 %v338, %v339
      %350 = vadd.xlane.f32.xlu0 %v349
      %v351 = vpop.xlane.xlu0 %350
      %v352 = vadd.f32 %v340, %v341
      %353 = vadd.xlane.f32.xlu0 %v352
      %v354 = vpop.xlane.xlu0 %353
      %v355 = vmul.f32 %v351, 0.00390625
      %v356 = vmul.f32 %v354, 0.00390625
      %v357 = vmul.f32 %v342, %v355
      %v358 = vmul.f32 %v343, %v356
      %vm359 = vcmask 31744
      %v360 = vsel %vm359, %v357, 0.0
      %v361 = vsel %vm359, %v358, 0.0
      %v362 = vadd.f32 %v360, %v361
      %v363 = vrot.slane %v362, 4
      %v364 = vadd.f32 %v362, %v363
      %v365 = vrot.slane %v364, 2
      %v366 = vadd.f32 %v364, %v365
      %v367 = vrot.slane %v366, 1
      %v368 = vadd.f32 %v366, %v367
      %v369 = vadd.f32 %v368, %v344
      %v370 = vmax.f32 %v369, 0.0
      %v371 = vlaneseq
      %v372 = vshrl.u32 %v371, 7
      %v373 = vsub.s32 0, %v372
      %v374 = vrot.slane %v370, %v373
      %v375 = vmul.f32 %v345, %v374
      %v376 = vmul.f32 %v346, %v374
      %v377 = vsel %vm359, %v375, 0.0
      %378 = vadd.xlane.f32.xlu0 %v377
      %v379 = vpop.xlane.xlu0 %378
      %v380 = vsel %vm359, %v376, 0.0
      %381 = vadd.xlane.f32.xlu0 %v380
      %v382 = vpop.xlane.xlu0 %381
      %v383 = vadd.f32 %v379, %v347
      %v384 = vadd.f32 %v382, %v348
      %v385 = vxor.u32 %v383, 2147483648
      %v386 = vxor.u32 %v384, 2147483648
      %v387 = vmul.f32 %v385, 1.442695
      %v388 = vpow.pop %v387
      %v389 = vmul.f32 %v386, 1.442695
      %v390 = vpow.pop %v389
      %v391 = vadd.f32 %v388, 1.0
      %v392 = vadd.f32 %v390, 1.0
      %v393 = vrcp.pop %v391
      %v394 = vmul.f32 1.0, %v393
      %v395 = vrcp.pop %v392
      %v396 = vmul.f32 1.0, %v395
      %398 = vset.pattern.permute.xlu0 0
      %399 = vperm.xlu0 %398, %v394
      %v400 = vpop.permute.xlu0 %399
      %403 = vset.pattern.permute.xlu0 0
      %404 = vperm.xlu0 %403, %v396
      %v405 = vpop.permute.xlu0 %404
      %v407 = vmul.f32 %v338, %v400
      %v408 = vmul.f32 %v339, %v400
      %v409 = vmul.f32 %v340, %v405
      %v410 = vmul.f32 %v341, %v405
      %v411 = vmax.f32 %v407, 0.0
      %v412 = vmax.f32 %v408, 0.0
      %v413 = vmax.f32 %v409, 0.0
      %v414 = vmax.f32 %v410, 0.0
      %v415 = vld [vmem:[%s7] sm:$0xf]
      %v416 = vlaneseq
      %v417 = vand.u32 %v416, 127
      %v418 = vadd.s32 %v417, 128
      %vm419 = vcmp.lt.s32.totalorder %v417, 0
      %v420 = vsub.s32 0, %v417
      %v421 = vsel %vm419, %v420, %v417
      %v422 = vshrl.u32 %v421, 4
      %v423 = vand.u32 %v421, 15
      %v424 = vsub.s32 0, %v423
      %v425 = vsel %vm419, %v424, %v423
      %vm426 = vcmp.lt.s32.totalorder %v418, 0
      %v427 = vsub.s32 0, %v418
      %v428 = vsel %vm426, %v427, %v418
      %v429 = vshrl.u32 %v428, 4
      %v430 = vand.u32 %v428, 15
      %v431 = vsub.s32 0, %v430
      %v432 = vsel %vm426, %v431, %v430
      %vm433 = vcmp.ne.s32.totalorder %v425, 0
      %vm434 = vcmp.ne.s32.totalorder %v432, 0
      %vm435 = vcmp.lt.s32.totalorder %v425, 0
      %vm436 = vcmp.lt.s32.totalorder %v432, 0
      %vm437 = vmand %vm435, %vm433
      %vm438 = vmand %vm436, %vm434
      %v439 = vadd.s32 %v425, 16
      %v440 = vadd.s32 %v432, 16
      %v441 = vsel %vm437, %v439, %v425
      %v442 = vsel %vm438, %v440, %v432
      %vm443 = vcmp.lt.s32.totalorder %v441, 1
      %vm444 = vcmp.lt.s32.totalorder %v442, 1
      %449 = vrot.lane.b32.xlu0 %v411, 113
      %v450 = vpop.permute.xlu0 %449
      %451 = vrot.lane.b32.xlu0 %v412, 113
      %v452 = vpop.permute.xlu0 %451
      %453 = vrot.lane.b32.xlu0 %v413, 113
      %v454 = vpop.permute.xlu0 %453
      %455 = vrot.lane.b32.xlu0 %v414, 113
      %v456 = vpop.permute.xlu0 %455
      %vm457 = vcmask 924672
      %v458 = vsel %vm457, %v450, %v452
      %v459 = vsel %vm457, %v454, %v456
      %v466 = vsel %vm457, %v452, %v450
      %v467 = vsel %vm457, %v456, %v454
      %468 = vrot.lane.b32.xlu0 %v412, 1
      %v469 = vpop.permute.xlu0 %468
      %470 = vrot.lane.b32.xlu0 %v414, 1
      %v471 = vpop.permute.xlu0 %470
      %474 = vrot.lane.b32.xlu0 %v411, 1
      %v475 = vpop.permute.xlu0 %474
      %476 = vrot.lane.b32.xlu0 %v413, 1
      %v477 = vpop.permute.xlu0 %476
      %vm478 = vcmask 7168
      %v479 = vsel %vm478, %v475, %v469
      %v480 = vsel %vm478, %v477, %v471
      %v485 = vsel %vm478, %v469, %v475
      %v486 = vsel %vm478, %v471, %v477
      %v487 = vsel %vm443, %v458, %v485
      %v488 = vsel %vm444, %v466, %v479
      %v489 = vsel %vm443, %v459, %v486
      %v490 = vsel %vm444, %v467, %v480
      %493 = vrot.lane.b32.xlu0 %v488, 16
      %v494 = vpop.permute.xlu0 %493
      %495 = vrot.lane.b32.xlu0 %v490, 16
      %v496 = vpop.permute.xlu0 %495
      %501 = vrot.lane.b32.xlu0 %v487, 16
      %v502 = vpop.permute.xlu0 %501
      %503 = vrot.lane.b32.xlu0 %v489, 16
      %v504 = vpop.permute.xlu0 %503
      %vm505 = vcmask 130048
      %v506 = vsel %vm505, %v502, %v494
      %v507 = vsel %vm505, %v504, %v496
      %v512 = vsel %vm505, %v494, %v502
      %v513 = vsel %vm505, %v496, %v504
      %514 = vrot.lane.b32.xlu0 %v487, 112
      %v515 = vpop.permute.xlu0 %514
      %516 = vrot.lane.b32.xlu0 %v488, 112
      %v517 = vpop.permute.xlu0 %516
      %518 = vrot.lane.b32.xlu0 %v489, 112
      %v519 = vpop.permute.xlu0 %518
      %520 = vrot.lane.b32.xlu0 %v490, 112
      %v521 = vpop.permute.xlu0 %520
      %vm522 = vcmask 916480
      %v523 = vsel %vm522, %v515, %v517
      %v524 = vsel %vm522, %v519, %v521
      %v531 = vsel %vm522, %v517, %v515
      %v532 = vsel %vm522, %v521, %v519
      %533 = vrot.lane.b32.xlu0 %v412, 16
      %v534 = vpop.permute.xlu0 %533
      %535 = vrot.lane.b32.xlu0 %v414, 16
      %v536 = vpop.permute.xlu0 %535
      %539 = vrot.lane.b32.xlu0 %v411, 16
      %v540 = vpop.permute.xlu0 %539
      %541 = vrot.lane.b32.xlu0 %v413, 16
      %v542 = vpop.permute.xlu0 %541
      %v543 = vsel %vm505, %v540, %v534
      %v544 = vsel %vm505, %v542, %v536
      %v549 = vsel %vm505, %v534, %v540
      %v550 = vsel %vm505, %v536, %v542
      %551 = vrot.lane.b32.xlu0 %v411, 112
      %v552 = vpop.permute.xlu0 %551
      %553 = vrot.lane.b32.xlu0 %v412, 112
      %v554 = vpop.permute.xlu0 %553
      %555 = vrot.lane.b32.xlu0 %v413, 112
      %v556 = vpop.permute.xlu0 %555
      %557 = vrot.lane.b32.xlu0 %v414, 112
      %v558 = vpop.permute.xlu0 %557
      %v559 = vsel %vm522, %v552, %v554
      %v560 = vsel %vm522, %v556, %v558
      %v567 = vsel %vm522, %v554, %v552
      %v568 = vsel %vm522, %v558, %v556
      %vm569 = vcmp.ge.s32.totalorder %v441, 15
      %vm570 = vcmp.ge.s32.totalorder %v442, 15
      %571 = vrot.lane.b32.xlu0 %v412, 15
      %v572 = vpop.permute.xlu0 %571
      %573 = vrot.lane.b32.xlu0 %v414, 15
      %v574 = vpop.permute.xlu0 %573
      %577 = vrot.lane.b32.xlu0 %v411, 15
      %v578 = vpop.permute.xlu0 %577
      %579 = vrot.lane.b32.xlu0 %v413, 15
      %v580 = vpop.permute.xlu0 %579
      %vm581 = vcmask 121856
      %v582 = vsel %vm581, %v578, %v572
      %v583 = vsel %vm581, %v580, %v574
      %v588 = vsel %vm581, %v572, %v578
      %v589 = vsel %vm581, %v574, %v580
      %590 = vrot.lane.b32.xlu0 %v411, 127
      %v591 = vpop.permute.xlu0 %590
      %592 = vrot.lane.b32.xlu0 %v412, 127
      %v593 = vpop.permute.xlu0 %592
      %594 = vrot.lane.b32.xlu0 %v413, 127
      %v595 = vpop.permute.xlu0 %594
      %596 = vrot.lane.b32.xlu0 %v414, 127
      %v597 = vpop.permute.xlu0 %596
      %vm598 = vcmask 1039360
      %v599 = vsel %vm598, %v591, %v593
      %v600 = vsel %vm598, %v595, %v597
      %v607 = vsel %vm598, %v593, %v591
      %v608 = vsel %vm598, %v597, %v595
      %v609 = vsel %vm569, %v588, %v599
      %v610 = vsel %vm570, %v582, %v607
      %v611 = vsel %vm569, %v589, %v600
      %v612 = vsel %vm570, %v583, %v608
      %615 = vrot.lane.b32.xlu0 %v610, 16
      %v616 = vpop.permute.xlu0 %615
      %617 = vrot.lane.b32.xlu0 %v612, 16
      %v618 = vpop.permute.xlu0 %617
      %623 = vrot.lane.b32.xlu0 %v609, 16
      %v624 = vpop.permute.xlu0 %623
      %625 = vrot.lane.b32.xlu0 %v611, 16
      %v626 = vpop.permute.xlu0 %625
      %v627 = vsel %vm505, %v624, %v616
      %v628 = vsel %vm505, %v626, %v618
      %v633 = vsel %vm505, %v616, %v624
      %v634 = vsel %vm505, %v618, %v626
      %635 = vrot.lane.b32.xlu0 %v609, 112
      %v636 = vpop.permute.xlu0 %635
      %637 = vrot.lane.b32.xlu0 %v610, 112
      %v638 = vpop.permute.xlu0 %637
      %639 = vrot.lane.b32.xlu0 %v611, 112
      %v640 = vpop.permute.xlu0 %639
      %641 = vrot.lane.b32.xlu0 %v612, 112
      %v642 = vpop.permute.xlu0 %641
      %v643 = vsel %vm522, %v636, %v638
      %v644 = vsel %vm522, %v640, %v642
      %v651 = vsel %vm522, %v638, %v636
      %v652 = vsel %vm522, %v642, %v640
      %v655 = vunpack.c.l.s4 1983009808
      %v656 = vunpack.c.0.s8 %v655
      %v657 = vlaneseq
      %v658 = vshrl.u32 %v657, 7
      %v659 = vsub.s32 %v656, %v658
      %v660 = vrot.slane %v415, %v659
      %v661 = vcombine.high %v660, %v660
      %v663 = vsel %vm505, %v661, 0
      %665 = vmatprep.subr.mxu0 %v612
      %666 = vmatpush1.msra.mxu0 %v611
      %667 = vmatprep.subr.mxu0 %v610
      %668 = vmatpush1.msra.mxu0 %v609
      %669 = vmatprep.subr.mxu0 %v628
      %670 = vmatpush1.msra.mxu0 %v634
      %671 = vmatprep.subr.mxu0 %v627
      %672 = vmatpush1.msra.mxu0 %v633
      %673 = vmatprep.subr.mxu0 %v568
      %674 = vmatpush1.msra.mxu0 %v560
      %675 = vmatprep.subr.mxu0 %v567
      %676 = vmatpush1.msra.mxu0 %v559
      %677 = vmatprep.subr.mxu0 %v414
      %678 = vmatpush1.msra.mxu0 %v413
      %679 = vmatprep.subr.mxu0 %v412
      %680 = vmatpush1.msra.mxu0 %v411
      %681 = vmatprep.subr.mxu0 %v544
      %682 = vmatpush1.msra.mxu0 %v550
      %683 = vmatprep.subr.mxu0 %v543
      %684 = vmatpush1.msra.mxu0 %v549
      %685 = vmatprep.subr.mxu0 %v532
      %686 = vmatpush1.msra.mxu0 %v524
      %687 = vmatprep.subr.mxu0 %v531
      %688 = vmatpush1.msra.mxu0 %v523
      %689 = vmatprep.subr.mxu0 %v490
      %690 = vmatpush1.msra.mxu0 %v489
      %691 = vmatprep.subr.mxu0 %v488
      %692 = vmatpush1.msra.mxu0 %v487
      %693 = vmatprep.subr.mxu0 %v507
      %694 = vmatpush1.msra.mxu0 %v513
      %695 = vmatprep.subr.mxu0 %v506
      %696 = vmatpush1.msra.mxu0 %v512
      %697 = vmatprep.subr.mxu0 0.0
      %698 = vmatpush2.msra.mxu0 0.0
      %699 = vmatprep.subr.mxu0 0.0
      %700 = vmatpush2.msra.mxu0 0.0
      %701 = vmatprep.subr.mxu0 0.0
      %702 = vmatpush2.msra.mxu0 0.0
      %703 = vmatprep.subr.mxu0 0.0
      %704 = vmatpush2.msra.mxu0 0.0
      %705 = vmatprep.subr.mxu0 0.0
      %706 = vmatpush2.msra.mxu0 0.0
      %707 = vmatprep.subr.mxu0 0.0
      %708 = vmatpush2.msra.mxu0 0.0
      %709 = vmatprep.subr.mxu0 0.0
      %710 = vmatpush2.msra.mxu0 0.0
      %711 = vmatprep.subr.mxu0 0.0
      %712 = vmatpush2.msra.mxu0 0.0
      %713 = vmatprep.subr.mxu0 0.0
      %714 = vmatpush2.msra.mxu0 0.0
      %715 = vmatprep.subr.mxu0 0.0
      %716 = vmatpush2.msra.mxu0 0.0
      %717 = vmatprep.subr.mxu0 0.0
      %718 = vmatpush2.msra.mxu0 0.0
      %719 = vmatprep.subr.mxu0 0.0
      %720 = vmatpush2.msra.mxu0 0.0
      %721 = vmatprep.subr.mxu0 0.0
      %722 = vmatpush2.msra.mxu0 0.0
      %723 = vmatprep.subr.mxu0 0.0
      %724 = vmatpush2.msra.mxu0 0.0
      %725 = vmatprep.subr.mxu0 %v652
      %726 = vmatpush2.msra.mxu0 %v644
      %727 = vmatprep.subr.mxu0 %v651
      %728 = vmatpush2.msra.mxu0 %v643
      %729 = vmatprep.mubr.f32.mxu0 %v663
      %730 = vmatmul.mubr.f32.gmra.mxu0 %v660
      %v731 = vpop.f32.mrf.mxu0
      %v732 = vadd.f32 0.0, %v731
      %v733 = vpop.f32.mrf.mxu0
      %v734 = vadd.f32 0.0, %v733
      %735 = vdwg.mxu0
      %v738 = vcombine.low %v732, %v734
      %v740 = vunpack.c.l.s4 1983009808
      %v741 = vunpack.c.0.s8 %v740
      %v742 = vlaneseq
      %v743 = vshrl.u32 %v742, 7
      %v744 = vsub.s32 %v741, %v743
      %v745 = vrot.slane %v738, %v744
      %747 = vst [vmem:[%s305] sm:$0xf] %v745
      %p748 = scmp.lt.s32.totalorder %s19, 1
      %s749 = scalar_select %p748, %s19, 1
      %s750 = smul.addr %s749, 2
      %s751 = smul.addr %s750, 2
      %s752 = scalar_lea.vmem %s8, %s751
      // Predicated region
      $region53: #{se_resnet2d_forward.7} parent=51 // pred_check
        %p753 = pneg %p210
      $region54: #{se_resnet2d_forward.7} parent=51 // pred_check_branch
        %755 = sbr.rel (%p753) target = $region56
      $region55: #{se_resnet2d_forward.7} parent=51 // pred_region
        _
      $region56: #{se_resnet2d_forward.7} parent=51 // pred_fallthru
        _
    $region52: #{se_resnet2d_forward.7} parent=5 // pred_fallthru
      _
    %p756 = scmp.le.s32.totalorder 2, %s14
    // Predicated region
    $region57: #{se_resnet2d_forward.7} parent=5 // pred_check
      %p757 = pneg %p756
    $region58: #{se_resnet2d_forward.7} parent=5 // pred_check_branch
      %759 = sbr.rel (%p757) target = $region60
    $region59: #{se_resnet2d_forward.7} parent=5 // pred_region
      %s760 = ssub.s32 %s14, 2
      // Predicated region
      $region61: #{se_resnet2d_forward.7} parent=59 // pred_check
        %p761 = pneg %p216
      $region62: #{se_resnet2d_forward.7} parent=59 // pred_check_branch
        %763 = sbr.rel (%p761) target = $region64
      $region63: #{se_resnet2d_forward.7} parent=59 // pred_region
        %p764 = scmp.lt.s32.totalorder %s20, 1
        %s765 = scalar_select %p764, %s20, 1
        %s766 = smul.addr %s765, 2
        %s767 = smul.addr %s766, 2
        %s768 = scalar_lea.vmem %s8, %s767
      $region64: #{se_resnet2d_forward.7} parent=59 // pred_fallthru
        _
    $region60: #{se_resnet2d_forward.7} parent=5 // pred_fallthru
      _
  $region6: #{se_resnet2d_forward.7} parent=0 // loop_footer
    %s18 = sadd.s32 1, %s14
  $region7: #{se_resnet2d_forward.7} parent=0 // loop_footer_branch
    %13 = sbr.rel target = $region3
  $region8: #{se_resnet2d_forward.7} parent=0 // loop_exit
    _

</llo_original>
